<compile_context>
chip_gen: v6e
topology: v6e:2x2x1
jax: 0.10.0
libtpu: 0.0.40
codegen_flags: <defaults>
</compile_context>

<pallas_src>
import math
import functools

import jax
import jax.numpy as jnp
from jax import lax
from jax.experimental import pallas as pl
from jax.experimental.pallas import tpu as pltpu

NUM_HEADS = 4
BN_EPS = 1e-5  # torch.nn.BatchNorm1d default


# ---------------------------------------------------------------------------
# small helpers
# ---------------------------------------------------------------------------
def _pick_row_tile(n):
    # Full block when small (block == full dim is always legal); otherwise a
    # 256-row tile: multiple of 8 sublanes and MXU-friendly on v5e/v6e/v7x.
    return n if n <= 256 else 256


def _compiler_params(semantics, resident_bytes):
    # Raise the scoped-VMEM limit above the 16/32 MiB defaults (resident
    # weights + double-buffered tiles), but stay under v7x's 64 MiB physical.
    limit = int(min(max(4 * resident_bytes, 32 * 1024 * 1024), 56 * 1024 * 1024))
    return pltpu.CompilerParams(dimension_semantics=semantics,
                                vmem_limit_bytes=limit)


# ---------------------------------------------------------------------------
# 1) generic linear:  y = x @ W + b   (row-tiled grid, weights VMEM-resident)
# ---------------------------------------------------------------------------
def _linear_kernel(x_ref, w_ref, b_ref, o_ref):
    x = x_ref[...]                                   # keep input dtype for MXU
    acc = jnp.dot(x, w_ref[...], preferred_element_type=jnp.float32)
    acc = acc + b_ref[...].astype(jnp.float32)
    o_ref[...] = acc.astype(o_ref.dtype)


def linear_pallas(x, w, b):
    """x: (..., Din); w: (Din, Dout); b: (Dout,) -> (..., Dout)."""
    din, dout = w.shape
    lead = x.shape[:-1]
    x2d = x.reshape(-1, din)
    n = x2d.shape[0]
    tm = _pick_row_tile(n)
    b2d = b.reshape(1, dout)
    itemsize = x.dtype.itemsize
    resident = (din * dout + dout) * w.dtype.itemsize + 2 * tm * (din + dout) * itemsize

    out2d = pl.pallas_call(
        _linear_kernel,
        out_shape=jax.ShapeDtypeStruct((n, dout), x.dtype),
        grid=(pl.cdiv(n, tm),),
        in_specs=[
            pl.BlockSpec((tm, din), lambda i: (i, 0)),    # row tile (pipelined)
            pl.BlockSpec((din, dout), lambda i: (0, 0)),  # weight resident in VMEM
            pl.BlockSpec((1, dout), lambda i: (0, 0)),    # bias resident in VMEM
        ],
        out_specs=pl.BlockSpec((tm, dout), lambda i: (i, 0)),
        compiler_params=_compiler_params(("parallel",), resident),
        cost_estimate=pl.CostEstimate(
            flops=2 * n * din * dout,
            transcendentals=0,
            bytes_accessed=(n * din + din * dout + dout + n * dout) * itemsize),
    )(x2d, w, b2d)
    return out2d.reshape(*lead, dout)


# ---------------------------------------------------------------------------
# 2) fused FeedForward:  fc2(relu(fc1(x)))
# ---------------------------------------------------------------------------
def _ffn_kernel(x_ref, w1_ref, b1_ref, w2_ref, b2_ref, o_ref):
    x = x_ref[...]                                   # no f32 upcast of the MXU operand
    h = jnp.dot(x, w1_ref[...], preferred_element_type=jnp.float32)
    h = jnp.maximum(h + b1_ref[...].astype(jnp.float32), 0.0)
    h = h.astype(x.dtype)                            # narrow operand for second matmul
    out = jnp.dot(h, w2_ref[...], preferred_element_type=jnp.float32)
    out = out + b2_ref[...].astype(jnp.float32)
    o_ref[...] = out.astype(o_ref.dtype)


def feedforward_pallas(x, w1, b1, w2, b2):
    d = x.shape[-1]
    lead = x.shape[:-1]
    x2d = x.reshape(-1, d)
    n = x2d.shape[0]
    tm = _pick_row_tile(n)
    b1_2d = b1.reshape(1, d)
    b2_2d = b2.reshape(1, d)
    itemsize = x.dtype.itemsize
    resident = 2 * d * d * w1.dtype.itemsize + 5 * tm * d * 4

    out2d = pl.pallas_call(
        _ffn_kernel,
        out_shape=jax.ShapeDtypeStruct((n, d), x.dtype),
        grid=(pl.cdiv(n, tm),),
        in_specs=[
            pl.BlockSpec((tm, d), lambda i: (i, 0)),   # x row tile, double-buffered
            pl.BlockSpec((d, d), lambda i: (0, 0)),    # W1 resident across grid steps
            pl.BlockSpec((1, d), lambda i: (0, 0)),
            pl.BlockSpec((d, d), lambda i: (0, 0)),    # W2 resident across grid steps
            pl.BlockSpec((1, d), lambda i: (0, 0)),
        ],
        out_specs=pl.BlockSpec((tm, d), lambda i: (i, 0)),
        compiler_params=_compiler_params(("parallel",), resident),
        cost_estimate=pl.CostEstimate(
            flops=4 * n * d * d,
            transcendentals=0,
            bytes_accessed=(2 * n * d + 2 * d * d + 2 * d) * itemsize),
    )(x2d, w1, b1_2d, w2, b2_2d)
    return out2d.reshape(*lead, d)


# ---------------------------------------------------------------------------
# 3) cross-attention logits:  scores[b] = K[b] @ Q[b]^T * scale
# ---------------------------------------------------------------------------
def _scores_kernel(k_ref, q_ref, o_ref, *, scale):
    s = lax.dot_general(k_ref[...], q_ref[...], (((1,), (1,)), ((), ())),
                        preferred_element_type=jnp.float32)
    o_ref[...] = (s * scale).astype(o_ref.dtype)


def cross_scores_pallas(k_node, q_cent, scale):
    """k_node: (B, M, C); q_cent: (B, L, C) -> (B, M, L)."""
    bsz, m, c = k_node.shape
    l = q_cent.shape[1]
    resident = (m * c + l * c + m * l) * 4
    return pl.pallas_call(
        functools.partial(_scores_kernel, scale=scale),
        out_shape=jax.ShapeDtypeStruct((bsz, m, l), jnp.float32),
        grid=(bsz,),
        in_specs=[
            pl.BlockSpec((None, m, c), lambda b: (b, 0, 0)),
            pl.BlockSpec((None, l, c), lambda b: (b, 0, 0)),
        ],
        out_specs=pl.BlockSpec((None, m, l), lambda b: (b, 0, 0)),
        compiler_params=_compiler_params(("parallel",), resident),
    )(k_node, q_cent)


# ---------------------------------------------------------------------------
# 4) fused multi-head self attention over the centroids
# ---------------------------------------------------------------------------
def _mhsa_kernel(x_ref, wq_ref, bq_ref, wk_ref, bk_ref, wv_ref, bv_ref,
                 wo_ref, bo_ref, o_ref, *, num_heads):
    x = x_ref[...]                                    # (L, D)
    l, d = x.shape
    hs = d // num_heads
    q = jnp.dot(x, wq_ref[...], preferred_element_type=jnp.float32) + bq_ref[...].astype(jnp.float32)
    k = jnp.dot(x, wk_ref[...], preferred_element_type=jnp.float32) + bk_ref[...].astype(jnp.float32)
    v = jnp.dot(x, wv_ref[...], preferred_element_type=jnp.float32) + bv_ref[...].astype(jnp.float32)
    wo = wo_ref[...]
    inv_scale = 1.0 / math.sqrt(hs)

    acc = jnp.zeros((l, d), jnp.float32)
    for h in range(num_heads):                        # static unroll over heads
        sl = slice(h * hs, (h + 1) * hs)
        qh, kh, vh = q[:, sl], k[:, sl], v[:, sl]
        s = lax.dot_general(qh, kh, (((1,), (1,)), ((), ())),
                            preferred_element_type=jnp.float32) * inv_scale
        s = s - jnp.max(s, axis=-1, keepdims=True)
        p = jnp.exp(s)
        p = p / jnp.sum(p, axis=-1, keepdims=True)
        oh = jnp.dot(p, vh, preferred_element_type=jnp.float32)          # (L, hs)
        # Fold each head straight into the output projection (no concat needed).
        acc = acc + jnp.dot(oh.astype(wo.dtype), wo[sl, :],
                            preferred_element_type=jnp.float32)
    acc = acc + bo_ref[...].astype(jnp.float32)
    o_ref[...] = acc.astype(o_ref.dtype)


def mhsa_pallas(x, p, num_heads=NUM_HEADS):
    bsz, l, d = x.shape
    wq, bq = p['q']
    wk, bk = p['k']
    wv, bv = p['v']
    wo, bo = p['o']
    as_row = lambda t: t.reshape(1, d)
    resident = (4 * d * d + 4 * d + 2 * l * d) * 4
    return pl.pallas_call(
        functools.partial(_mhsa_kernel, num_heads=num_heads),
        out_shape=jax.ShapeDtypeStruct((bsz, l, d), x.dtype),
        grid=(bsz,),
        in_specs=[
            pl.BlockSpec((None, l, d), lambda b: (b, 0, 0)),
            pl.BlockSpec((d, d), lambda b: (0, 0)), pl.BlockSpec((1, d), lambda b: (0, 0)),
            pl.BlockSpec((d, d), lambda b: (0, 0)), pl.BlockSpec((1, d), lambda b: (0, 0)),
            pl.BlockSpec((d, d), lambda b: (0, 0)), pl.BlockSpec((1, d), lambda b: (0, 0)),
            pl.BlockSpec((d, d), lambda b: (0, 0)), pl.BlockSpec((1, d), lambda b: (0, 0)),
        ],
        out_specs=pl.BlockSpec((None, l, d), lambda b: (b, 0, 0)),
        compiler_params=_compiler_params(("parallel",), resident),
    )(x, wq, as_row(bq), wk, as_row(bk), wv, as_row(bv), wo, as_row(bo))


# ---------------------------------------------------------------------------
# 5) AddBatchNorm:  z = x + y ; BatchNorm1d (batch stats) ; alpha * z + bias
# ---------------------------------------------------------------------------
def _add_bn_kernel(x_ref, y_ref, g_ref, be_ref, a_ref, b_ref, o_ref):
    z = x_ref[...].astype(jnp.float32) + y_ref[...].astype(jnp.float32)     # (N, D)
    mean = jnp.mean(z, axis=0, keepdims=True)
    var = jnp.mean(jnp.square(z - mean), axis=0, keepdims=True)             # biased var
    zhat = (z - mean) * lax.rsqrt(var + BN_EPS)
    zbn = g_ref[...].astype(jnp.float32) * zhat + be_ref[...].astype(jnp.float32)
    out = a_ref[...].astype(jnp.float32) * zbn + b_ref[...].astype(jnp.float32)
    o_ref[...] = out.astype(o_ref.dtype)


def add_batchnorm_pallas(x, y, p):
    # Batch statistics are taken over (batch, seq) per feature channel, so the
    # whole flattened (B*L, D) tensor sits in one block (small here).
    # TODO(synk): running-stats update (training-time side effect) not modelled.
    bsz, l, d = x.shape
    n = bsz * l
    x2d = x.reshape(n, d)
    y2d = y.reshape(n, d)
    args = [x2d, y2d] + [p[k].reshape(1, d) for k in ('gamma', 'beta', 'alpha', 'bias')]
    out2d = pl.pallas_call(
        _add_bn_kernel,
        out_shape=jax.ShapeDtypeStruct((n, d), x.dtype),
        grid=(1,),
        in_specs=[pl.BlockSpec((n, d), lambda i: (0, 0)),
                  pl.BlockSpec((n, d), lambda i: (0, 0))]
                 + [pl.BlockSpec((1, d), lambda i: (0, 0))] * 4,
        out_specs=pl.BlockSpec((n, d), lambda i: (0, 0)),
        compiler_params=_compiler_params(("arbitrary",), (3 * n * d + 4 * d) * 4),
    )(*args)
    return out2d.reshape(bsz, l, d)


# ---------------------------------------------------------------------------
# CentroidDiscoverBlock / CentroidEstimator forward
# ---------------------------------------------------------------------------
def centroid_discover_block(params, st_feature, centroids):
    bsz, t, n_nodes, c = st_feature.shape
    l = centroids.shape[1]

    q_cent = linear_pallas(centroids, *params['q_c'])                  # (B, L, C)
    st_flat = st_feature.reshape(bsz, t * n_nodes, c)
    k_node = linear_pallas(st_flat, *params['k_n'])                    # (B, TN, C)
    v_node = linear_pallas(st_flat, *params['v_n'])                    # (B, TN, C)

    scores = cross_scores_pallas(k_node, q_cent, 1.0 / math.sqrt(c))   # (B, TN, L)

    # --- hard cluster assignment (torch.no_grad block) ----------------------
    # TODO(synk): data-dependent argmax / one-hot scatter has no clean dense
    # Pallas mapping; kept in plain XLA (tiny next to the matmuls above).
    belongs = jax.nn.one_hot(jnp.argmax(scores, axis=-1), l, dtype=jnp.float32)
    cluster = jnp.einsum('bnl,bnc->blc', belongs, v_node)              # (B, L, C)
    counts = jnp.sum(belongs, axis=1)                                  # (B, L)
    cluster = cluster / (jnp.square(counts)[:, :, None] + 1.0)
    cluster = lax.stop_gradient(cluster)
    # -------------------------------------------------------------------------

    centroids = centroids + linear_pallas(cluster, *params['align'])   # (B, L, Dc)
    attn = mhsa_pallas(centroids, params['mhsa'])
    centroids = add_batchnorm_pallas(centroids, attn, params['bn'])
    f = params['ffn']
    centroids = feedforward_pallas(centroids, f['w1'], f['b1'], f['w2'], f['b2'])
    return centroids


def centroid_estimator_forward(params, node_embedding):
    bsz = node_embedding.shape[0]
    centroids = jnp.tile(params['centroids'][None], (bsz, 1, 1))
    for block_params in params['blocks']:
        centroids = centroid_discover_block(block_params, node_embedding, centroids)
    return centroids


# ---------------------------------------------------------------------------
# parameter init (mirrors the PyTorch defaults, stored as (in, out))
# ---------------------------------------------------------------------------
def _init_linear(key, fan_in, fan_out, dtype=jnp.float32):
    k1, k2 = jax.random.split(key)
    bound = 1.0 / math.sqrt(fan_in)
    w_pt = jax.random.uniform(k1, (fan_out, fan_in), dtype, -bound, bound)  # torch (out,in)
    b = jax.random.uniform(k2, (fan_out,), dtype, -bound, bound)
    return w_pt.T, b                                                        # stored (in,out)


def init_block_params(key, node_dim, centroid_dim, dtype=jnp.float32):
    ks = jax.random.split(key, 10)
    w1, b1 = _init_linear(ks[8], centroid_dim, centroid_dim, dtype)
    w2, b2 = _init_linear(ks[9], centroid_dim, centroid_dim, dtype)
    return {
        'q_c':   _init_linear(ks[0], centroid_dim, node_dim, dtype),
        'k_n':   _init_linear(ks[1], node_dim, node_dim, dtype),
        'v_n':   _init_linear(ks[2], node_dim, node_dim, dtype),
        'align': _init_linear(ks[3], node_dim, centroid_dim, dtype),
        'mhsa': {
            'q': _init_linear(ks[4], centroid_dim, centroid_dim, dtype),
            'k': _init_linear(ks[5], centroid_dim, centroid_dim, dtype),
            'v': _init_linear(ks[6], centroid_dim, centroid_dim, dtype),
            'o': _init_linear(ks[7], centroid_dim, centroid_dim, dtype),
        },
        'bn': {
            'gamma': jnp.ones((centroid_dim,), dtype),
            'beta':  jnp.zeros((centroid_dim,), dtype),
            'alpha': jnp.ones((centroid_dim,), dtype),
            'bias':  jnp.zeros((centroid_dim,), dtype),
        },
        'ffn': {'w1': w1, 'b1': b1, 'w2': w2, 'b2': b2},
    }


def init_estimator_params(key, node_dim, num_blocks, num_centroids, centroid_dim,
                          dtype=jnp.float32):
    keys = jax.random.split(key, num_blocks + 1)
    bound = math.sqrt(6.0 / centroid_dim)            # kaiming_uniform_, fan_in
    centroids = jax.random.uniform(keys[0], (num_centroids, centroid_dim),
                                   dtype, -bound, bound)
    blocks = [init_block_params(keys[i + 1], node_dim, centroid_dim, dtype)
              for i in range(num_blocks)]
    return {'centroids': centroids, 'blocks': blocks}


# ---------------------------------------------------------------------------
# pure-jnp reference (mirrors the PyTorch forward)
# ---------------------------------------------------------------------------
def _linear_ref(x, wb):
    w, b = wb
    return x @ w + b


def _mhsa_ref(x, p, num_heads=NUM_HEADS):
    bsz, l, d = x.shape
    hs = d // num_heads
    split = lambda t: t.reshape(bsz, l, num_heads, hs).transpose(0, 2, 1, 3)
    q, k, v = split(_linear_ref(x, p['q'])), split(_linear_ref(x, p['k'])), split(_linear_ref(x, p['v']))
    s = jnp.einsum('bhqe,bhke->bhqk', q, k) / math.sqrt(hs)
    w_ = jax.nn.softmax(s, axis=-1)
    o = jnp.einsum('bhqk,bhke->bhqe', w_, v).transpose(0, 2, 1, 3).reshape(bsz, l, d)
    return _linear_ref(o, p['o'])


def _add_bn_ref(x, y, p):
    z = x + y
    mean = jnp.mean(z, axis=(0, 1), keepdims=True)
    var = jnp.mean(jnp.square(z - mean), axis=(0, 1), keepdims=True)
    zhat = (z - mean) / jnp.sqrt(var + BN_EPS)
    return p['alpha'] * (p['gamma'] * zhat + p['beta']) + p['bias']


def _block_ref(params, st_feature, centroids):
    bsz, t, n_nodes, c = st_feature.shape
    l = centroids.shape[1]
    q_cent = _linear_ref(centroids, params['q_c'])
    st_flat = st_feature.reshape(bsz, t * n_nodes, c)
    k_node = _linear_ref(st_flat, params['k_n'])
    v_node = _linear_ref(st_flat, params['v_n'])
    scores = jnp.einsum('blc,bnc->bnl', q_cent, k_node) / math.sqrt(c)
    belongs = jax.nn.one_hot(jnp.argmax(scores, axis=-1), l, dtype=jnp.float32)
    cluster = jnp.einsum('bnl,bnc->blc', belongs, v_node)
    counts = jnp.sum(belongs, axis=1)
    cluster = cluster / (jnp.square(counts)[:, :, None] + 1.0)
    centroids = centroids + _linear_ref(cluster, params['align'])
    attn = _mhsa_ref(centroids, params['mhsa'])
    centroids = _add_bn_ref(centroids, attn, params['bn'])
    f = params['ffn']
    h = jnp.maximum(centroids @ f['w1'] + f['b1'], 0.0)
    return h @ f['w2'] + f['b2']


def centroid_estimator_ref(params, node_embedding):
    bsz = node_embedding.shape[0]
    centroids = jnp.tile(params['centroids'][None], (bsz, 1, 1))
    for bp in params['blocks']:
        centroids = _block_ref(bp, node_embedding, centroids)
    return centroids


# ---------------------------------------------------------------------------
if __name__ == "__main__":
    key = jax.random.PRNGKey(0)
    kx, kp = jax.random.split(key)

    batch, time_steps, num_nodes = 2, 4, 16
    node_embedding_dim = 32
    centroid_dim = 32
    num_of_centroid = 8
    num_blocks = 2

    node_embedding = jax.random.normal(
        kx, (batch, time_steps, num_nodes, node_embedding_dim), dtype=jnp.float32)
    params = init_estimator_params(kp, node_embedding_dim, num_blocks,
                                   num_of_centroid, centroid_dim)

    out = jax.jit(centroid_estimator_forward)(params, node_embedding)
    out = jax.block_until_ready(out)
    assert out.shape == (batch, num_of_centroid, centroid_dim)

    ref = jax.block_until_ready(centroid_estimator_ref(params, node_embedding))
    max_err = float(jnp.max(jnp.abs(out - ref)))
    assert jnp.allclose(out, ref, atol=2e-3, rtol=2e-3), \
        f"mismatch vs reference (max_err={max_err})"

    print("KERNEL_OK")
</pallas_src>

<mosaic_0001>
module attributes {stable_mosaic.version = 11 : i64} {
  func.func @_linear_kernel(%arg0: i32, %arg1: memref<16x32xf32, #tpu.memory_space<vmem>>, %arg2: memref<32x32xf32, #tpu.memory_space<vmem>>, %arg3: memref<1x32xf32, #tpu.memory_space<vmem>>, %arg4: memref<16x32xf32, #tpu.memory_space<vmem>>) attributes {dimension_semantics = [#tpu.dimension_semantics<parallel>], iteration_bounds = array<i64: 1>, scalar_prefetch = 0 : i64, scratch_operands = 0 : i64, tpu.core_type = #tpu.core_type<tc>, window_params = [{transform_indices = @transform_0, window_bounds = array<i64: 16, 32>}, {pipeline_mode = #tpu.pipeline_mode<synchronous>, transform_indices = @transform_1, window_bounds = array<i64: 32, 32>}, {pipeline_mode = #tpu.pipeline_mode<synchronous>, transform_indices = @transform_2, window_bounds = array<i64: 1, 32>}, {transform_indices = @transform_3, window_bounds = array<i64: 16, 32>}]} {
    %c0 = arith.constant 0 : index
    %c0_0 = arith.constant 0 : index
    %0 = vector.load %arg1[%c0, %c0_0] : memref<16x32xf32, #tpu.memory_space<vmem>>, vector<16x32xf32>
    %c0_1 = arith.constant 0 : index
    %c0_2 = arith.constant 0 : index
    %1 = vector.load %arg2[%c0_1, %c0_2] : memref<32x32xf32, #tpu.memory_space<vmem>>, vector<32x32xf32>
    %cst = arith.constant dense<0.000000e+00> : vector<16x32xf32>
    %2 = tpu.matmul %0, %1, %cst {dimension_numbers = #tpu.dot_dimension_numbers<[1], [0], [0], [1], [0, 0, 1, 1], [], []>} : vector<16x32xf32>, vector<32x32xf32>, vector<16x32xf32> -> vector<16x32xf32>
    %c0_3 = arith.constant 0 : index
    %c0_4 = arith.constant 0 : index
    %3 = vector.load %arg3[%c0_3, %c0_4] : memref<1x32xf32, #tpu.memory_space<vmem>>, vector<1x32xf32>
    %4 = vector.broadcast %3 : vector<1x32xf32> to vector<16x32xf32>
    %5 = arith.addf %2, %4 : vector<16x32xf32>
    %c0_5 = arith.constant 0 : index
    %c0_6 = arith.constant 0 : index
    %6 = vector.load %arg4[%c0_5, %c0_6] : memref<16x32xf32, #tpu.memory_space<vmem>>, vector<16x32xf32>
    tpu.vector_store %arg4[%c0_5, %c0_6], %5 {strides = array<i32>} : memref<16x32xf32, #tpu.memory_space<vmem>>, vector<16x32xf32>,
    return
  }
  func.func @transform_0(%arg0: i32) -> (i32, i32) {
    %c0_i32 = arith.constant 0 : i32
    %c0_i32_0 = arith.constant 0 : i32
    return %arg0, %c0_i32 : i32, i32
  }
  func.func @transform_1(%arg0: i32) -> (i32, i32) {
    %c0_i32 = arith.constant 0 : i32
    %c0_i32_0 = arith.constant 0 : i32
    %c0_i32_1 = arith.constant 0 : i32
    return %c0_i32, %c0_i32_0 : i32, i32
  }
  func.func @transform_2(%arg0: i32) -> (i32, i32) {
    %c0_i32 = arith.constant 0 : i32
    %c0_i32_0 = arith.constant 0 : i32
    %c0_i32_1 = arith.constant 0 : i32
    return %c0_i32, %c0_i32_0 : i32, i32
  }
  func.func @transform_3(%arg0: i32) -> (i32, i32) {
    %c0_i32 = arith.constant 0 : i32
    %c0_i32_0 = arith.constant 0 : i32
    return %arg0, %c0_i32 : i32, i32
  }
}

module attributes {stable_mosaic.version = 11 : i64} {
  func.func @_scores_kernel(%arg0: i32, %arg1: memref<1x64x32xf32, #tpu.memory_space<vmem>>, %arg2: memref<1x8x32xf32, #tpu.memory_space<vmem>>, %arg3: memref<1x64x8xf32, #tpu.memory_space<vmem>>) attributes {dimension_semantics = [#tpu.dimension_semantics<parallel>], iteration_bounds = array<i64: 2>, scalar_prefetch = 0 : i64, scratch_operands = 0 : i64, tpu.core_type = #tpu.core_type<tc>, window_params = [{transform_indices = @transform_0, window_bounds = array<i64: 1, 64, 32>}, {transform_indices = @transform_1, window_bounds = array<i64: 1, 8, 32>}, {transform_indices = @transform_2, window_bounds = array<i64: 1, 64, 8>}]} {
    %c0 = arith.constant 0 : index
    %c0_0 = arith.constant 0 : index
    %c0_1 = arith.constant 0 : index
    %0 = vector.load %arg1[%c0, %c0_0, %c0_1] : memref<1x64x32xf32, #tpu.memory_space<vmem>>, vector<1x64x32xf32>
    %1 = vector.shape_cast %0 : vector<1x64x32xf32> to vector<64x32xf32>
    %c0_2 = arith.constant 0 : index
    %c0_3 = arith.constant 0 : index
    %c0_4 = arith.constant 0 : index
    %2 = vector.load %arg2[%c0_2, %c0_3, %c0_4] : memref<1x8x32xf32, #tpu.memory_space<vmem>>, vector<1x8x32xf32>
    %3 = vector.shape_cast %2 : vector<1x8x32xf32> to vector<8x32xf32>
    %cst = arith.constant dense<0.000000e+00> : vector<64x8xf32>
    %4 = tpu.matmul %1, %3, %cst {dimension_numbers = #tpu.dot_dimension_numbers<[1], [1], [0], [0], [0, 0, 1, 0], [], []>} : vector<64x32xf32>, vector<8x32xf32>, vector<64x8xf32> -> vector<64x8xf32>
    %cst_5 = arith.constant 0.176776692 : f32
    %5 = vector.broadcast %cst_5 : f32 to vector<64x8xf32>
    %6 = arith.mulf %4, %5 : vector<64x8xf32>
    %c0_6 = arith.constant 0 : index
    %c0_7 = arith.constant 0 : index
    %c0_8 = arith.constant 0 : index
    %7 = vector.load %arg3[%c0_6, %c0_7, %c0_8] : memref<1x64x8xf32, #tpu.memory_space<vmem>>, vector<1x64x8xf32>
    %8 = vector.shape_cast %7 : vector<1x64x8xf32> to vector<64x8xf32>
    %9 = vector.shape_cast %6 : vector<64x8xf32> to vector<1x64x8xf32>
    tpu.vector_store %arg3[%c0_6, %c0_7, %c0_8], %9 {strides = array<i32>} : memref<1x64x8xf32, #tpu.memory_space<vmem>>, vector<1x64x8xf32>,
    return
  }
  func.func @transform_0(%arg0: i32) -> (i32, i32, i32) {
    %c0_i32 = arith.constant 0 : i32
    %c0_i32_0 = arith.constant 0 : i32
    %c0_i32_1 = arith.constant 0 : i32
    return %arg0, %c0_i32, %c0_i32_0 : i32, i32, i32
  }
  func.func @transform_1(%arg0: i32) -> (i32, i32, i32) {
    %c0_i32 = arith.constant 0 : i32
    %c0_i32_0 = arith.constant 0 : i32
    %c0_i32_1 = arith.constant 0 : i32
    return %arg0, %c0_i32, %c0_i32_0 : i32, i32, i32
  }
  func.func @transform_2(%arg0: i32) -> (i32, i32, i32) {
    %c0_i32 = arith.constant 0 : i32
    %c0_i32_0 = arith.constant 0 : i32
    %c0_i32_1 = arith.constant 0 : i32
    return %arg0, %c0_i32, %c0_i32_0 : i32, i32, i32
  }
}

module attributes {stable_mosaic.version = 11 : i64} {
  func.func @_linear_kernel(%arg0: i32, %arg1: memref<128x32xf32, #tpu.memory_space<vmem>>, %arg2: memref<32x32xf32, #tpu.memory_space<vmem>>, %arg3: memref<1x32xf32, #tpu.memory_space<vmem>>, %arg4: memref<128x32xf32, #tpu.memory_space<vmem>>) attributes {dimension_semantics = [#tpu.dimension_semantics<parallel>], iteration_bounds = array<i64: 1>, scalar_prefetch = 0 : i64, scratch_operands = 0 : i64, tpu.core_type = #tpu.core_type<tc>, window_params = [{transform_indices = @transform_0, window_bounds = array<i64: 128, 32>}, {pipeline_mode = #tpu.pipeline_mode<synchronous>, transform_indices = @transform_1, window_bounds = array<i64: 32, 32>}, {pipeline_mode = #tpu.pipeline_mode<synchronous>, transform_indices = @transform_2, window_bounds = array<i64: 1, 32>}, {transform_indices = @transform_3, window_bounds = array<i64: 128, 32>}]} {
    %c0 = arith.constant 0 : index
    %c0_0 = arith.constant 0 : index
    %0 = vector.load %arg1[%c0, %c0_0] : memref<128x32xf32, #tpu.memory_space<vmem>>, vector<128x32xf32>
    %c0_1 = arith.constant 0 : index
    %c0_2 = arith.constant 0 : index
    %1 = vector.load %arg2[%c0_1, %c0_2] : memref<32x32xf32, #tpu.memory_space<vmem>>, vector<32x32xf32>
    %cst = arith.constant dense<0.000000e+00> : vector<128x32xf32>
    %2 = tpu.matmul %0, %1, %cst {dimension_numbers = #tpu.dot_dimension_numbers<[1], [0], [0], [1], [0, 0, 1, 1], [], []>} : vector<128x32xf32>, vector<32x32xf32>, vector<128x32xf32> -> vector<128x32xf32>
    %c0_3 = arith.constant 0 : index
    %c0_4 = arith.constant 0 : index
    %3 = vector.load %arg3[%c0_3, %c0_4] : memref<1x32xf32, #tpu.memory_space<vmem>>, vector<1x32xf32>
    %4 = vector.broadcast %3 : vector<1x32xf32> to vector<128x32xf32>
    %5 = arith.addf %2, %4 : vector<128x32xf32>
    %c0_5 = arith.constant 0 : index
    %c0_6 = arith.constant 0 : index
    %6 = vector.load %arg4[%c0_5, %c0_6] : memref<128x32xf32, #tpu.memory_space<vmem>>, vector<128x32xf32>
    tpu.vector_store %arg4[%c0_5, %c0_6], %5 {strides = array<i32>} : memref<128x32xf32, #tpu.memory_space<vmem>>, vector<128x32xf32>,
    return
  }
  func.func @transform_0(%arg0: i32) -> (i32, i32) {
    %c0_i32 = arith.constant 0 : i32
    %c0_i32_0 = arith.constant 0 : i32
    return %arg0, %c0_i32 : i32, i32
  }
  func.func @transform_1(%arg0: i32) -> (i32, i32) {
    %c0_i32 = arith.constant 0 : i32
    %c0_i32_0 = arith.constant 0 : i32
    %c0_i32_1 = arith.constant 0 : i32
    return %c0_i32, %c0_i32_0 : i32, i32
  }
  func.func @transform_2(%arg0: i32) -> (i32, i32) {
    %c0_i32 = arith.constant 0 : i32
    %c0_i32_0 = arith.constant 0 : i32
    %c0_i32_1 = arith.constant 0 : i32
    return %c0_i32, %c0_i32_0 : i32, i32
  }
  func.func @transform_3(%arg0: i32) -> (i32, i32) {
    %c0_i32 = arith.constant 0 : i32
    %c0_i32_0 = arith.constant 0 : i32
    return %arg0, %c0_i32 : i32, i32
  }
}

module attributes {stable_mosaic.version = 11 : i64} {
  func.func @_linear_kernel(%arg0: i32, %arg1: memref<16x32xf32, #tpu.memory_space<vmem>>, %arg2: memref<32x32xf32, #tpu.memory_space<vmem>>, %arg3: memref<1x32xf32, #tpu.memory_space<vmem>>, %arg4: memref<16x32xf32, #tpu.memory_space<vmem>>) attributes {dimension_semantics = [#tpu.dimension_semantics<parallel>], iteration_bounds = array<i64: 1>, scalar_prefetch = 0 : i64, scratch_operands = 0 : i64, tpu.core_type = #tpu.core_type<tc>, window_params = [{transform_indices = @transform_0, window_bounds = array<i64: 16, 32>}, {pipeline_mode = #tpu.pipeline_mode<synchronous>, transform_indices = @transform_1, window_bounds = array<i64: 32, 32>}, {pipeline_mode = #tpu.pipeline_mode<synchronous>, transform_indices = @transform_2, window_bounds = array<i64: 1, 32>}, {transform_indices = @transform_3, window_bounds = array<i64: 16, 32>}]} {
    %c0 = arith.constant 0 : index
    %c0_0 = arith.constant 0 : index
    %0 = vector.load %arg1[%c0, %c0_0] : memref<16x32xf32, #tpu.memory_space<vmem>>, vector<16x32xf32>
    %c0_1 = arith.constant 0 : index
    %c0_2 = arith.constant 0 : index
    %1 = vector.load %arg2[%c0_1, %c0_2] : memref<32x32xf32, #tpu.memory_space<vmem>>, vector<32x32xf32>
    %cst = arith.constant dense<0.000000e+00> : vector<16x32xf32>
    %2 = tpu.matmul %0, %1, %cst {dimension_numbers = #tpu.dot_dimension_numbers<[1], [0], [0], [1], [0, 0, 1, 1], [], []>} : vector<16x32xf32>, vector<32x32xf32>, vector<16x32xf32> -> vector<16x32xf32>
    %c0_3 = arith.constant 0 : index
    %c0_4 = arith.constant 0 : index
    %3 = vector.load %arg3[%c0_3, %c0_4] : memref<1x32xf32, #tpu.memory_space<vmem>>, vector<1x32xf32>
    %4 = vector.broadcast %3 : vector<1x32xf32> to vector<16x32xf32>
    %5 = arith.addf %2, %4 : vector<16x32xf32>
    %c0_5 = arith.constant 0 : index
    %c0_6 = arith.constant 0 : index
    %6 = vector.load %arg4[%c0_5, %c0_6] : memref<16x32xf32, #tpu.memory_space<vmem>>, vector<16x32xf32>
    tpu.vector_store %arg4[%c0_5, %c0_6], %5 {strides = array<i32>} : memref<16x32xf32, #tpu.memory_space<vmem>>, vector<16x32xf32>,
    return
  }
  func.func @transform_0(%arg0: i32) -> (i32, i32) {
    %c0_i32 = arith.constant 0 : i32
    %c0_i32_0 = arith.constant 0 : i32
    return %arg0, %c0_i32 : i32, i32
  }
  func.func @transform_1(%arg0: i32) -> (i32, i32) {
    %c0_i32 = arith.constant 0 : i32
    %c0_i32_0 = arith.constant 0 : i32
    %c0_i32_1 = arith.constant 0 : i32
    return %c0_i32, %c0_i32_0 : i32, i32
  }
  func.func @transform_2(%arg0: i32) -> (i32, i32) {
    %c0_i32 = arith.constant 0 : i32
    %c0_i32_0 = arith.constant 0 : i32
    %c0_i32_1 = arith.constant 0 : i32
    return %c0_i32, %c0_i32_0 : i32, i32
  }
  func.func @transform_3(%arg0: i32) -> (i32, i32) {
    %c0_i32 = arith.constant 0 : i32
    %c0_i32_0 = arith.constant 0 : i32
    return %arg0, %c0_i32 : i32, i32
  }
}

module attributes {stable_mosaic.version = 11 : i64} {
  func.func @_mhsa_kernel(%arg0: i32, %arg1: memref<1x8x32xf32, #tpu.memory_space<vmem>>, %arg2: memref<32x32xf32, #tpu.memory_space<vmem>>, %arg3: memref<1x32xf32, #tpu.memory_space<vmem>>, %arg4: memref<32x32xf32, #tpu.memory_space<vmem>>, %arg5: memref<1x32xf32, #tpu.memory_space<vmem>>, %arg6: memref<32x32xf32, #tpu.memory_space<vmem>>, %arg7: memref<1x32xf32, #tpu.memory_space<vmem>>, %arg8: memref<32x32xf32, #tpu.memory_space<vmem>>, %arg9: memref<1x32xf32, #tpu.memory_space<vmem>>, %arg10: memref<1x8x32xf32, #tpu.memory_space<vmem>>) attributes {dimension_semantics = [#tpu.dimension_semantics<parallel>], iteration_bounds = array<i64: 2>, scalar_prefetch = 0 : i64, scratch_operands = 0 : i64, tpu.core_type = #tpu.core_type<tc>, window_params = [{transform_indices = @transform_0, window_bounds = array<i64: 1, 8, 32>}, {pipeline_mode = #tpu.pipeline_mode<synchronous>, transform_indices = @transform_1, window_bounds = array<i64: 32, 32>}, {pipeline_mode = #tpu.pipeline_mode<synchronous>, transform_indices = @transform_2, window_bounds = array<i64: 1, 32>}, {pipeline_mode = #tpu.pipeline_mode<synchronous>, transform_indices = @transform_3, window_bounds = array<i64: 32, 32>}, {pipeline_mode = #tpu.pipeline_mode<synchronous>, transform_indices = @transform_4, window_bounds = array<i64: 1, 32>}, {pipeline_mode = #tpu.pipeline_mode<synchronous>, transform_indices = @transform_5, window_bounds = array<i64: 32, 32>}, {pipeline_mode = #tpu.pipeline_mode<synchronous>, transform_indices = @transform_6, window_bounds = array<i64: 1, 32>}, {pipeline_mode = #tpu.pipeline_mode<synchronous>, transform_indices = @transform_7, window_bounds = array<i64: 32, 32>}, {pipeline_mode = #tpu.pipeline_mode<synchronous>, transform_indices = @transform_8, window_bounds = array<i64: 1, 32>}, {transform_indices = @transform_9, window_bounds = array<i64: 1, 8, 32>}]} {
    %c0 = arith.constant 0 : index
    %c0_0 = arith.constant 0 : index
    %c0_1 = arith.constant 0 : index
    %0 = vector.load %arg1[%c0, %c0_0, %c0_1] : memref<1x8x32xf32, #tpu.memory_space<vmem>>, vector<1x8x32xf32>
    %1 = vector.shape_cast %0 : vector<1x8x32xf32> to vector<8x32xf32>
    %c0_2 = arith.constant 0 : index
    %c0_3 = arith.constant 0 : index
    %2 = vector.load %arg2[%c0_2, %c0_3] : memref<32x32xf32, #tpu.memory_space<vmem>>, vector<32x32xf32>
    %cst = arith.constant dense<0.000000e+00> : vector<8x32xf32>
    %3 = tpu.matmul %1, %2, %cst {dimension_numbers = #tpu.dot_dimension_numbers<[1], [0], [0], [1], [0, 0, 1, 1], [], []>} : vector<8x32xf32>, vector<32x32xf32>, vector<8x32xf32> -> vector<8x32xf32>
    %c0_4 = arith.constant 0 : index
    %c0_5 = arith.constant 0 : index
    %4 = vector.load %arg3[%c0_4, %c0_5] : memref<1x32xf32, #tpu.memory_space<vmem>>, vector<1x32xf32>
    %5 = vector.broadcast %4 : vector<1x32xf32> to vector<8x32xf32>
    %6 = arith.addf %3, %5 : vector<8x32xf32>
    %c0_6 = arith.constant 0 : index
    %c0_7 = arith.constant 0 : index
    %7 = vector.load %arg4[%c0_6, %c0_7] : memref<32x32xf32, #tpu.memory_space<vmem>>, vector<32x32xf32>
    %cst_8 = arith.constant dense<0.000000e+00> : vector<8x32xf32>
    %8 = tpu.matmul %1, %7, %cst_8 {dimension_numbers = #tpu.dot_dimension_numbers<[1], [0], [0], [1], [0, 0, 1, 1], [], []>} : vector<8x32xf32>, vector<32x32xf32>, vector<8x32xf32> -> vector<8x32xf32>
    %c0_9 = arith.constant 0 : index
    %c0_10 = arith.constant 0 : index
    %9 = vector.load %arg5[%c0_9, %c0_10] : memref<1x32xf32, #tpu.memory_space<vmem>>, vector<1x32xf32>
    %10 = vector.broadcast %9 : vector<1x32xf32> to vector<8x32xf32>
    %11 = arith.addf %8, %10 : vector<8x32xf32>
    %c0_11 = arith.constant 0 : index
    %c0_12 = arith.constant 0 : index
    %12 = vector.load %arg6[%c0_11, %c0_12] : memref<32x32xf32, #tpu.memory_space<vmem>>, vector<32x32xf32>
    %cst_13 = arith.constant dense<0.000000e+00> : vector<8x32xf32>
    %13 = tpu.matmul %1, %12, %cst_13 {dimension_numbers = #tpu.dot_dimension_numbers<[1], [0], [0], [1], [0, 0, 1, 1], [], []>} : vector<8x32xf32>, vector<32x32xf32>, vector<8x32xf32> -> vector<8x32xf32>
    %c0_14 = arith.constant 0 : index
    %c0_15 = arith.constant 0 : index
    %14 = vector.load %arg7[%c0_14, %c0_15] : memref<1x32xf32, #tpu.memory_space<vmem>>, vector<1x32xf32>
    %15 = vector.broadcast %14 : vector<1x32xf32> to vector<8x32xf32>
    %16 = arith.addf %13, %15 : vector<8x32xf32>
    %c0_16 = arith.constant 0 : index
    %c0_17 = arith.constant 0 : index
    %17 = vector.load %arg8[%c0_16, %c0_17] : memref<32x32xf32, #tpu.memory_space<vmem>>, vector<32x32xf32>
    %cst_18 = arith.constant 0.000000e+00 : f32
    %18 = vector.broadcast %cst_18 : f32 to vector<8x32xf32>
    %19 = vector.extract_strided_slice %6 {offsets = [0, 0], sizes = [8, 8], strides = [1, 1]} : vector<8x32xf32> to vector<8x8xf32>
    %20 = vector.extract_strided_slice %11 {offsets = [0, 0], sizes = [8, 8], strides = [1, 1]} : vector<8x32xf32> to vector<8x8xf32>
    %21 = vector.extract_strided_slice %16 {offsets = [0, 0], sizes = [8, 8], strides = [1, 1]} : vector<8x32xf32> to vector<8x8xf32>
    %cst_19 = arith.constant dense<0.000000e+00> : vector<8x8xf32>
    %22 = tpu.matmul %19, %20, %cst_19 {dimension_numbers = #tpu.dot_dimension_numbers<[1], [1], [0], [0], [0, 0, 1, 0], [], []>} : vector<8x8xf32>, vector<8x8xf32>, vector<8x8xf32> -> vector<8x8xf32>
    %cst_20 = arith.constant 0.353553385 : f32
    %23 = vector.broadcast %cst_20 : f32 to vector<8x8xf32>
    %24 = arith.mulf %22, %23 : vector<8x8xf32>
    %cst_21 = arith.constant dense<0xFF800000> : vector<8xf32>
    %25 = vector.multi_reduction <maximumf>, %24, %cst_21 [1] : vector<8x8xf32> to vector<8xf32>
    %26 = vector.shape_cast %25 : vector<8xf32> to vector<8x1xf32>
    %27 = vector.broadcast %26 : vector<8x1xf32> to vector<8x8xf32>
    %28 = arith.subf %24, %27 : vector<8x8xf32>
    %29 = math.exp %28 : vector<8x8xf32>
    %cst_22 = arith.constant dense<0.000000e+00> : vector<8xf32>
    %30 = vector.multi_reduction <add>, %29, %cst_22 [1] : vector<8x8xf32> to vector<8xf32>
    %31 = vector.shape_cast %30 : vector<8xf32> to vector<8x1xf32>
    %32 = vector.broadcast %31 : vector<8x1xf32> to vector<8x8xf32>
    %33 = arith.divf %29, %32 : vector<8x8xf32>
    %cst_23 = arith.constant dense<0.000000e+00> : vector<8x8xf32>
    %34 = tpu.matmul %33, %21, %cst_23 {dimension_numbers = #tpu.dot_dimension_numbers<[1], [0], [0], [1], [0, 0, 1, 1], [], []>} : vector<8x8xf32>, vector<8x8xf32>, vector<8x8xf32> -> vector<8x8xf32>
    %35 = vector.extract_strided_slice %17 {offsets = [0, 0], sizes = [8, 32], strides = [1, 1]} : vector<32x32xf32> to vector<8x32xf32>
    %cst_24 = arith.constant dense<0.000000e+00> : vector<8x32xf32>
    %36 = tpu.matmul %34, %35, %cst_24 {dimension_numbers = #tpu.dot_dimension_numbers<[1], [0], [0], [1], [0, 0, 1, 1], [], []>} : vector<8x8xf32>, vector<8x32xf32>, vector<8x32xf32> -> vector<8x32xf32>
    %37 = arith.addf %18, %36 : vector<8x32xf32>
    %38 = vector.extract_strided_slice %6 {offsets = [0, 8], sizes = [8, 8], strides = [1, 1]} : vector<8x32xf32> to vector<8x8xf32>
    %39 = vector.extract_strided_slice %11 {offsets = [0, 8], sizes = [8, 8], strides = [1, 1]} : vector<8x32xf32> to vector<8x8xf32>
    %40 = vector.extract_strided_slice %16 {offsets = [0, 8], sizes = [8, 8], strides = [1, 1]} : vector<8x32xf32> to vector<8x8xf32>
    %cst_25 = arith.constant dense<0.000000e+00> : vector<8x8xf32>
    %41 = tpu.matmul %38, %39, %cst_25 {dimension_numbers = #tpu.dot_dimension_numbers<[1], [1], [0], [0], [0, 0, 1, 0], [], []>} : vector<8x8xf32>, vector<8x8xf32>, vector<8x8xf32> -> vector<8x8xf32>
    %cst_26 = arith.constant 0.353553385 : f32
    %42 = vector.broadcast %cst_26 : f32 to vector<8x8xf32>
    %43 = arith.mulf %41, %42 : vector<8x8xf32>
    %cst_27 = arith.constant dense<0xFF800000> : vector<8xf32>
    %44 = vector.multi_reduction <maximumf>, %43, %cst_27 [1] : vector<8x8xf32> to vector<8xf32>
    %45 = vector.shape_cast %44 : vector<8xf32> to vector<8x1xf32>
    %46 = vector.broadcast %45 : vector<8x1xf32> to vector<8x8xf32>
    %47 = arith.subf %43, %46 : vector<8x8xf32>
    %48 = math.exp %47 : vector<8x8xf32>
    %cst_28 = arith.constant dense<0.000000e+00> : vector<8xf32>
    %49 = vector.multi_reduction <add>, %48, %cst_28 [1] : vector<8x8xf32> to vector<8xf32>
    %50 = vector.shape_cast %49 : vector<8xf32> to vector<8x1xf32>
    %51 = vector.broadcast %50 : vector<8x1xf32> to vector<8x8xf32>
    %52 = arith.divf %48, %51 : vector<8x8xf32>
    %cst_29 = arith.constant dense<0.000000e+00> : vector<8x8xf32>
    %53 = tpu.matmul %52, %40, %cst_29 {dimension_numbers = #tpu.dot_dimension_numbers<[1], [0], [0], [1], [0, 0, 1, 1], [], []>} : vector<8x8xf32>, vector<8x8xf32>, vector<8x8xf32> -> vector<8x8xf32>
    %54 = vector.extract_strided_slice %17 {offsets = [8, 0], sizes = [8, 32], strides = [1, 1]} : vector<32x32xf32> to vector<8x32xf32>
    %cst_30 = arith.constant dense<0.000000e+00> : vector<8x32xf32>
    %55 = tpu.matmul %53, %54, %cst_30 {dimension_numbers = #tpu.dot_dimension_numbers<[1], [0], [0], [1], [0, 0, 1, 1], [], []>} : vector<8x8xf32>, vector<8x32xf32>, vector<8x32xf32> -> vector<8x32xf32>
    %56 = arith.addf %37, %55 : vector<8x32xf32>
    %57 = vector.extract_strided_slice %6 {offsets = [0, 16], sizes = [8, 8], strides = [1, 1]} : vector<8x32xf32> to vector<8x8xf32>
    %58 = vector.extract_strided_slice %11 {offsets = [0, 16], sizes = [8, 8], strides = [1, 1]} : vector<8x32xf32> to vector<8x8xf32>
    %59 = vector.extract_strided_slice %16 {offsets = [0, 16], sizes = [8, 8], strides = [1, 1]} : vector<8x32xf32> to vector<8x8xf32>
    %cst_31 = arith.constant dense<0.000000e+00> : vector<8x8xf32>
    %60 = tpu.matmul %57, %58, %cst_31 {dimension_numbers = #tpu.dot_dimension_numbers<[1], [1], [0], [0], [0, 0, 1, 0], [], []>} : vector<8x8xf32>, vector<8x8xf32>, vector<8x8xf32> -> vector<8x8xf32>
    %cst_32 = arith.constant 0.353553385 : f32
    %61 = vector.broadcast %cst_32 : f32 to vector<8x8xf32>
    %62 = arith.mulf %60, %61 : vector<8x8xf32>
    %cst_33 = arith.constant dense<0xFF800000> : vector<8xf32>
    %63 = vector.multi_reduction <maximumf>, %62, %cst_33 [1] : vector<8x8xf32> to vector<8xf32>
    %64 = vector.shape_cast %63 : vector<8xf32> to vector<8x1xf32>
    %65 = vector.broadcast %64 : vector<8x1xf32> to vector<8x8xf32>
    %66 = arith.subf %62, %65 : vector<8x8xf32>
    %67 = math.exp %66 : vector<8x8xf32>
    %cst_34 = arith.constant dense<0.000000e+00> : vector<8xf32>
    %68 = vector.multi_reduction <add>, %67, %cst_34 [1] : vector<8x8xf32> to vector<8xf32>
    %69 = vector.shape_cast %68 : vector<8xf32> to vector<8x1xf32>
    %70 = vector.broadcast %69 : vector<8x1xf32> to vector<8x8xf32>
    %71 = arith.divf %67, %70 : vector<8x8xf32>
    %cst_35 = arith.constant dense<0.000000e+00> : vector<8x8xf32>
    %72 = tpu.matmul %71, %59, %cst_35 {dimension_numbers = #tpu.dot_dimension_numbers<[1], [0], [0], [1], [0, 0, 1, 1], [], []>} : vector<8x8xf32>, vector<8x8xf32>, vector<8x8xf32> -> vector<8x8xf32>
    %73 = vector.extract_strided_slice %17 {offsets = [16, 0], sizes = [8, 32], strides = [1, 1]} : vector<32x32xf32> to vector<8x32xf32>
    %cst_36 = arith.constant dense<0.000000e+00> : vector<8x32xf32>
    %74 = tpu.matmul %72, %73, %cst_36 {dimension_numbers = #tpu.dot_dimension_numbers<[1], [0], [0], [1], [0, 0, 1, 1], [], []>} : vector<8x8xf32>, vector<8x32xf32>, vector<8x32xf32> -> vector<8x32xf32>
    %75 = arith.addf %56, %74 : vector<8x32xf32>
    %76 = vector.extract_strided_slice %6 {offsets = [0, 24], sizes = [8, 8], strides = [1, 1]} : vector<8x32xf32> to vector<8x8xf32>
    %77 = vector.extract_strided_slice %11 {offsets = [0, 24], sizes = [8, 8], strides = [1, 1]} : vector<8x32xf32> to vector<8x8xf32>
    %78 = vector.extract_strided_slice %16 {offsets = [0, 24], sizes = [8, 8], strides = [1, 1]} : vector<8x32xf32> to vector<8x8xf32>
    %cst_37 = arith.constant dense<0.000000e+00> : vector<8x8xf32>
    %79 = tpu.matmul %76, %77, %cst_37 {dimension_numbers = #tpu.dot_dimension_numbers<[1], [1], [0], [0], [0, 0, 1, 0], [], []>} : vector<8x8xf32>, vector<8x8xf32>, vector<8x8xf32> -> vector<8x8xf32>
    %cst_38 = arith.constant 0.353553385 : f32
    %80 = vector.broadcast %cst_38 : f32 to vector<8x8xf32>
    %81 = arith.mulf %79, %80 : vector<8x8xf32>
    %cst_39 = arith.constant dense<0xFF800000> : vector<8xf32>
    %82 = vector.multi_reduction <maximumf>, %81, %cst_39 [1] : vector<8x8xf32> to vector<8xf32>
    %83 = vector.shape_cast %82 : vector<8xf32> to vector<8x1xf32>
    %84 = vector.broadcast %83 : vector<8x1xf32> to vector<8x8xf32>
    %85 = arith.subf %81, %84 : vector<8x8xf32>
    %86 = math.exp %85 : vector<8x8xf32>
    %cst_40 = arith.constant dense<0.000000e+00> : vector<8xf32>
    %87 = vector.multi_reduction <add>, %86, %cst_40 [1] : vector<8x8xf32> to vector<8xf32>
    %88 = vector.shape_cast %87 : vector<8xf32> to vector<8x1xf32>
    %89 = vector.broadcast %88 : vector<8x1xf32> to vector<8x8xf32>
    %90 = arith.divf %86, %89 : vector<8x8xf32>
    %cst_41 = arith.constant dense<0.000000e+00> : vector<8x8xf32>
    %91 = tpu.matmul %90, %78, %cst_41 {dimension_numbers = #tpu.dot_dimension_numbers<[1], [0], [0], [1], [0, 0, 1, 1], [], []>} : vector<8x8xf32>, vector<8x8xf32>, vector<8x8xf32> -> vector<8x8xf32>
    %92 = vector.extract_strided_slice %17 {offsets = [24, 0], sizes = [8, 32], strides = [1, 1]} : vector<32x32xf32> to vector<8x32xf32>
    %cst_42 = arith.constant dense<0.000000e+00> : vector<8x32xf32>
    %93 = tpu.matmul %91, %92, %cst_42 {dimension_numbers = #tpu.dot_dimension_numbers<[1], [0], [0], [1], [0, 0, 1, 1], [], []>} : vector<8x8xf32>, vector<8x32xf32>, vector<8x32xf32> -> vector<8x32xf32>
    %94 = arith.addf %75, %93 : vector<8x32xf32>
    %c0_43 = arith.constant 0 : index
    %c0_44 = arith.constant 0 : index
    %95 = vector.load %arg9[%c0_43, %c0_44] : memref<1x32xf32, #tpu.memory_space<vmem>>, vector<1x32xf32>
    %96 = vector.broadcast %95 : vector<1x32xf32> to vector<8x32xf32>
    %97 = arith.addf %94, %96 : vector<8x32xf32>
    %c0_45 = arith.constant 0 : index
    %c0_46 = arith.constant 0 : index
    %c0_47 = arith.constant 0 : index
    %98 = vector.load %arg10[%c0_45, %c0_46, %c0_47] : memref<1x8x32xf32, #tpu.memory_space<vmem>>, vector<1x8x32xf32>
    %99 = vector.shape_cast %98 : vector<1x8x32xf32> to vector<8x32xf32>
    %100 = vector.shape_cast %97 : vector<8x32xf32> to vector<1x8x32xf32>
    tpu.vector_store %arg10[%c0_45, %c0_46, %c0_47], %100 {strides = array<i32>} : memref<1x8x32xf32, #tpu.memory_space<vmem>>, vector<1x8x32xf32>,
    return
  }
  func.func @transform_0(%arg0: i32) -> (i32, i32, i32) {
    %c0_i32 = arith.constant 0 : i32
    %c0_i32_0 = arith.constant 0 : i32
    %c0_i32_1 = arith.constant 0 : i32
    return %arg0, %c0_i32, %c0_i32_0 : i32, i32, i32
  }
  func.func @transform_1(%arg0: i32) -> (i32, i32) {
    %c0_i32 = arith.constant 0 : i32
    %c0_i32_0 = arith.constant 0 : i32
    %c0_i32_1 = arith.constant 0 : i32
    return %c0_i32, %c0_i32_0 : i32, i32
  }
  func.func @transform_2(%arg0: i32) -> (i32, i32) {
    %c0_i32 = arith.constant 0 : i32
    %c0_i32_0 = arith.constant 0 : i32
    %c0_i32_1 = arith.constant 0 : i32
    return %c0_i32, %c0_i32_0 : i32, i32
  }
  func.func @transform_3(%arg0: i32) -> (i32, i32) {
    %c0_i32 = arith.constant 0 : i32
    %c0_i32_0 = arith.constant 0 : i32
    %c0_i32_1 = arith.constant 0 : i32
    return %c0_i32, %c0_i32_0 : i32, i32
  }
  func.func @transform_4(%arg0: i32) -> (i32, i32) {
    %c0_i32 = arith.constant 0 : i32
    %c0_i32_0 = arith.constant 0 : i32
    %c0_i32_1 = arith.constant 0 : i32
    return %c0_i32, %c0_i32_0 : i32, i32
  }
  func.func @transform_5(%arg0: i32) -> (i32, i32) {
    %c0_i32 = arith.constant 0 : i32
    %c0_i32_0 = arith.constant 0 : i32
    %c0_i32_1 = arith.constant 0 : i32
    return %c0_i32, %c0_i32_0 : i32, i32
  }
  func.func @transform_6(%arg0: i32) -> (i32, i32) {
    %c0_i32 = arith.constant 0 : i32
    %c0_i32_0 = arith.constant 0 : i32
    %c0_i32_1 = arith.constant 0 : i32
    return %c0_i32, %c0_i32_0 : i32, i32
  }
  func.func @transform_7(%arg0: i32) -> (i32, i32) {
    %c0_i32 = arith.constant 0 : i32
    %c0_i32_0 = arith.constant 0 : i32
    %c0_i32_1 = arith.constant 0 : i32
    return %c0_i32, %c0_i32_0 : i32, i32
  }
  func.func @transform_8(%arg0: i32) -> (i32, i32) {
    %c0_i32 = arith.constant 0 : i32
    %c0_i32_0 = arith.constant 0 : i32
    %c0_i32_1 = arith.constant 0 : i32
    return %c0_i32, %c0_i32_0 : i32, i32
  }
  func.func @transform_9(%arg0: i32) -> (i32, i32, i32) {
    %c0_i32 = arith.constant 0 : i32
    %c0_i32_0 = arith.constant 0 : i32
    %c0_i32_1 = arith.constant 0 : i32
    return %arg0, %c0_i32, %c0_i32_0 : i32, i32, i32
  }
}

module attributes {stable_mosaic.version = 11 : i64} {
  func.func @_ffn_kernel(%arg0: i32, %arg1: memref<16x32xf32, #tpu.memory_space<vmem>>, %arg2: memref<32x32xf32, #tpu.memory_space<vmem>>, %arg3: memref<1x32xf32, #tpu.memory_space<vmem>>, %arg4: memref<32x32xf32, #tpu.memory_space<vmem>>, %arg5: memref<1x32xf32, #tpu.memory_space<vmem>>, %arg6: memref<16x32xf32, #tpu.memory_space<vmem>>) attributes {dimension_semantics = [#tpu.dimension_semantics<parallel>], iteration_bounds = array<i64: 1>, scalar_prefetch = 0 : i64, scratch_operands = 0 : i64, tpu.core_type = #tpu.core_type<tc>, window_params = [{transform_indices = @transform_0, window_bounds = array<i64: 16, 32>}, {pipeline_mode = #tpu.pipeline_mode<synchronous>, transform_indices = @transform_1, window_bounds = array<i64: 32, 32>}, {pipeline_mode = #tpu.pipeline_mode<synchronous>, transform_indices = @transform_2, window_bounds = array<i64: 1, 32>}, {pipeline_mode = #tpu.pipeline_mode<synchronous>, transform_indices = @transform_3, window_bounds = array<i64: 32, 32>}, {pipeline_mode = #tpu.pipeline_mode<synchronous>, transform_indices = @transform_4, window_bounds = array<i64: 1, 32>}, {transform_indices = @transform_5, window_bounds = array<i64: 16, 32>}]} {
    %c0 = arith.constant 0 : index
    %c0_0 = arith.constant 0 : index
    %0 = vector.load %arg1[%c0, %c0_0] : memref<16x32xf32, #tpu.memory_space<vmem>>, vector<16x32xf32>
    %c0_1 = arith.constant 0 : index
    %c0_2 = arith.constant 0 : index
    %1 = vector.load %arg2[%c0_1, %c0_2] : memref<32x32xf32, #tpu.memory_space<vmem>>, vector<32x32xf32>
    %cst = arith.constant dense<0.000000e+00> : vector<16x32xf32>
    %2 = tpu.matmul %0, %1, %cst {dimension_numbers = #tpu.dot_dimension_numbers<[1], [0], [0], [1], [0, 0, 1, 1], [], []>} : vector<16x32xf32>, vector<32x32xf32>, vector<16x32xf32> -> vector<16x32xf32>
    %c0_3 = arith.constant 0 : index
    %c0_4 = arith.constant 0 : index
    %3 = vector.load %arg3[%c0_3, %c0_4] : memref<1x32xf32, #tpu.memory_space<vmem>>, vector<1x32xf32>
    %4 = vector.broadcast %3 : vector<1x32xf32> to vector<16x32xf32>
    %5 = arith.addf %2, %4 : vector<16x32xf32>
    %cst_5 = arith.constant 0.000000e+00 : f32
    %6 = vector.broadcast %cst_5 : f32 to vector<16x32xf32>
    %7 = arith.maximumf %5, %6 : vector<16x32xf32>
    %c0_6 = arith.constant 0 : index
    %c0_7 = arith.constant 0 : index
    %8 = vector.load %arg4[%c0_6, %c0_7] : memref<32x32xf32, #tpu.memory_space<vmem>>, vector<32x32xf32>
    %cst_8 = arith.constant dense<0.000000e+00> : vector<16x32xf32>
    %9 = tpu.matmul %7, %8, %cst_8 {dimension_numbers = #tpu.dot_dimension_numbers<[1], [0], [0], [1], [0, 0, 1, 1], [], []>} : vector<16x32xf32>, vector<32x32xf32>, vector<16x32xf32> -> vector<16x32xf32>
    %c0_9 = arith.constant 0 : index
    %c0_10 = arith.constant 0 : index
    %10 = vector.load %arg5[%c0_9, %c0_10] : memref<1x32xf32, #tpu.memory_space<vmem>>, vector<1x32xf32>
    %11 = vector.broadcast %10 : vector<1x32xf32> to vector<16x32xf32>
    %12 = arith.addf %9, %11 : vector<16x32xf32>
    %c0_11 = arith.constant 0 : index
    %c0_12 = arith.constant 0 : index
    %13 = vector.load %arg6[%c0_11, %c0_12] : memref<16x32xf32, #tpu.memory_space<vmem>>, vector<16x32xf32>
    tpu.vector_store %arg6[%c0_11, %c0_12], %12 {strides = array<i32>} : memref<16x32xf32, #tpu.memory_space<vmem>>, vector<16x32xf32>,
    return
  }
  func.func @transform_0(%arg0: i32) -> (i32, i32) {
    %c0_i32 = arith.constant 0 : i32
    %c0_i32_0 = arith.constant 0 : i32
    return %arg0, %c0_i32 : i32, i32
  }
  func.func @transform_1(%arg0: i32) -> (i32, i32) {
    %c0_i32 = arith.constant 0 : i32
    %c0_i32_0 = arith.constant 0 : i32
    %c0_i32_1 = arith.constant 0 : i32
    return %c0_i32, %c0_i32_0 : i32, i32
  }
  func.func @transform_2(%arg0: i32) -> (i32, i32) {
    %c0_i32 = arith.constant 0 : i32
    %c0_i32_0 = arith.constant 0 : i32
    %c0_i32_1 = arith.constant 0 : i32
    return %c0_i32, %c0_i32_0 : i32, i32
  }
  func.func @transform_3(%arg0: i32) -> (i32, i32) {
    %c0_i32 = arith.constant 0 : i32
    %c0_i32_0 = arith.constant 0 : i32
    %c0_i32_1 = arith.constant 0 : i32
    return %c0_i32, %c0_i32_0 : i32, i32
  }
  func.func @transform_4(%arg0: i32) -> (i32, i32) {
    %c0_i32 = arith.constant 0 : i32
    %c0_i32_0 = arith.constant 0 : i32
    %c0_i32_1 = arith.constant 0 : i32
    return %c0_i32, %c0_i32_0 : i32, i32
  }
  func.func @transform_5(%arg0: i32) -> (i32, i32) {
    %c0_i32 = arith.constant 0 : i32
    %c0_i32_0 = arith.constant 0 : i32
    return %arg0, %c0_i32 : i32, i32
  }
}

module attributes {stable_mosaic.version = 11 : i64} {
  func.func @_add_bn_kernel(%arg0: i32, %arg1: memref<16x32xf32, #tpu.memory_space<vmem>>, %arg2: memref<16x32xf32, #tpu.memory_space<vmem>>, %arg3: memref<1x32xf32, #tpu.memory_space<vmem>>, %arg4: memref<1x32xf32, #tpu.memory_space<vmem>>, %arg5: memref<1x32xf32, #tpu.memory_space<vmem>>, %arg6: memref<1x32xf32, #tpu.memory_space<vmem>>, %arg7: memref<16x32xf32, #tpu.memory_space<vmem>>) attributes {dimension_semantics = [#tpu.dimension_semantics<arbitrary>], iteration_bounds = array<i64: 1>, scalar_prefetch = 0 : i64, scratch_operands = 0 : i64, tpu.core_type = #tpu.core_type<tc>, window_params = [{pipeline_mode = #tpu.pipeline_mode<synchronous>, transform_indices = @transform_0, window_bounds = array<i64: 16, 32>}, {pipeline_mode = #tpu.pipeline_mode<synchronous>, transform_indices = @transform_1, window_bounds = array<i64: 16, 32>}, {pipeline_mode = #tpu.pipeline_mode<synchronous>, transform_indices = @transform_2, window_bounds = array<i64: 1, 32>}, {pipeline_mode = #tpu.pipeline_mode<synchronous>, transform_indices = @transform_3, window_bounds = array<i64: 1, 32>}, {pipeline_mode = #tpu.pipeline_mode<synchronous>, transform_indices = @transform_4, window_bounds = array<i64: 1, 32>}, {pipeline_mode = #tpu.pipeline_mode<synchronous>, transform_indices = @transform_5, window_bounds = array<i64: 1, 32>}, {pipeline_mode = #tpu.pipeline_mode<synchronous>, transform_indices = @transform_6, window_bounds = array<i64: 16, 32>}]} {
    %c0 = arith.constant 0 : index
    %c0_0 = arith.constant 0 : index
    %0 = vector.load %arg1[%c0, %c0_0] : memref<16x32xf32, #tpu.memory_space<vmem>>, vector<16x32xf32>
    %c0_1 = arith.constant 0 : index
    %c0_2 = arith.constant 0 : index
    %1 = vector.load %arg2[%c0_1, %c0_2] : memref<16x32xf32, #tpu.memory_space<vmem>>, vector<16x32xf32>
    %2 = arith.addf %0, %1 : vector<16x32xf32>
    %cst = arith.constant dense<0.000000e+00> : vector<32xf32>
    %3 = vector.multi_reduction <add>, %2, %cst [0] : vector<16x32xf32> to vector<32xf32>
    %4 = vector.shape_cast %3 : vector<32xf32> to vector<1x32xf32>
    %cst_3 = arith.constant 1.600000e+01 : f32
    %5 = vector.broadcast %cst_3 : f32 to vector<1x32xf32>
    %6 = arith.divf %4, %5 : vector<1x32xf32>
    %7 = vector.broadcast %6 : vector<1x32xf32> to vector<16x32xf32>
    %8 = arith.subf %2, %7 : vector<16x32xf32>
    %9 = arith.mulf %8, %8 : vector<16x32xf32>
    %cst_4 = arith.constant dense<0.000000e+00> : vector<32xf32>
    %10 = vector.multi_reduction <add>, %9, %cst_4 [0] : vector<16x32xf32> to vector<32xf32>
    %11 = vector.shape_cast %10 : vector<32xf32> to vector<1x32xf32>
    %cst_5 = arith.constant 1.600000e+01 : f32
    %12 = vector.broadcast %cst_5 : f32 to vector<1x32xf32>
    %13 = arith.divf %11, %12 : vector<1x32xf32>
    %14 = vector.broadcast %6 : vector<1x32xf32> to vector<16x32xf32>
    %15 = arith.subf %2, %14 : vector<16x32xf32>
    %cst_6 = arith.constant 9.99999974E-6 : f32
    %16 = vector.broadcast %cst_6 : f32 to vector<1x32xf32>
    %17 = arith.addf %13, %16 : vector<1x32xf32>
    %18 = math.rsqrt %17 : vector<1x32xf32>
    %19 = vector.broadcast %18 : vector<1x32xf32> to vector<16x32xf32>
    %20 = arith.mulf %15, %19 : vector<16x32xf32>
    %c0_7 = arith.constant 0 : index
    %c0_8 = arith.constant 0 : index
    %21 = vector.load %arg3[%c0_7, %c0_8] : memref<1x32xf32, #tpu.memory_space<vmem>>, vector<1x32xf32>
    %22 = vector.broadcast %21 : vector<1x32xf32> to vector<16x32xf32>
    %23 = arith.mulf %22, %20 : vector<16x32xf32>
    %c0_9 = arith.constant 0 : index
    %c0_10 = arith.constant 0 : index
    %24 = vector.load %arg4[%c0_9, %c0_10] : memref<1x32xf32, #tpu.memory_space<vmem>>, vector<1x32xf32>
    %25 = vector.broadcast %24 : vector<1x32xf32> to vector<16x32xf32>
    %26 = arith.addf %23, %25 : vector<16x32xf32>
    %c0_11 = arith.constant 0 : index
    %c0_12 = arith.constant 0 : index
    %27 = vector.load %arg5[%c0_11, %c0_12] : memref<1x32xf32, #tpu.memory_space<vmem>>, vector<1x32xf32>
    %28 = vector.broadcast %27 : vector<1x32xf32> to vector<16x32xf32>
    %29 = arith.mulf %28, %26 : vector<16x32xf32>
    %c0_13 = arith.constant 0 : index
    %c0_14 = arith.constant 0 : index
    %30 = vector.load %arg6[%c0_13, %c0_14] : memref<1x32xf32, #tpu.memory_space<vmem>>, vector<1x32xf32>
    %31 = vector.broadcast %30 : vector<1x32xf32> to vector<16x32xf32>
    %32 = arith.addf %29, %31 : vector<16x32xf32>
    %c0_15 = arith.constant 0 : index
    %c0_16 = arith.constant 0 : index
    %33 = vector.load %arg7[%c0_15, %c0_16] : memref<16x32xf32, #tpu.memory_space<vmem>>, vector<16x32xf32>
    tpu.vector_store %arg7[%c0_15, %c0_16], %32 {strides = array<i32>} : memref<16x32xf32, #tpu.memory_space<vmem>>, vector<16x32xf32>,
    return
  }
  func.func @transform_0(%arg0: i32) -> (i32, i32) {
    %c0_i32 = arith.constant 0 : i32
    %c0_i32_0 = arith.constant 0 : i32
    %c0_i32_1 = arith.constant 0 : i32
    return %c0_i32, %c0_i32_0 : i32, i32
  }
  func.func @transform_1(%arg0: i32) -> (i32, i32) {
    %c0_i32 = arith.constant 0 : i32
    %c0_i32_0 = arith.constant 0 : i32
    %c0_i32_1 = arith.constant 0 : i32
    return %c0_i32, %c0_i32_0 : i32, i32
  }
  func.func @transform_2(%arg0: i32) -> (i32, i32) {
    %c0_i32 = arith.constant 0 : i32
    %c0_i32_0 = arith.constant 0 : i32
    %c0_i32_1 = arith.constant 0 : i32
    return %c0_i32, %c0_i32_0 : i32, i32
  }
  func.func @transform_3(%arg0: i32) -> (i32, i32) {
    %c0_i32 = arith.constant 0 : i32
    %c0_i32_0 = arith.constant 0 : i32
    %c0_i32_1 = arith.constant 0 : i32
    return %c0_i32, %c0_i32_0 : i32, i32
  }
  func.func @transform_4(%arg0: i32) -> (i32, i32) {
    %c0_i32 = arith.constant 0 : i32
    %c0_i32_0 = arith.constant 0 : i32
    %c0_i32_1 = arith.constant 0 : i32
    return %c0_i32, %c0_i32_0 : i32, i32
  }
  func.func @transform_5(%arg0: i32) -> (i32, i32) {
    %c0_i32 = arith.constant 0 : i32
    %c0_i32_0 = arith.constant 0 : i32
    %c0_i32_1 = arith.constant 0 : i32
    return %c0_i32, %c0_i32_0 : i32, i32
  }
  func.func @transform_6(%arg0: i32) -> (i32, i32) {
    %c0_i32 = arith.constant 0 : i32
    %c0_i32_0 = arith.constant 0 : i32
    %c0_i32_1 = arith.constant 0 : i32
    return %c0_i32, %c0_i32_0 : i32, i32
  }
}

module attributes {stable_mosaic.version = 11 : i64} {
  func.func @_ffn_kernel(%arg0: i32, %arg1: memref<16x32xf32, #tpu.memory_space<vmem>>, %arg2: memref<32x32xf32, #tpu.memory_space<vmem>>, %arg3: memref<1x32xf32, #tpu.memory_space<vmem>>, %arg4: memref<32x32xf32, #tpu.memory_space<vmem>>, %arg5: memref<1x32xf32, #tpu.memory_space<vmem>>, %arg6: memref<16x32xf32, #tpu.memory_space<vmem>>) attributes {dimension_semantics = [#tpu.dimension_semantics<parallel>], iteration_bounds = array<i64: 1>, scalar_prefetch = 0 : i64, scratch_operands = 0 : i64, tpu.core_type = #tpu.core_type<tc>, window_params = [{transform_indices = @transform_0, window_bounds = array<i64: 16, 32>}, {pipeline_mode = #tpu.pipeline_mode<synchronous>, transform_indices = @transform_1, window_bounds = array<i64: 32, 32>}, {pipeline_mode = #tpu.pipeline_mode<synchronous>, transform_indices = @transform_2, window_bounds = array<i64: 1, 32>}, {pipeline_mode = #tpu.pipeline_mode<synchronous>, transform_indices = @transform_3, window_bounds = array<i64: 32, 32>}, {pipeline_mode = #tpu.pipeline_mode<synchronous>, transform_indices = @transform_4, window_bounds = array<i64: 1, 32>}, {transform_indices = @transform_5, window_bounds = array<i64: 16, 32>}]} {
    %c0 = arith.constant 0 : index
    %c0_0 = arith.constant 0 : index
    %0 = vector.load %arg1[%c0, %c0_0] : memref<16x32xf32, #tpu.memory_space<vmem>>, vector<16x32xf32>
    %c0_1 = arith.constant 0 : index
    %c0_2 = arith.constant 0 : index
    %1 = vector.load %arg2[%c0_1, %c0_2] : memref<32x32xf32, #tpu.memory_space<vmem>>, vector<32x32xf32>
    %cst = arith.constant dense<0.000000e+00> : vector<16x32xf32>
    %2 = tpu.matmul %0, %1, %cst {dimension_numbers = #tpu.dot_dimension_numbers<[1], [0], [0], [1], [0, 0, 1, 1], [], []>} : vector<16x32xf32>, vector<32x32xf32>, vector<16x32xf32> -> vector<16x32xf32>
    %c0_3 = arith.constant 0 : index
    %c0_4 = arith.constant 0 : index
    %3 = vector.load %arg3[%c0_3, %c0_4] : memref<1x32xf32, #tpu.memory_space<vmem>>, vector<1x32xf32>
    %4 = vector.broadcast %3 : vector<1x32xf32> to vector<16x32xf32>
    %5 = arith.addf %2, %4 : vector<16x32xf32>
    %cst_5 = arith.constant 0.000000e+00 : f32
    %6 = vector.broadcast %cst_5 : f32 to vector<16x32xf32>
    %7 = arith.maximumf %5, %6 : vector<16x32xf32>
    %c0_6 = arith.constant 0 : index
    %c0_7 = arith.constant 0 : index
    %8 = vector.load %arg4[%c0_6, %c0_7] : memref<32x32xf32, #tpu.memory_space<vmem>>, vector<32x32xf32>
    %cst_8 = arith.constant dense<0.000000e+00> : vector<16x32xf32>
    %9 = tpu.matmul %7, %8, %cst_8 {dimension_numbers = #tpu.dot_dimension_numbers<[1], [0], [0], [1], [0, 0, 1, 1], [], []>} : vector<16x32xf32>, vector<32x32xf32>, vector<16x32xf32> -> vector<16x32xf32>
    %c0_9 = arith.constant 0 : index
    %c0_10 = arith.constant 0 : index
    %10 = vector.load %arg5[%c0_9, %c0_10] : memref<1x32xf32, #tpu.memory_space<vmem>>, vector<1x32xf32>
    %11 = vector.broadcast %10 : vector<1x32xf32> to vector<16x32xf32>
    %12 = arith.addf %9, %11 : vector<16x32xf32>
    %c0_11 = arith.constant 0 : index
    %c0_12 = arith.constant 0 : index
    %13 = vector.load %arg6[%c0_11, %c0_12] : memref<16x32xf32, #tpu.memory_space<vmem>>, vector<16x32xf32>
    tpu.vector_store %arg6[%c0_11, %c0_12], %12 {strides = array<i32>} : memref<16x32xf32, #tpu.memory_space<vmem>>, vector<16x32xf32>,
    return
  }
  func.func @transform_0(%arg0: i32) -> (i32, i32) {
    %c0_i32 = arith.constant 0 : i32
    %c0_i32_0 = arith.constant 0 : i32
    return %arg0, %c0_i32 : i32, i32
  }
  func.func @transform_1(%arg0: i32) -> (i32, i32) {
    %c0_i32 = arith.constant 0 : i32
    %c0_i32_0 = arith.constant 0 : i32
    %c0_i32_1 = arith.constant 0 : i32
    return %c0_i32, %c0_i32_0 : i32, i32
  }
  func.func @transform_2(%arg0: i32) -> (i32, i32) {
    %c0_i32 = arith.constant 0 : i32
    %c0_i32_0 = arith.constant 0 : i32
    %c0_i32_1 = arith.constant 0 : i32
    return %c0_i32, %c0_i32_0 : i32, i32
  }
  func.func @transform_3(%arg0: i32) -> (i32, i32) {
    %c0_i32 = arith.constant 0 : i32
    %c0_i32_0 = arith.constant 0 : i32
    %c0_i32_1 = arith.constant 0 : i32
    return %c0_i32, %c0_i32_0 : i32, i32
  }
  func.func @transform_4(%arg0: i32) -> (i32, i32) {
    %c0_i32 = arith.constant 0 : i32
    %c0_i32_0 = arith.constant 0 : i32
    %c0_i32_1 = arith.constant 0 : i32
    return %c0_i32, %c0_i32_0 : i32, i32
  }
  func.func @transform_5(%arg0: i32) -> (i32, i32) {
    %c0_i32 = arith.constant 0 : i32
    %c0_i32_0 = arith.constant 0 : i32
    return %arg0, %c0_i32 : i32, i32
  }
}

</mosaic_0001>

<llo_original>
// kernel: centroid_estimator_forward.16
$region0: #{centroid_estimator_forward.16}
  #allocation0 [shape = 'u32[]', space=smem, size = 0x4, offset = 0x4, fixed_abs, tag = 'smem constant byte address 0x4 - core index']
  #allocation1 [shape = 'u32[144,128]{1,0:T(1,128)}', space=vmem, size = 0x12000, scoped, tag = 'internal scratch']
  %s0 = inlined_call_operand.vmem [shape: f32[16,32], index: 0, kind: input, shape index: {}]
  %s1 = inlined_call_operand.hbm [shape: f32[32,32], index: 1, kind: input, shape index: {}]
  %s2 = inlined_call_operand.vmem [shape: f32[1,32], index: 2, kind: input, shape index: {}]
  %s3 = inlined_call_operand.vmem [shape: f32[16,32], index: 3, kind: output, shape index: {}]
  %s4 = sld [smem:[#allocation0]]
  $region26: #{centroid_estimator_forward.16} parent=0
    _
  %s6 = ssub.s32 1, %s4
  %s7 = scalar_select 0, %s6, %s4
  $region1: #{centroid_estimator_forward.16} parent=0
    #allocation2 [shape = 'u8[16384]{0}', space=vmem, size = 0x4000, scoped, tag = 'input window, operand 1, single buffered']
    #allocation3 [shape = 's32[1]{0}', space=sflag, size = 0x4, scoped, tag = 'scoped memory for centroid_estimator_forward.16']
    %8 = vsyncpa [#allocation3], 0
    // Predicated region
    $region2: #{centroid_estimator_forward.16} parent=1 // pred_check
      _
    $region3: #{centroid_estimator_forward.16} parent=1 // pred_check_branch
      %10 = sbr.rel (0) target = $region5
    $region4: #{centroid_estimator_forward.16} parent=1 // pred_region
      _
    $region5: #{centroid_estimator_forward.16} parent=1 // pred_fallthru
      _
    // Predicated region
    $region6: #{centroid_estimator_forward.16} parent=1 // pred_check
      _
    $region7: #{centroid_estimator_forward.16} parent=1 // pred_check_branch
      %12 = sbr.rel (0) target = $region9
    $region8: #{centroid_estimator_forward.16} parent=1 // pred_region
      %s14 = ssub.s32 512, 512
      %15 = vsyncadd [#allocation3], %s14
      %s16 = sshll.u32 [#allocation2], 4
      %s17 = int_to_ptr.vmem [resolvable:$true] %s16
      %22 = dma.hbm_to_vmem [thread:$0]  %s1, 512, %s17, [#allocation3], 128, 128, 8
    $region9: #{centroid_estimator_forward.16} parent=1 // pred_fallthru
      _
    // Predicated region
    $region10: #{centroid_estimator_forward.16} parent=1 // pred_check
      _
    $region11: #{centroid_estimator_forward.16} parent=1 // pred_check_branch
      %24 = sbr.rel (0) target = $region13
    $region12: #{centroid_estimator_forward.16} parent=1 // pred_region
      _
    $region13: #{centroid_estimator_forward.16} parent=1 // pred_fallthru
      _
    // Predicated region
    $region14: #{centroid_estimator_forward.16} parent=1 // pred_check
      _
    $region15: #{centroid_estimator_forward.16} parent=1 // pred_check_branch
      %26 = sbr.rel (0) target = $region17
    $region16: #{centroid_estimator_forward.16} parent=1 // pred_region
      %27 = dma.done [#allocation3], 512
    $region17: #{centroid_estimator_forward.16} parent=1 // pred_fallthru
      _
    %v28 = vld [vmem:[%s0] sm:$0xff]
    %v29 = vld [vmem:[%s0 + $0x8] sm:$0xff]
    %v30 = vld [vmem:[#allocation2] sm:$0xff]
    %v31 = vld [vmem:[#allocation2 + $0x8] sm:$0xff]
    %v32 = vld [vmem:[#allocation2 + $0x10] sm:$0xff]
    %v33 = vld [vmem:[#allocation2 + $0x18] sm:$0xff]
    %v34 = vld [vmem:[%s2] sm:$0x1]
    %v36 = vlaneseq
    %v37 = vshrl.u32 %v36, 7
    %v38 = vsub.s32 0, %v37
    %v39 = vrot.slane %v34, %v38
    %vm41 = vcmask 261120
    %v43 = vsel %vm41, %v28, 0
    %v46 = vsel %vm41, %v29, 0
    %48 = vmatprep.subr.mxu0 0.0
    %49 = vmatpush1.msra.mxu0 0.0
    %50 = vmatprep.subr.mxu0 0.0
    %51 = vmatpush1.msra.mxu0 0.0
    %52 = vmatprep.subr.mxu0 0.0
    %53 = vmatpush1.msra.mxu0 0.0
    %54 = vmatprep.subr.mxu0 0.0
    %55 = vmatpush1.msra.mxu0 0.0
    %56 = vmatprep.subr.mxu0 0.0
    %57 = vmatpush1.msra.mxu0 0.0
    %58 = vmatprep.subr.mxu0 0.0
    %59 = vmatpush1.msra.mxu0 0.0
    %60 = vmatprep.subr.mxu0 0.0
    %61 = vmatpush1.msra.mxu0 0.0
    %62 = vmatprep.subr.mxu0 0.0
    %63 = vmatpush1.msra.mxu0 0.0
    %64 = vmatprep.subr.mxu0 0.0
    %65 = vmatpush1.msra.mxu0 0.0
    %66 = vmatprep.subr.mxu0 0.0
    %67 = vmatpush1.msra.mxu0 0.0
    %68 = vmatprep.subr.mxu0 0.0
    %69 = vmatpush1.msra.mxu0 0.0
    %70 = vmatprep.subr.mxu0 0.0
    %71 = vmatpush1.msra.mxu0 0.0
    %72 = vmatprep.subr.mxu0 0.0
    %73 = vmatpush1.msra.mxu0 %v33
    %74 = vmatprep.subr.mxu0 0.0
    %75 = vmatpush1.msra.mxu0 %v32
    %76 = vmatprep.subr.mxu0 0.0
    %77 = vmatpush1.msra.mxu0 %v31
    %78 = vmatprep.subr.mxu0 0.0
    %79 = vmatpush1.msra.mxu0 %v30
    %80 = vmatprep.subr.mxu0 0.0
    %81 = vmatpush2.msra.mxu0 0.0
    %82 = vmatprep.subr.mxu0 0.0
    %83 = vmatpush2.msra.mxu0 0.0
    %84 = vmatprep.subr.mxu0 0.0
    %85 = vmatpush2.msra.mxu0 0.0
    %86 = vmatprep.subr.mxu0 0.0
    %87 = vmatpush2.msra.mxu0 0.0
    %88 = vmatprep.subr.mxu0 0.0
    %89 = vmatpush2.msra.mxu0 0.0
    %90 = vmatprep.subr.mxu0 0.0
    %91 = vmatpush2.msra.mxu0 0.0
    %92 = vmatprep.subr.mxu0 0.0
    %93 = vmatpush2.msra.mxu0 0.0
    %94 = vmatprep.subr.mxu0 0.0
    %95 = vmatpush2.msra.mxu0 0.0
    %96 = vmatprep.subr.mxu0 0.0
    %97 = vmatpush2.msra.mxu0 0.0
    %98 = vmatprep.subr.mxu0 0.0
    %99 = vmatpush2.msra.mxu0 0.0
    %100 = vmatprep.subr.mxu0 0.0
    %101 = vmatpush2.msra.mxu0 0.0
    %102 = vmatprep.subr.mxu0 0.0
    %103 = vmatpush2.msra.mxu0 0.0
    %104 = vmatprep.subr.mxu0 0.0
    %105 = vmatpush2.msra.mxu0 0.0
    %106 = vmatprep.subr.mxu0 0.0
    %107 = vmatpush2.msra.mxu0 0.0
    %108 = vmatprep.subr.mxu0 0.0
    %109 = vmatpush2.msra.mxu0 0.0
    %110 = vmatprep.subr.mxu0 0.0
    %111 = vmatpush2.msra.mxu0 0.0
    %112 = vmatprep.mubr.f32.mxu0 0.0
    %113 = vmatmul.mubr.f32.gmra.mxu0 %v43
    %v114 = vpop.f32.mrf.mxu0
    %v115 = vadd.f32 %v39, %v114
    %v116 = vpop.f32.mrf.mxu0
    %117 = vmatprep.mubr.f32.mxu0 0.0
    %118 = vmatmul.mubr.f32.gmra.mxu0 %v46
    %v119 = vpop.f32.mrf.mxu0
    %v120 = vadd.f32 %v39, %v119
    %v121 = vpop.f32.mrf.mxu0
    %122 = vdwg.mxu0
    %123 = vst.msk [vmem:[%s3] sm:$0xff] %vm41, %v115
    %124 = vst.msk [vmem:[%s3 + $0x8] sm:$0xff] %vm41, %v120
    // Predicated region
    $region18: #{centroid_estimator_forward.16} parent=1 // pred_check
      _
    $region19: #{centroid_estimator_forward.16} parent=1 // pred_check_branch
      %126 = sbr.rel (0) target = $region21
    $region20: #{centroid_estimator_forward.16} parent=1 // pred_region
      _
    $region21: #{centroid_estimator_forward.16} parent=1 // pred_fallthru
      _
    // Predicated region
    $region22: #{centroid_estimator_forward.16} parent=1 // pred_check
      _
    $region23: #{centroid_estimator_forward.16} parent=1 // pred_check_branch
      %128 = sbr.rel (0) target = $region25
    $region24: #{centroid_estimator_forward.16} parent=1 // pred_region
      _
    $region25: #{centroid_estimator_forward.16} parent=1 // pred_fallthru
      _
    %129 = vsyncpa [#allocation3], 1

// kernel: centroid_estimator_forward.19
$region0: #{centroid_estimator_forward.19}
  #allocation0 [shape = 'u32[]', space=smem, size = 0x4, offset = 0x4, fixed_abs, tag = 'smem constant byte address 0x4 - core index']
  #allocation1 [shape = 'u32[144,128]{1,0:T(1,128)}', space=vmem, size = 0x12000, scoped, tag = 'internal scratch']
  %s0 = inlined_call_operand.vmem [shape: f32[2,64,32], index: 0, kind: input, shape index: {}]
  %s1 = inlined_call_operand.vmem [shape: f32[2,8,32], index: 1, kind: input, shape index: {}]
  %s2 = inlined_call_operand.vmem [shape: f32[2,64,8], index: 2, kind: output, shape index: {}]
  %s3 = sld [smem:[#allocation0]]
  $region41: #{centroid_estimator_forward.19} parent=0
    _
  %s5 = ssub.s32 1, %s3
  %s6 = scalar_select 0, %s5, %s3
  loop: start=0, step=1, limit=4
  $region2: #{centroid_estimator_forward.19} parent=0 // loop_pre_header
    _
  $region3: #{centroid_estimator_forward.19} parent=0 // loop_header
    %s8 = sphi 0, %s12
    %p9 = scmp.ge.s32.totalorder %s8, 4
    %s18 = sphi 0, %s20
    %s21 = sphi 0, %s18
    %s22 = sphi 0, %s21
    %s38 = sphi 0, %s22
    %s44 = sphi 0, %s46
    %s47 = sphi 0, %s44
    %s48 = sphi 0, %s47
    %s64 = sphi 0, %s48
    %s70 = sphi 0, %s72
    %s73 = sphi 0, %s70
    %s74 = sphi 0, %s73
    %s90 = sphi 0, %s74
  $region4: #{centroid_estimator_forward.19} parent=0 // loop_header_branch
    %11 = sbr.rel (%p9) target = $region8
  $region5: #{centroid_estimator_forward.19} parent=0 // loop_body
    %s13 = ssub.s32 %s8, 1
    %s14 = ssub.s32 %s8, 2
    %s15 = sadd.s32 %s8, 1
    %s16 = ssub.s32 %s8, %s15
    %p17 = scmp.eq.s32.totalorder %s16, 0
    %s19 = sadd.s32 %s18, 1
    %s20 = scalar_select %p17, %s18, %s19
    %p23 = pneg %p17
    %p24 = scmp.eq.s32.totalorder %s8, 1
    %p25 = por %p23, %p24
    %p26 = scmp.ne.s32.totalorder %s18, %s21
    %p27 = scmp.eq.s32.totalorder %s8, 0
    %p28 = por %p26, %p27
    %p29 = scmp.ne.s32.totalorder %s18, %s21
    %p30 = scmp.eq.s32.totalorder %s13, 1
    %p31 = por %p29, %p30
    %p32 = scmp.ne.s32.totalorder %s21, %s22
    %p33 = scmp.eq.s32.totalorder %s13, 0
    %p34 = por %p32, %p33
    %p35 = scmp.ne.s32.totalorder %s21, %s22
    %p36 = scmp.eq.s32.totalorder %s14, 1
    %p37 = por %p35, %p36
    %p39 = scmp.ne.s32.totalorder %s22, %s38
    %p40 = scmp.eq.s32.totalorder %s14, 0
    %p41 = por %p39, %p40
    %s42 = ssub.s32 %s8, %s15
    %p43 = scmp.eq.s32.totalorder %s42, 0
    %s45 = sadd.s32 %s44, 1
    %s46 = scalar_select %p43, %s44, %s45
    %p49 = pneg %p43
    %p50 = scmp.eq.s32.totalorder %s8, 1
    %p51 = por %p49, %p50
    %p52 = scmp.ne.s32.totalorder %s44, %s47
    %p53 = scmp.eq.s32.totalorder %s8, 0
    %p54 = por %p52, %p53
    %p55 = scmp.ne.s32.totalorder %s44, %s47
    %p56 = scmp.eq.s32.totalorder %s13, 1
    %p57 = por %p55, %p56
    %p58 = scmp.ne.s32.totalorder %s47, %s48
    %p59 = scmp.eq.s32.totalorder %s13, 0
    %p60 = por %p58, %p59
    %p61 = scmp.ne.s32.totalorder %s47, %s48
    %p62 = scmp.eq.s32.totalorder %s14, 1
    %p63 = por %p61, %p62
    %p65 = scmp.ne.s32.totalorder %s48, %s64
    %p66 = scmp.eq.s32.totalorder %s14, 0
    %p67 = por %p65, %p66
    %s68 = ssub.s32 %s8, %s15
    %p69 = scmp.eq.s32.totalorder %s68, 0
    %s71 = sadd.s32 %s70, 1
    %s72 = scalar_select %p69, %s70, %s71
    %p75 = pneg %p69
    %p76 = scmp.eq.s32.totalorder %s8, 1
    %p77 = por %p75, %p76
    %p78 = scmp.ne.s32.totalorder %s70, %s73
    %p79 = scmp.eq.s32.totalorder %s8, 0
    %p80 = por %p78, %p79
    %p81 = scmp.ne.s32.totalorder %s70, %s73
    %p82 = scmp.eq.s32.totalorder %s13, 1
    %p83 = por %p81, %p82
    %p84 = scmp.ne.s32.totalorder %s73, %s74
    %p85 = scmp.eq.s32.totalorder %s13, 0
    %p86 = por %p84, %p85
    %p87 = scmp.ne.s32.totalorder %s73, %s74
    %p88 = scmp.eq.s32.totalorder %s14, 1
    %p89 = por %p87, %p88
    %p91 = scmp.ne.s32.totalorder %s74, %s90
    %p92 = scmp.eq.s32.totalorder %s14, 0
    %p93 = por %p91, %p92
    %p94 = scmp.le.s32.totalorder 1, %s8
    %p95 = scmp.lt.s32.totalorder %s8, 3
    %p96 = pnand %p94, %p95
    %p97 = pneg %p96
    // Predicated region
    $region9: #{centroid_estimator_forward.19} parent=5 // pred_check
      _
    $region10: #{centroid_estimator_forward.19} parent=5 // pred_check_branch
      %99 = sbr.rel (%p96) target = $region12
    $region11: #{centroid_estimator_forward.19} parent=5 // pred_region
      %s100 = ssub.s32 %s8, 1
    $region12: #{centroid_estimator_forward.19} parent=5 // pred_fallthru
      _
    %p101 = scmp.lt.s32.totalorder %s8, 2
    // Predicated region
    $region13: #{centroid_estimator_forward.19} parent=5 // pred_check
      %p102 = pneg %p101
    $region14: #{centroid_estimator_forward.19} parent=5 // pred_check_branch
      %104 = sbr.rel (%p102) target = $region16
    $region15: #{centroid_estimator_forward.19} parent=5 // pred_region
      // Predicated region
      $region17: #{centroid_estimator_forward.19} parent=15 // pred_check
        %p105 = pneg %p28
      $region18: #{centroid_estimator_forward.19} parent=15 // pred_check_branch
        %107 = sbr.rel (%p105) target = $region20
      $region19: #{centroid_estimator_forward.19} parent=15 // pred_region
        %p108 = scmp.lt.s32.totalorder %s8, 1
        %s109 = scalar_select %p108, %s8, 1
        %s110 = smul.addr %s109, 8
        %s111 = smul.addr %s110, 8
        %s112 = scalar_lea.vmem %s0, %s111
      $region20: #{centroid_estimator_forward.19} parent=15 // pred_fallthru
        _
      // Predicated region
      $region21: #{centroid_estimator_forward.19} parent=15 // pred_check
        %p113 = pneg %p54
      $region22: #{centroid_estimator_forward.19} parent=15 // pred_check_branch
        %115 = sbr.rel (%p113) target = $region24
      $region23: #{centroid_estimator_forward.19} parent=15 // pred_region
        %p116 = scmp.lt.s32.totalorder %s8, 1
        %s117 = scalar_select %p116, %s8, 1
        %s118 = smul.addr %s117, 8
        %s119 = scalar_lea.vmem %s1, %s118
      $region24: #{centroid_estimator_forward.19} parent=15 // pred_fallthru
        _
    $region16: #{centroid_estimator_forward.19} parent=5 // pred_fallthru
      _
    %p120 = scmp.le.s32.totalorder 1, %s8
    %p121 = scmp.lt.s32.totalorder %s8, 3
    %p122 = pnand %p120, %p121
    %p123 = pneg %p122
    // Predicated region
    $region25: #{centroid_estimator_forward.19} parent=5 // pred_check
      _
    $region26: #{centroid_estimator_forward.19} parent=5 // pred_check_branch
      %125 = sbr.rel (%p122) target = $region28
    $region27: #{centroid_estimator_forward.19} parent=5 // pred_region
      %s126 = ssub.s32 %s8, 1
      %p127 = scmp.lt.s32.totalorder %s13, 1
      %s128 = scalar_select %p127, %s13, 1
      %s129 = smul.addr %s128, 8
      %s130 = smul.addr %s129, 8
      %s131 = scalar_lea.vmem %s0, %s130
      %p132 = pneg %p34
      %p133 = pneg %p31
      %p134 = scmp.lt.s32.totalorder %s13, 1
      %s135 = scalar_select %p134, %s13, 1
      %s136 = smul.addr %s135, 8
      %s137 = scalar_lea.vmem %s1, %s136
      %p138 = pneg %p60
      %p139 = pneg %p57
      %p140 = pneg %p86
      %p141 = pneg %p83
      %p142 = scmp.lt.s32.totalorder %s13, 1
      %s143 = scalar_select %p142, %s13, 1
      %s144 = smul.addr %s143, 8
      %s145 = smul.addr %s144, 8
      %s146 = scalar_lea.vmem %s2, %s145
      %p147 = scmp.lt.s32.totalorder %s13, 1
      %s148 = scalar_select %p147, %s13, 1
      %s149 = smul.addr %s148, 8
      %s150 = smul.addr %s149, 8
      %s151 = scalar_lea.vmem %s0, %s150
      %p152 = scmp.lt.s32.totalorder %s13, 1
      %s153 = scalar_select %p152, %s13, 1
      %s154 = smul.addr %s153, 8
      %s155 = scalar_lea.vmem %s1, %s154
      %p156 = scmp.lt.s32.totalorder %s13, 1
      %s157 = scalar_select %p156, %s13, 1
      %s158 = smul.addr %s157, 8
      %s159 = smul.addr %s158, 8
      %s160 = scalar_lea.vmem %s2, %s159
      %v161 = vld [vmem:[%s151] sm:$0xff]
      %v162 = vld [vmem:[%s151 + $0x8] sm:$0xff]
      %v163 = vld [vmem:[%s151 + $0x10] sm:$0xff]
      %v164 = vld [vmem:[%s151 + $0x18] sm:$0xff]
      %v165 = vld [vmem:[%s151 + $0x20] sm:$0xff]
      %v166 = vld [vmem:[%s151 + $0x28] sm:$0xff]
      %v167 = vld [vmem:[%s151 + $0x30] sm:$0xff]
      %v168 = vld [vmem:[%s151 + $0x38] sm:$0xff]
      %v169 = vld [vmem:[%s155] sm:$0xff]
      %vm170 = vcmask 261120
      %v172 = vsel %vm170, %v161, 0
      %v175 = vsel %vm170, %v162, 0
      %v178 = vsel %vm170, %v163, 0
      %v181 = vsel %vm170, %v164, 0
      %v184 = vsel %vm170, %v165, 0
      %v187 = vsel %vm170, %v166, 0
      %v190 = vsel %vm170, %v167, 0
      %v193 = vsel %vm170, %v168, 0
      %v196 = vsel %vm170, %v169, 0
      %198 = vmatprep.subr.mxu0 0.0
      %199 = vmatpush1.xpose.msra.mxu0 0.0
      %200 = vmatprep.subr.mxu0 0.0
      %201 = vmatpush1.xpose.msra.mxu0 0.0
      %202 = vmatprep.subr.mxu0 0.0
      %203 = vmatpush1.xpose.msra.mxu0 0.0
      %204 = vmatprep.subr.mxu0 0.0
      %205 = vmatpush1.xpose.msra.mxu0 0.0
      %206 = vmatprep.subr.mxu0 0.0
      %207 = vmatpush1.xpose.msra.mxu0 0.0
      %208 = vmatprep.subr.mxu0 0.0
      %209 = vmatpush1.xpose.msra.mxu0 0.0
      %210 = vmatprep.subr.mxu0 0.0
      %211 = vmatpush1.xpose.msra.mxu0 0.0
      %212 = vmatprep.subr.mxu0 0.0
      %213 = vmatpush1.xpose.msra.mxu0 0.0
      %214 = vmatprep.subr.mxu0 0.0
      %215 = vmatpush1.xpose.msra.mxu0 0.0
      %216 = vmatprep.subr.mxu0 0.0
      %217 = vmatpush1.xpose.msra.mxu0 0.0
      %218 = vmatprep.subr.mxu0 0.0
      %219 = vmatpush1.xpose.msra.mxu0 0.0
      %220 = vmatprep.subr.mxu0 0.0
      %221 = vmatpush1.xpose.msra.mxu0 0.0
      %222 = vmatprep.subr.mxu0 0.0
      %223 = vmatpush1.xpose.msra.mxu0 0.0
      %224 = vmatprep.subr.mxu0 0.0
      %225 = vmatpush1.xpose.msra.mxu0 0.0
      %226 = vmatprep.subr.mxu0 0.0
      %227 = vmatpush1.xpose.msra.mxu0 0.0
      %228 = vmatprep.subr.mxu0 0.0
      %229 = vmatpush1.xpose.msra.mxu0 %v196
      %230 = vmatprep.subr.mxu0 0.0
      %231 = vmatpush2.xpose.msra.mxu0 0.0
      %232 = vmatprep.subr.mxu0 0.0
      %233 = vmatpush2.xpose.msra.mxu0 0.0
      %234 = vmatprep.subr.mxu0 0.0
      %235 = vmatpush2.xpose.msra.mxu0 0.0
      %236 = vmatprep.subr.mxu0 0.0
      %237 = vmatpush2.xpose.msra.mxu0 0.0
      %238 = vmatprep.subr.mxu0 0.0
      %239 = vmatpush2.xpose.msra.mxu0 0.0
      %240 = vmatprep.subr.mxu0 0.0
      %241 = vmatpush2.xpose.msra.mxu0 0.0
      %242 = vmatprep.subr.mxu0 0.0
      %243 = vmatpush2.xpose.msra.mxu0 0.0
      %244 = vmatprep.subr.mxu0 0.0
      %245 = vmatpush2.xpose.msra.mxu0 0.0
      %246 = vmatprep.subr.mxu0 0.0
      %247 = vmatpush2.xpose.msra.mxu0 0.0
      %248 = vmatprep.subr.mxu0 0.0
      %249 = vmatpush2.xpose.msra.mxu0 0.0
      %250 = vmatprep.subr.mxu0 0.0
      %251 = vmatpush2.xpose.msra.mxu0 0.0
      %252 = vmatprep.subr.mxu0 0.0
      %253 = vmatpush2.xpose.msra.mxu0 0.0
      %254 = vmatprep.subr.mxu0 0.0
      %255 = vmatpush2.xpose.msra.mxu0 0.0
      %256 = vmatprep.subr.mxu0 0.0
      %257 = vmatpush2.xpose.msra.mxu0 0.0
      %258 = vmatprep.subr.mxu0 0.0
      %259 = vmatpush2.xpose.msra.mxu0 0.0
      %260 = vmatprep.subr.mxu0 0.0
      %261 = vmatpush2.xpose.msra.mxu0 0.0
      %262 = vmatprep.mubr.f32.mxu0 0.0
      %263 = vmatmul.mubr.f32.gmra.mxu0 %v172
      %v264 = vpop.f32.mrf.mxu0
      %v265 = vadd.f32 0.0, %v264
      %v266 = vpop.f32.mrf.mxu0
      %267 = vmatprep.mubr.f32.mxu0 0.0
      %268 = vmatmul.mubr.f32.gmra.mxu0 %v175
      %v269 = vpop.f32.mrf.mxu0
      %v270 = vadd.f32 0.0, %v269
      %v271 = vpop.f32.mrf.mxu0
      %272 = vmatprep.mubr.f32.mxu0 0.0
      %273 = vmatmul.mubr.f32.gmra.mxu0 %v178
      %v274 = vpop.f32.mrf.mxu0
      %v275 = vadd.f32 0.0, %v274
      %v276 = vpop.f32.mrf.mxu0
      %277 = vmatprep.mubr.f32.mxu0 0.0
      %278 = vmatmul.mubr.f32.gmra.mxu0 %v181
      %v279 = vpop.f32.mrf.mxu0
      %v280 = vadd.f32 0.0, %v279
      %v281 = vpop.f32.mrf.mxu0
      %282 = vmatprep.mubr.f32.mxu0 0.0
      %283 = vmatmul.mubr.f32.gmra.mxu0 %v184
      %v284 = vpop.f32.mrf.mxu0
      %v285 = vadd.f32 0.0, %v284
      %v286 = vpop.f32.mrf.mxu0
      %287 = vmatprep.mubr.f32.mxu0 0.0
      %288 = vmatmul.mubr.f32.gmra.mxu0 %v187
      %v289 = vpop.f32.mrf.mxu0
      %v290 = vadd.f32 0.0, %v289
      %v291 = vpop.f32.mrf.mxu0
      %292 = vmatprep.mubr.f32.mxu0 0.0
      %293 = vmatmul.mubr.f32.gmra.mxu0 %v190
      %v294 = vpop.f32.mrf.mxu0
      %v295 = vadd.f32 0.0, %v294
      %v296 = vpop.f32.mrf.mxu0
      %297 = vmatprep.mubr.f32.mxu0 0.0
      %298 = vmatmul.mubr.f32.gmra.mxu0 %v193
      %v299 = vpop.f32.mrf.mxu0
      %v300 = vadd.f32 0.0, %v299
      %v301 = vpop.f32.mrf.mxu0
      %302 = vdwg.mxu0
      %v303 = vmul.f32 %v265, 0.17677669
      %v304 = vmul.f32 %v270, 0.17677669
      %v305 = vmul.f32 %v275, 0.17677669
      %v306 = vmul.f32 %v280, 0.17677669
      %v307 = vmul.f32 %v285, 0.17677669
      %v308 = vmul.f32 %v290, 0.17677669
      %v309 = vmul.f32 %v295, 0.17677669
      %v310 = vmul.f32 %v300, 0.17677669
      %vm311 = vcmask 64512
      %312 = vst.msk [vmem:[%s160] sm:$0xff] %vm311, %v303
      %313 = vst.msk [vmem:[%s160 + $0x8] sm:$0xff] %vm311, %v304
      %314 = vst.msk [vmem:[%s160 + $0x10] sm:$0xff] %vm311, %v305
      %315 = vst.msk [vmem:[%s160 + $0x18] sm:$0xff] %vm311, %v306
      %316 = vst.msk [vmem:[%s160 + $0x20] sm:$0xff] %vm311, %v307
      %317 = vst.msk [vmem:[%s160 + $0x28] sm:$0xff] %vm311, %v308
      %318 = vst.msk [vmem:[%s160 + $0x30] sm:$0xff] %vm311, %v309
      %319 = vst.msk [vmem:[%s160 + $0x38] sm:$0xff] %vm311, %v310
      %p320 = scmp.lt.s32.totalorder %s13, 1
      %s321 = scalar_select %p320, %s13, 1
      %s322 = smul.addr %s321, 8
      %s323 = smul.addr %s322, 8
      %s324 = scalar_lea.vmem %s2, %s323
      // Predicated region
      $region29: #{centroid_estimator_forward.19} parent=27 // pred_check
        %p325 = pneg %p83
      $region30: #{centroid_estimator_forward.19} parent=27 // pred_check_branch
        %327 = sbr.rel (%p325) target = $region32
      $region31: #{centroid_estimator_forward.19} parent=27 // pred_region
        _
      $region32: #{centroid_estimator_forward.19} parent=27 // pred_fallthru
        _
    $region28: #{centroid_estimator_forward.19} parent=5 // pred_fallthru
      _
    %p328 = scmp.le.s32.totalorder 2, %s8
    // Predicated region
    $region33: #{centroid_estimator_forward.19} parent=5 // pred_check
      %p329 = pneg %p328
    $region34: #{centroid_estimator_forward.19} parent=5 // pred_check_branch
      %331 = sbr.rel (%p329) target = $region36
    $region35: #{centroid_estimator_forward.19} parent=5 // pred_region
      %s332 = ssub.s32 %s8, 2
      // Predicated region
      $region37: #{centroid_estimator_forward.19} parent=35 // pred_check
        %p333 = pneg %p89
      $region38: #{centroid_estimator_forward.19} parent=35 // pred_check_branch
        %335 = sbr.rel (%p333) target = $region40
      $region39: #{centroid_estimator_forward.19} parent=35 // pred_region
        %p336 = scmp.lt.s32.totalorder %s14, 1
        %s337 = scalar_select %p336, %s14, 1
        %s338 = smul.addr %s337, 8
        %s339 = smul.addr %s338, 8
        %s340 = scalar_lea.vmem %s2, %s339
      $region40: #{centroid_estimator_forward.19} parent=35 // pred_fallthru
        _
    $region36: #{centroid_estimator_forward.19} parent=5 // pred_fallthru
      _
  $region6: #{centroid_estimator_forward.19} parent=0 // loop_footer
    %s12 = sadd.s32 1, %s8
  $region7: #{centroid_estimator_forward.19} parent=0 // loop_footer_branch
    %7 = sbr.rel target = $region3
  $region8: #{centroid_estimator_forward.19} parent=0 // loop_exit
    _

// kernel: centroid_estimator_forward.17
$region0: #{centroid_estimator_forward.17}
  #allocation0 [shape = 'u32[]', space=smem, size = 0x4, offset = 0x4, fixed_abs, tag = 'smem constant byte address 0x4 - core index']
  #allocation1 [shape = 'u32[144,128]{1,0:T(1,128)}', space=vmem, size = 0x12000, scoped, tag = 'internal scratch']
  %s0 = inlined_call_operand.vmem [shape: f32[128,32], index: 0, kind: input, shape index: {}]
  %s1 = inlined_call_operand.vmem [shape: f32[32,32], index: 1, kind: input, shape index: {}]
  %s2 = inlined_call_operand.vmem [shape: f32[1,32], index: 2, kind: input, shape index: {}]
  %s3 = inlined_call_operand.vmem [shape: f32[128,32], index: 3, kind: output, shape index: {}]
  %s4 = sld [smem:[#allocation0]]
  $region22: #{centroid_estimator_forward.17} parent=0
    _
  %s6 = ssub.s32 1, %s4
  %s7 = scalar_select 0, %s6, %s4
  // Predicated region
  $region2: #{centroid_estimator_forward.17} parent=0 // pred_check
    _
  $region3: #{centroid_estimator_forward.17} parent=0 // pred_check_branch
    %9 = sbr.rel (0) target = $region5
  $region4: #{centroid_estimator_forward.17} parent=0 // pred_region
    _
  $region5: #{centroid_estimator_forward.17} parent=0 // pred_fallthru
    _
  // Predicated region
  $region6: #{centroid_estimator_forward.17} parent=0 // pred_check
    _
  $region7: #{centroid_estimator_forward.17} parent=0 // pred_check_branch
    %11 = sbr.rel (0) target = $region9
  $region8: #{centroid_estimator_forward.17} parent=0 // pred_region
    _
  $region9: #{centroid_estimator_forward.17} parent=0 // pred_fallthru
    _
  // Predicated region
  $region10: #{centroid_estimator_forward.17} parent=0 // pred_check
    _
  $region11: #{centroid_estimator_forward.17} parent=0 // pred_check_branch
    %13 = sbr.rel (0) target = $region13
  $region12: #{centroid_estimator_forward.17} parent=0 // pred_region
    _
  $region13: #{centroid_estimator_forward.17} parent=0 // pred_fallthru
    _
  %v14 = vld [vmem:[%s0] sm:$0xff]
  %v15 = vld [vmem:[%s0 + $0x8] sm:$0xff]
  %v16 = vld [vmem:[%s0 + $0x10] sm:$0xff]
  %v17 = vld [vmem:[%s0 + $0x18] sm:$0xff]
  %v18 = vld [vmem:[%s0 + $0x20] sm:$0xff]
  %v19 = vld [vmem:[%s0 + $0x28] sm:$0xff]
  %v20 = vld [vmem:[%s0 + $0x30] sm:$0xff]
  %v21 = vld [vmem:[%s0 + $0x38] sm:$0xff]
  %v22 = vld [vmem:[%s0 + $0x40] sm:$0xff]
  %v23 = vld [vmem:[%s0 + $0x48] sm:$0xff]
  %v24 = vld [vmem:[%s0 + $0x50] sm:$0xff]
  %v25 = vld [vmem:[%s0 + $0x58] sm:$0xff]
  %v26 = vld [vmem:[%s0 + $0x60] sm:$0xff]
  %v27 = vld [vmem:[%s0 + $0x68] sm:$0xff]
  %v28 = vld [vmem:[%s0 + $0x70] sm:$0xff]
  %v29 = vld [vmem:[%s0 + $0x78] sm:$0xff]
  %v30 = vld [vmem:[%s1] sm:$0xff]
  %v31 = vld [vmem:[%s1 + $0x8] sm:$0xff]
  %v32 = vld [vmem:[%s1 + $0x10] sm:$0xff]
  %v33 = vld [vmem:[%s1 + $0x18] sm:$0xff]
  %v34 = vld [vmem:[%s2] sm:$0x1]
  %v36 = vlaneseq
  %v37 = vshrl.u32 %v36, 7
  %v38 = vsub.s32 0, %v37
  %v39 = vrot.slane %v34, %v38
  %vm41 = vcmask 261120
  %v43 = vsel %vm41, %v14, 0
  %v46 = vsel %vm41, %v15, 0
  %v49 = vsel %vm41, %v16, 0
  %v52 = vsel %vm41, %v17, 0
  %v55 = vsel %vm41, %v18, 0
  %v58 = vsel %vm41, %v19, 0
  %v61 = vsel %vm41, %v20, 0
  %v64 = vsel %vm41, %v21, 0
  %v67 = vsel %vm41, %v22, 0
  %v70 = vsel %vm41, %v23, 0
  %v73 = vsel %vm41, %v24, 0
  %v76 = vsel %vm41, %v25, 0
  %v79 = vsel %vm41, %v26, 0
  %v82 = vsel %vm41, %v27, 0
  %v85 = vsel %vm41, %v28, 0
  %v88 = vsel %vm41, %v29, 0
  %90 = vmatprep.subr.mxu0 0.0
  %91 = vmatpush1.msra.mxu0 0.0
  %92 = vmatprep.subr.mxu0 0.0
  %93 = vmatpush1.msra.mxu0 0.0
  %94 = vmatprep.subr.mxu0 0.0
  %95 = vmatpush1.msra.mxu0 0.0
  %96 = vmatprep.subr.mxu0 0.0
  %97 = vmatpush1.msra.mxu0 0.0
  %98 = vmatprep.subr.mxu0 0.0
  %99 = vmatpush1.msra.mxu0 0.0
  %100 = vmatprep.subr.mxu0 0.0
  %101 = vmatpush1.msra.mxu0 0.0
  %102 = vmatprep.subr.mxu0 0.0
  %103 = vmatpush1.msra.mxu0 0.0
  %104 = vmatprep.subr.mxu0 0.0
  %105 = vmatpush1.msra.mxu0 0.0
  %106 = vmatprep.subr.mxu0 0.0
  %107 = vmatpush1.msra.mxu0 0.0
  %108 = vmatprep.subr.mxu0 0.0
  %109 = vmatpush1.msra.mxu0 0.0
  %110 = vmatprep.subr.mxu0 0.0
  %111 = vmatpush1.msra.mxu0 0.0
  %112 = vmatprep.subr.mxu0 0.0
  %113 = vmatpush1.msra.mxu0 0.0
  %114 = vmatprep.subr.mxu0 0.0
  %115 = vmatpush1.msra.mxu0 %v33
  %116 = vmatprep.subr.mxu0 0.0
  %117 = vmatpush1.msra.mxu0 %v32
  %118 = vmatprep.subr.mxu0 0.0
  %119 = vmatpush1.msra.mxu0 %v31
  %120 = vmatprep.subr.mxu0 0.0
  %121 = vmatpush1.msra.mxu0 %v30
  %122 = vmatprep.subr.mxu0 0.0
  %123 = vmatpush2.msra.mxu0 0.0
  %124 = vmatprep.subr.mxu0 0.0
  %125 = vmatpush2.msra.mxu0 0.0
  %126 = vmatprep.subr.mxu0 0.0
  %127 = vmatpush2.msra.mxu0 0.0
  %128 = vmatprep.subr.mxu0 0.0
  %129 = vmatpush2.msra.mxu0 0.0
  %130 = vmatprep.subr.mxu0 0.0
  %131 = vmatpush2.msra.mxu0 0.0
  %132 = vmatprep.subr.mxu0 0.0
  %133 = vmatpush2.msra.mxu0 0.0
  %134 = vmatprep.subr.mxu0 0.0
  %135 = vmatpush2.msra.mxu0 0.0
  %136 = vmatprep.subr.mxu0 0.0
  %137 = vmatpush2.msra.mxu0 0.0
  %138 = vmatprep.subr.mxu0 0.0
  %139 = vmatpush2.msra.mxu0 0.0
  %140 = vmatprep.subr.mxu0 0.0
  %141 = vmatpush2.msra.mxu0 0.0
  %142 = vmatprep.subr.mxu0 0.0
  %143 = vmatpush2.msra.mxu0 0.0
  %144 = vmatprep.subr.mxu0 0.0
  %145 = vmatpush2.msra.mxu0 0.0
  %146 = vmatprep.subr.mxu0 0.0
  %147 = vmatpush2.msra.mxu0 0.0
  %148 = vmatprep.subr.mxu0 0.0
  %149 = vmatpush2.msra.mxu0 0.0
  %150 = vmatprep.subr.mxu0 0.0
  %151 = vmatpush2.msra.mxu0 0.0
  %152 = vmatprep.subr.mxu0 0.0
  %153 = vmatpush2.msra.mxu0 0.0
  %154 = vmatprep.mubr.f32.mxu0 0.0
  %155 = vmatmul.mubr.f32.gmra.mxu0 %v43
  %v156 = vpop.f32.mrf.mxu0
  %v157 = vadd.f32 %v39, %v156
  %v158 = vpop.f32.mrf.mxu0
  %159 = vmatprep.mubr.f32.mxu0 0.0
  %160 = vmatmul.mubr.f32.gmra.mxu0 %v46
  %v161 = vpop.f32.mrf.mxu0
  %v162 = vadd.f32 %v39, %v161
  %v163 = vpop.f32.mrf.mxu0
  %164 = vmatprep.mubr.f32.mxu0 0.0
  %165 = vmatmul.mubr.f32.gmra.mxu0 %v49
  %v166 = vpop.f32.mrf.mxu0
  %v167 = vadd.f32 %v39, %v166
  %v168 = vpop.f32.mrf.mxu0
  %169 = vmatprep.mubr.f32.mxu0 0.0
  %170 = vmatmul.mubr.f32.gmra.mxu0 %v52
  %v171 = vpop.f32.mrf.mxu0
  %v172 = vadd.f32 %v39, %v171
  %v173 = vpop.f32.mrf.mxu0
  %174 = vmatprep.mubr.f32.mxu0 0.0
  %175 = vmatmul.mubr.f32.gmra.mxu0 %v55
  %v176 = vpop.f32.mrf.mxu0
  %v177 = vadd.f32 %v39, %v176
  %v178 = vpop.f32.mrf.mxu0
  %179 = vmatprep.mubr.f32.mxu0 0.0
  %180 = vmatmul.mubr.f32.gmra.mxu0 %v58
  %v181 = vpop.f32.mrf.mxu0
  %v182 = vadd.f32 %v39, %v181
  %v183 = vpop.f32.mrf.mxu0
  %184 = vmatprep.mubr.f32.mxu0 0.0
  %185 = vmatmul.mubr.f32.gmra.mxu0 %v61
  %v186 = vpop.f32.mrf.mxu0
  %v187 = vadd.f32 %v39, %v186
  %v188 = vpop.f32.mrf.mxu0
  %189 = vmatprep.mubr.f32.mxu0 0.0
  %190 = vmatmul.mubr.f32.gmra.mxu0 %v64
  %v191 = vpop.f32.mrf.mxu0
  %v192 = vadd.f32 %v39, %v191
  %v193 = vpop.f32.mrf.mxu0
  %194 = vmatprep.mubr.f32.mxu0 0.0
  %195 = vmatmul.mubr.f32.gmra.mxu0 %v67
  %v196 = vpop.f32.mrf.mxu0
  %v197 = vadd.f32 %v39, %v196
  %v198 = vpop.f32.mrf.mxu0
  %199 = vmatprep.mubr.f32.mxu0 0.0
  %200 = vmatmul.mubr.f32.gmra.mxu0 %v70
  %v201 = vpop.f32.mrf.mxu0
  %v202 = vadd.f32 %v39, %v201
  %v203 = vpop.f32.mrf.mxu0
  %204 = vmatprep.mubr.f32.mxu0 0.0
  %205 = vmatmul.mubr.f32.gmra.mxu0 %v73
  %v206 = vpop.f32.mrf.mxu0
  %v207 = vadd.f32 %v39, %v206
  %v208 = vpop.f32.mrf.mxu0
  %209 = vmatprep.mubr.f32.mxu0 0.0
  %210 = vmatmul.mubr.f32.gmra.mxu0 %v76
  %v211 = vpop.f32.mrf.mxu0
  %v212 = vadd.f32 %v39, %v211
  %v213 = vpop.f32.mrf.mxu0
  %214 = vmatprep.mubr.f32.mxu0 0.0
  %215 = vmatmul.mubr.f32.gmra.mxu0 %v79
  %v216 = vpop.f32.mrf.mxu0
  %v217 = vadd.f32 %v39, %v216
  %v218 = vpop.f32.mrf.mxu0
  %219 = vmatprep.mubr.f32.mxu0 0.0
  %220 = vmatmul.mubr.f32.gmra.mxu0 %v82
  %v221 = vpop.f32.mrf.mxu0
  %v222 = vadd.f32 %v39, %v221
  %v223 = vpop.f32.mrf.mxu0
  %224 = vmatprep.mubr.f32.mxu0 0.0
  %225 = vmatmul.mubr.f32.gmra.mxu0 %v85
  %v226 = vpop.f32.mrf.mxu0
  %v227 = vadd.f32 %v39, %v226
  %v228 = vpop.f32.mrf.mxu0
  %229 = vmatprep.mubr.f32.mxu0 0.0
  %230 = vmatmul.mubr.f32.gmra.mxu0 %v88
  %v231 = vpop.f32.mrf.mxu0
  %v232 = vadd.f32 %v39, %v231
  %v233 = vpop.f32.mrf.mxu0
  %234 = vdwg.mxu0
  %235 = vst.msk [vmem:[%s3] sm:$0xff] %vm41, %v157
  %236 = vst.msk [vmem:[%s3 + $0x8] sm:$0xff] %vm41, %v162
  %237 = vst.msk [vmem:[%s3 + $0x10] sm:$0xff] %vm41, %v167
  %238 = vst.msk [vmem:[%s3 + $0x18] sm:$0xff] %vm41, %v172
  %239 = vst.msk [vmem:[%s3 + $0x20] sm:$0xff] %vm41, %v177
  %240 = vst.msk [vmem:[%s3 + $0x28] sm:$0xff] %vm41, %v182
  %241 = vst.msk [vmem:[%s3 + $0x30] sm:$0xff] %vm41, %v187
  %242 = vst.msk [vmem:[%s3 + $0x38] sm:$0xff] %vm41, %v192
  %243 = vst.msk [vmem:[%s3 + $0x40] sm:$0xff] %vm41, %v197
  %244 = vst.msk [vmem:[%s3 + $0x48] sm:$0xff] %vm41, %v202
  %245 = vst.msk [vmem:[%s3 + $0x50] sm:$0xff] %vm41, %v207
  %246 = vst.msk [vmem:[%s3 + $0x58] sm:$0xff] %vm41, %v212
  %247 = vst.msk [vmem:[%s3 + $0x60] sm:$0xff] %vm41, %v217
  %248 = vst.msk [vmem:[%s3 + $0x68] sm:$0xff] %vm41, %v222
  %249 = vst.msk [vmem:[%s3 + $0x70] sm:$0xff] %vm41, %v227
  %250 = vst.msk [vmem:[%s3 + $0x78] sm:$0xff] %vm41, %v232
  // Predicated region
  $region14: #{centroid_estimator_forward.17} parent=0 // pred_check
    _
  $region15: #{centroid_estimator_forward.17} parent=0 // pred_check_branch
    %252 = sbr.rel (0) target = $region17
  $region16: #{centroid_estimator_forward.17} parent=0 // pred_region
    _
  $region17: #{centroid_estimator_forward.17} parent=0 // pred_fallthru
    _
  // Predicated region
  $region18: #{centroid_estimator_forward.17} parent=0 // pred_check
    _
  $region19: #{centroid_estimator_forward.17} parent=0 // pred_check_branch
    %254 = sbr.rel (0) target = $region21
  $region20: #{centroid_estimator_forward.17} parent=0 // pred_region
    _
  $region21: #{centroid_estimator_forward.17} parent=0 // pred_fallthru
    _

// kernel: centroid_estimator_forward.20
$region0: #{centroid_estimator_forward.20}
  #allocation0 [shape = 'u32[]', space=smem, size = 0x4, offset = 0x4, fixed_abs, tag = 'smem constant byte address 0x4 - core index']
  #allocation1 [shape = 'u32[144,128]{1,0:T(1,128)}', space=vmem, size = 0x12000, scoped, tag = 'internal scratch']
  %s0 = inlined_call_operand.vmem [shape: f32[16,32], index: 0, kind: input, shape index: {}]
  %s1 = inlined_call_operand.vmem [shape: f32[32,32], index: 1, kind: input, shape index: {}]
  %s2 = inlined_call_operand.vmem [shape: f32[1,32], index: 2, kind: input, shape index: {}]
  %s3 = inlined_call_operand.vmem [shape: f32[16,32], index: 3, kind: output, shape index: {}]
  %s4 = sld [smem:[#allocation0]]
  $region22: #{centroid_estimator_forward.20} parent=0
    _
  %s6 = ssub.s32 1, %s4
  %s7 = scalar_select 0, %s6, %s4
  // Predicated region
  $region2: #{centroid_estimator_forward.20} parent=0 // pred_check
    _
  $region3: #{centroid_estimator_forward.20} parent=0 // pred_check_branch
    %9 = sbr.rel (0) target = $region5
  $region4: #{centroid_estimator_forward.20} parent=0 // pred_region
    _
  $region5: #{centroid_estimator_forward.20} parent=0 // pred_fallthru
    _
  // Predicated region
  $region6: #{centroid_estimator_forward.20} parent=0 // pred_check
    _
  $region7: #{centroid_estimator_forward.20} parent=0 // pred_check_branch
    %11 = sbr.rel (0) target = $region9
  $region8: #{centroid_estimator_forward.20} parent=0 // pred_region
    _
  $region9: #{centroid_estimator_forward.20} parent=0 // pred_fallthru
    _
  // Predicated region
  $region10: #{centroid_estimator_forward.20} parent=0 // pred_check
    _
  $region11: #{centroid_estimator_forward.20} parent=0 // pred_check_branch
    %13 = sbr.rel (0) target = $region13
  $region12: #{centroid_estimator_forward.20} parent=0 // pred_region
    _
  $region13: #{centroid_estimator_forward.20} parent=0 // pred_fallthru
    _
  %v14 = vld [vmem:[%s0] sm:$0xff]
  %v15 = vld [vmem:[%s0 + $0x8] sm:$0xff]
  %v16 = vld [vmem:[%s1] sm:$0xff]
  %v17 = vld [vmem:[%s1 + $0x8] sm:$0xff]
  %v18 = vld [vmem:[%s1 + $0x10] sm:$0xff]
  %v19 = vld [vmem:[%s1 + $0x18] sm:$0xff]
  %v20 = vld [vmem:[%s2] sm:$0x1]
  %v22 = vlaneseq
  %v23 = vshrl.u32 %v22, 7
  %v24 = vsub.s32 0, %v23
  %v25 = vrot.slane %v20, %v24
  %vm27 = vcmask 261120
  %v29 = vsel %vm27, %v14, 0
  %v32 = vsel %vm27, %v15, 0
  %34 = vmatprep.subr.mxu0 0.0
  %35 = vmatpush1.msra.mxu0 0.0
  %36 = vmatprep.subr.mxu0 0.0
  %37 = vmatpush1.msra.mxu0 0.0
  %38 = vmatprep.subr.mxu0 0.0
  %39 = vmatpush1.msra.mxu0 0.0
  %40 = vmatprep.subr.mxu0 0.0
  %41 = vmatpush1.msra.mxu0 0.0
  %42 = vmatprep.subr.mxu0 0.0
  %43 = vmatpush1.msra.mxu0 0.0
  %44 = vmatprep.subr.mxu0 0.0
  %45 = vmatpush1.msra.mxu0 0.0
  %46 = vmatprep.subr.mxu0 0.0
  %47 = vmatpush1.msra.mxu0 0.0
  %48 = vmatprep.subr.mxu0 0.0
  %49 = vmatpush1.msra.mxu0 0.0
  %50 = vmatprep.subr.mxu0 0.0
  %51 = vmatpush1.msra.mxu0 0.0
  %52 = vmatprep.subr.mxu0 0.0
  %53 = vmatpush1.msra.mxu0 0.0
  %54 = vmatprep.subr.mxu0 0.0
  %55 = vmatpush1.msra.mxu0 0.0
  %56 = vmatprep.subr.mxu0 0.0
  %57 = vmatpush1.msra.mxu0 0.0
  %58 = vmatprep.subr.mxu0 0.0
  %59 = vmatpush1.msra.mxu0 %v19
  %60 = vmatprep.subr.mxu0 0.0
  %61 = vmatpush1.msra.mxu0 %v18
  %62 = vmatprep.subr.mxu0 0.0
  %63 = vmatpush1.msra.mxu0 %v17
  %64 = vmatprep.subr.mxu0 0.0
  %65 = vmatpush1.msra.mxu0 %v16
  %66 = vmatprep.subr.mxu0 0.0
  %67 = vmatpush2.msra.mxu0 0.0
  %68 = vmatprep.subr.mxu0 0.0
  %69 = vmatpush2.msra.mxu0 0.0
  %70 = vmatprep.subr.mxu0 0.0
  %71 = vmatpush2.msra.mxu0 0.0
  %72 = vmatprep.subr.mxu0 0.0
  %73 = vmatpush2.msra.mxu0 0.0
  %74 = vmatprep.subr.mxu0 0.0
  %75 = vmatpush2.msra.mxu0 0.0
  %76 = vmatprep.subr.mxu0 0.0
  %77 = vmatpush2.msra.mxu0 0.0
  %78 = vmatprep.subr.mxu0 0.0
  %79 = vmatpush2.msra.mxu0 0.0
  %80 = vmatprep.subr.mxu0 0.0
  %81 = vmatpush2.msra.mxu0 0.0
  %82 = vmatprep.subr.mxu0 0.0
  %83 = vmatpush2.msra.mxu0 0.0
  %84 = vmatprep.subr.mxu0 0.0
  %85 = vmatpush2.msra.mxu0 0.0
  %86 = vmatprep.subr.mxu0 0.0
  %87 = vmatpush2.msra.mxu0 0.0
  %88 = vmatprep.subr.mxu0 0.0
  %89 = vmatpush2.msra.mxu0 0.0
  %90 = vmatprep.subr.mxu0 0.0
  %91 = vmatpush2.msra.mxu0 0.0
  %92 = vmatprep.subr.mxu0 0.0
  %93 = vmatpush2.msra.mxu0 0.0
  %94 = vmatprep.subr.mxu0 0.0
  %95 = vmatpush2.msra.mxu0 0.0
  %96 = vmatprep.subr.mxu0 0.0
  %97 = vmatpush2.msra.mxu0 0.0
  %98 = vmatprep.mubr.f32.mxu0 0.0
  %99 = vmatmul.mubr.f32.gmra.mxu0 %v29
  %v100 = vpop.f32.mrf.mxu0
  %v101 = vadd.f32 %v25, %v100
  %v102 = vpop.f32.mrf.mxu0
  %103 = vmatprep.mubr.f32.mxu0 0.0
  %104 = vmatmul.mubr.f32.gmra.mxu0 %v32
  %v105 = vpop.f32.mrf.mxu0
  %v106 = vadd.f32 %v25, %v105
  %v107 = vpop.f32.mrf.mxu0
  %108 = vdwg.mxu0
  %109 = vst.msk [vmem:[%s3] sm:$0xff] %vm27, %v101
  %110 = vst.msk [vmem:[%s3 + $0x8] sm:$0xff] %vm27, %v106
  // Predicated region
  $region14: #{centroid_estimator_forward.20} parent=0 // pred_check
    _
  $region15: #{centroid_estimator_forward.20} parent=0 // pred_check_branch
    %112 = sbr.rel (0) target = $region17
  $region16: #{centroid_estimator_forward.20} parent=0 // pred_region
    _
  $region17: #{centroid_estimator_forward.20} parent=0 // pred_fallthru
    _
  // Predicated region
  $region18: #{centroid_estimator_forward.20} parent=0 // pred_check
    _
  $region19: #{centroid_estimator_forward.20} parent=0 // pred_check_branch
    %114 = sbr.rel (0) target = $region21
  $region20: #{centroid_estimator_forward.20} parent=0 // pred_region
    _
  $region21: #{centroid_estimator_forward.20} parent=0 // pred_fallthru
    _

// kernel: centroid_estimator_forward.23
$region0: #{centroid_estimator_forward.23}
  #allocation0 [shape = 'u32[]', space=smem, size = 0x4, offset = 0x4, fixed_abs, tag = 'smem constant byte address 0x4 - core index']
  #allocation1 [shape = 'u32[144,128]{1,0:T(1,128)}', space=vmem, size = 0x12000, scoped, tag = 'internal scratch']
  %s0 = inlined_call_operand.vmem [shape: f32[16,32], index: 0, kind: input, shape index: {}]
  %s1 = inlined_call_operand.vmem [shape: f32[32,32], index: 1, kind: input, shape index: {}]
  %s2 = inlined_call_operand.vmem [shape: f32[1,32], index: 2, kind: input, shape index: {}]
  %s3 = inlined_call_operand.vmem [shape: f32[32,32], index: 3, kind: input, shape index: {}]
  %s4 = inlined_call_operand.vmem [shape: f32[1,32], index: 4, kind: input, shape index: {}]
  %s5 = inlined_call_operand.vmem [shape: f32[16,32], index: 5, kind: output, shape index: {}]
  %s6 = sld [smem:[#allocation0]]
  $region30: #{centroid_estimator_forward.23} parent=0
    _
  %s8 = ssub.s32 1, %s6
  %s9 = scalar_select 0, %s8, %s6
  // Predicated region
  $region2: #{centroid_estimator_forward.23} parent=0 // pred_check
    _
  $region3: #{centroid_estimator_forward.23} parent=0 // pred_check_branch
    %11 = sbr.rel (0) target = $region5
  $region4: #{centroid_estimator_forward.23} parent=0 // pred_region
    _
  $region5: #{centroid_estimator_forward.23} parent=0 // pred_fallthru
    _
  // Predicated region
  $region6: #{centroid_estimator_forward.23} parent=0 // pred_check
    _
  $region7: #{centroid_estimator_forward.23} parent=0 // pred_check_branch
    %13 = sbr.rel (0) target = $region9
  $region8: #{centroid_estimator_forward.23} parent=0 // pred_region
    _
  $region9: #{centroid_estimator_forward.23} parent=0 // pred_fallthru
    _
  // Predicated region
  $region10: #{centroid_estimator_forward.23} parent=0 // pred_check
    _
  $region11: #{centroid_estimator_forward.23} parent=0 // pred_check_branch
    %15 = sbr.rel (0) target = $region13
  $region12: #{centroid_estimator_forward.23} parent=0 // pred_region
    _
  $region13: #{centroid_estimator_forward.23} parent=0 // pred_fallthru
    _
  // Predicated region
  $region14: #{centroid_estimator_forward.23} parent=0 // pred_check
    _
  $region15: #{centroid_estimator_forward.23} parent=0 // pred_check_branch
    %17 = sbr.rel (0) target = $region17
  $region16: #{centroid_estimator_forward.23} parent=0 // pred_region
    _
  $region17: #{centroid_estimator_forward.23} parent=0 // pred_fallthru
    _
  // Predicated region
  $region18: #{centroid_estimator_forward.23} parent=0 // pred_check
    _
  $region19: #{centroid_estimator_forward.23} parent=0 // pred_check_branch
    %19 = sbr.rel (0) target = $region21
  $region20: #{centroid_estimator_forward.23} parent=0 // pred_region
    _
  $region21: #{centroid_estimator_forward.23} parent=0 // pred_fallthru
    _
  %v20 = vld [vmem:[%s0] sm:$0xff]
  %v21 = vld [vmem:[%s0 + $0x8] sm:$0xff]
  %v22 = vld [vmem:[%s1] sm:$0xff]
  %v23 = vld [vmem:[%s1 + $0x8] sm:$0xff]
  %v24 = vld [vmem:[%s1 + $0x10] sm:$0xff]
  %v25 = vld [vmem:[%s1 + $0x18] sm:$0xff]
  %v26 = vld [vmem:[%s2] sm:$0x1]
  %v28 = vlaneseq
  %v29 = vshrl.u32 %v28, 7
  %v30 = vsub.s32 0, %v29
  %v31 = vrot.slane %v26, %v30
  %vm33 = vcmask 261120
  %v35 = vsel %vm33, %v20, 0
  %v38 = vsel %vm33, %v21, 0
  %40 = vmatprep.subr.mxu0 0.0
  %41 = vmatpush1.msra.mxu0 0.0
  %42 = vmatprep.subr.mxu0 0.0
  %43 = vmatpush1.msra.mxu0 0.0
  %44 = vmatprep.subr.mxu0 0.0
  %45 = vmatpush1.msra.mxu0 0.0
  %46 = vmatprep.subr.mxu0 0.0
  %47 = vmatpush1.msra.mxu0 0.0
  %48 = vmatprep.subr.mxu0 0.0
  %49 = vmatpush1.msra.mxu0 0.0
  %50 = vmatprep.subr.mxu0 0.0
  %51 = vmatpush1.msra.mxu0 0.0
  %52 = vmatprep.subr.mxu0 0.0
  %53 = vmatpush1.msra.mxu0 0.0
  %54 = vmatprep.subr.mxu0 0.0
  %55 = vmatpush1.msra.mxu0 0.0
  %56 = vmatprep.subr.mxu0 0.0
  %57 = vmatpush1.msra.mxu0 0.0
  %58 = vmatprep.subr.mxu0 0.0
  %59 = vmatpush1.msra.mxu0 0.0
  %60 = vmatprep.subr.mxu0 0.0
  %61 = vmatpush1.msra.mxu0 0.0
  %62 = vmatprep.subr.mxu0 0.0
  %63 = vmatpush1.msra.mxu0 0.0
  %64 = vmatprep.subr.mxu0 0.0
  %65 = vmatpush1.msra.mxu0 %v25
  %66 = vmatprep.subr.mxu0 0.0
  %67 = vmatpush1.msra.mxu0 %v24
  %68 = vmatprep.subr.mxu0 0.0
  %69 = vmatpush1.msra.mxu0 %v23
  %70 = vmatprep.subr.mxu0 0.0
  %71 = vmatpush1.msra.mxu0 %v22
  %72 = vmatprep.subr.mxu0 0.0
  %73 = vmatpush2.msra.mxu0 0.0
  %74 = vmatprep.subr.mxu0 0.0
  %75 = vmatpush2.msra.mxu0 0.0
  %76 = vmatprep.subr.mxu0 0.0
  %77 = vmatpush2.msra.mxu0 0.0
  %78 = vmatprep.subr.mxu0 0.0
  %79 = vmatpush2.msra.mxu0 0.0
  %80 = vmatprep.subr.mxu0 0.0
  %81 = vmatpush2.msra.mxu0 0.0
  %82 = vmatprep.subr.mxu0 0.0
  %83 = vmatpush2.msra.mxu0 0.0
  %84 = vmatprep.subr.mxu0 0.0
  %85 = vmatpush2.msra.mxu0 0.0
  %86 = vmatprep.subr.mxu0 0.0
  %87 = vmatpush2.msra.mxu0 0.0
  %88 = vmatprep.subr.mxu0 0.0
  %89 = vmatpush2.msra.mxu0 0.0
  %90 = vmatprep.subr.mxu0 0.0
  %91 = vmatpush2.msra.mxu0 0.0
  %92 = vmatprep.subr.mxu0 0.0
  %93 = vmatpush2.msra.mxu0 0.0
  %94 = vmatprep.subr.mxu0 0.0
  %95 = vmatpush2.msra.mxu0 0.0
  %96 = vmatprep.subr.mxu0 0.0
  %97 = vmatpush2.msra.mxu0 0.0
  %98 = vmatprep.subr.mxu0 0.0
  %99 = vmatpush2.msra.mxu0 0.0
  %100 = vmatprep.subr.mxu0 0.0
  %101 = vmatpush2.msra.mxu0 0.0
  %102 = vmatprep.subr.mxu0 0.0
  %103 = vmatpush2.msra.mxu0 0.0
  %104 = vmatprep.mubr.f32.mxu0 0.0
  %105 = vmatmul.mubr.f32.gmra.mxu0 %v35
  %v106 = vpop.f32.mrf.mxu0
  %v107 = vadd.f32 %v31, %v106
  %v108 = vpop.f32.mrf.mxu0
  %109 = vmatprep.mubr.f32.mxu0 0.0
  %110 = vmatmul.mubr.f32.gmra.mxu0 %v38
  %v111 = vpop.f32.mrf.mxu0
  %v112 = vadd.f32 %v31, %v111
  %v113 = vpop.f32.mrf.mxu0
  %114 = vdwg.mxu0
  %v115 = vmax.f32 %v107, 0.0
  %v116 = vmax.f32 %v112, 0.0
  %v117 = vld [vmem:[%s3] sm:$0xff]
  %v118 = vld [vmem:[%s3 + $0x8] sm:$0xff]
  %v119 = vld [vmem:[%s3 + $0x10] sm:$0xff]
  %v120 = vld [vmem:[%s3 + $0x18] sm:$0xff]
  %v121 = vld [vmem:[%s4] sm:$0x1]
  %v123 = vlaneseq
  %v124 = vshrl.u32 %v123, 7
  %v125 = vsub.s32 0, %v124
  %v126 = vrot.slane %v121, %v125
  %v129 = vsel %vm33, %v115, 0
  %v132 = vsel %vm33, %v116, 0
  %134 = vmatprep.subr.mxu0 0.0
  %135 = vmatpush1.msra.mxu0 0.0
  %136 = vmatprep.subr.mxu0 0.0
  %137 = vmatpush1.msra.mxu0 0.0
  %138 = vmatprep.subr.mxu0 0.0
  %139 = vmatpush1.msra.mxu0 0.0
  %140 = vmatprep.subr.mxu0 0.0
  %141 = vmatpush1.msra.mxu0 0.0
  %142 = vmatprep.subr.mxu0 0.0
  %143 = vmatpush1.msra.mxu0 0.0
  %144 = vmatprep.subr.mxu0 0.0
  %145 = vmatpush1.msra.mxu0 0.0
  %146 = vmatprep.subr.mxu0 0.0
  %147 = vmatpush1.msra.mxu0 0.0
  %148 = vmatprep.subr.mxu0 0.0
  %149 = vmatpush1.msra.mxu0 0.0
  %150 = vmatprep.subr.mxu0 0.0
  %151 = vmatpush1.msra.mxu0 0.0
  %152 = vmatprep.subr.mxu0 0.0
  %153 = vmatpush1.msra.mxu0 0.0
  %154 = vmatprep.subr.mxu0 0.0
  %155 = vmatpush1.msra.mxu0 0.0
  %156 = vmatprep.subr.mxu0 0.0
  %157 = vmatpush1.msra.mxu0 0.0
  %158 = vmatprep.subr.mxu0 0.0
  %159 = vmatpush1.msra.mxu0 %v120
  %160 = vmatprep.subr.mxu0 0.0
  %161 = vmatpush1.msra.mxu0 %v119
  %162 = vmatprep.subr.mxu0 0.0
  %163 = vmatpush1.msra.mxu0 %v118
  %164 = vmatprep.subr.mxu0 0.0
  %165 = vmatpush1.msra.mxu0 %v117
  %166 = vmatprep.subr.mxu0 0.0
  %167 = vmatpush2.msra.mxu0 0.0
  %168 = vmatprep.subr.mxu0 0.0
  %169 = vmatpush2.msra.mxu0 0.0
  %170 = vmatprep.subr.mxu0 0.0
  %171 = vmatpush2.msra.mxu0 0.0
  %172 = vmatprep.subr.mxu0 0.0
  %173 = vmatpush2.msra.mxu0 0.0
  %174 = vmatprep.subr.mxu0 0.0
  %175 = vmatpush2.msra.mxu0 0.0
  %176 = vmatprep.subr.mxu0 0.0
  %177 = vmatpush2.msra.mxu0 0.0
  %178 = vmatprep.subr.mxu0 0.0
  %179 = vmatpush2.msra.mxu0 0.0
  %180 = vmatprep.subr.mxu0 0.0
  %181 = vmatpush2.msra.mxu0 0.0
  %182 = vmatprep.subr.mxu0 0.0
  %183 = vmatpush2.msra.mxu0 0.0
  %184 = vmatprep.subr.mxu0 0.0
  %185 = vmatpush2.msra.mxu0 0.0
  %186 = vmatprep.subr.mxu0 0.0
  %187 = vmatpush2.msra.mxu0 0.0
  %188 = vmatprep.subr.mxu0 0.0
  %189 = vmatpush2.msra.mxu0 0.0
  %190 = vmatprep.subr.mxu0 0.0
  %191 = vmatpush2.msra.mxu0 0.0
  %192 = vmatprep.subr.mxu0 0.0
  %193 = vmatpush2.msra.mxu0 0.0
  %194 = vmatprep.subr.mxu0 0.0
  %195 = vmatpush2.msra.mxu0 0.0
  %196 = vmatprep.subr.mxu0 0.0
  %197 = vmatpush2.msra.mxu0 0.0
  %198 = vmatprep.mubr.f32.mxu0 0.0
  %199 = vmatmul.mubr.f32.gmra.mxu0 %v129
  %v200 = vpop.f32.mrf.mxu0
  %v201 = vadd.f32 %v126, %v200
  %v202 = vpop.f32.mrf.mxu0
  %203 = vmatprep.mubr.f32.mxu0 0.0
  %204 = vmatmul.mubr.f32.gmra.mxu0 %v132
  %v205 = vpop.f32.mrf.mxu0
  %v206 = vadd.f32 %v126, %v205
  %v207 = vpop.f32.mrf.mxu0
  %208 = vdwg.mxu0
  %209 = vst.msk [vmem:[%s5] sm:$0xff] %vm33, %v201
  %210 = vst.msk [vmem:[%s5 + $0x8] sm:$0xff] %vm33, %v206
  // Predicated region
  $region22: #{centroid_estimator_forward.23} parent=0 // pred_check
    _
  $region23: #{centroid_estimator_forward.23} parent=0 // pred_check_branch
    %212 = sbr.rel (0) target = $region25
  $region24: #{centroid_estimator_forward.23} parent=0 // pred_region
    _
  $region25: #{centroid_estimator_forward.23} parent=0 // pred_fallthru
    _
  // Predicated region
  $region26: #{centroid_estimator_forward.23} parent=0 // pred_check
    _
  $region27: #{centroid_estimator_forward.23} parent=0 // pred_check_branch
    %214 = sbr.rel (0) target = $region29
  $region28: #{centroid_estimator_forward.23} parent=0 // pred_region
    _
  $region29: #{centroid_estimator_forward.23} parent=0 // pred_fallthru
    _

// kernel: centroid_estimator_forward.22
$region0: #{centroid_estimator_forward.22}
  #allocation0 [shape = 'u32[]', space=smem, size = 0x4, offset = 0x4, fixed_abs, tag = 'smem constant byte address 0x4 - core index']
  #allocation1 [shape = 'u32[144,128]{1,0:T(1,128)}', space=vmem, size = 0x12000, scoped, tag = 'internal scratch']
  %s0 = inlined_call_operand.vmem [shape: f32[16,32], index: 0, kind: input, shape index: {}]
  %s1 = inlined_call_operand.vmem [shape: f32[16,32], index: 1, kind: input, shape index: {}]
  %s2 = inlined_call_operand.vmem [shape: f32[1,32], index: 2, kind: input, shape index: {}]
  %s3 = inlined_call_operand.vmem [shape: f32[1,32], index: 3, kind: input, shape index: {}]
  %s4 = inlined_call_operand.vmem [shape: f32[1,32], index: 4, kind: input, shape index: {}]
  %s5 = inlined_call_operand.vmem [shape: f32[1,32], index: 5, kind: input, shape index: {}]
  %s6 = inlined_call_operand.vmem [shape: f32[16,32], index: 6, kind: output, shape index: {}]
  %s7 = sld [smem:[#allocation0]]
  $region34: #{centroid_estimator_forward.22} parent=0
    _
  %s9 = ssub.s32 1, %s7
  %s10 = scalar_select 0, %s9, %s7
  // Predicated region
  $region2: #{centroid_estimator_forward.22} parent=0 // pred_check
    _
  $region3: #{centroid_estimator_forward.22} parent=0 // pred_check_branch
    %12 = sbr.rel (0) target = $region5
  $region4: #{centroid_estimator_forward.22} parent=0 // pred_region
    _
  $region5: #{centroid_estimator_forward.22} parent=0 // pred_fallthru
    _
  // Predicated region
  $region6: #{centroid_estimator_forward.22} parent=0 // pred_check
    _
  $region7: #{centroid_estimator_forward.22} parent=0 // pred_check_branch
    %14 = sbr.rel (0) target = $region9
  $region8: #{centroid_estimator_forward.22} parent=0 // pred_region
    _
  $region9: #{centroid_estimator_forward.22} parent=0 // pred_fallthru
    _
  // Predicated region
  $region10: #{centroid_estimator_forward.22} parent=0 // pred_check
    _
  $region11: #{centroid_estimator_forward.22} parent=0 // pred_check_branch
    %16 = sbr.rel (0) target = $region13
  $region12: #{centroid_estimator_forward.22} parent=0 // pred_region
    _
  $region13: #{centroid_estimator_forward.22} parent=0 // pred_fallthru
    _
  // Predicated region
  $region14: #{centroid_estimator_forward.22} parent=0 // pred_check
    _
  $region15: #{centroid_estimator_forward.22} parent=0 // pred_check_branch
    %18 = sbr.rel (0) target = $region17
  $region16: #{centroid_estimator_forward.22} parent=0 // pred_region
    _
  $region17: #{centroid_estimator_forward.22} parent=0 // pred_fallthru
    _
  // Predicated region
  $region18: #{centroid_estimator_forward.22} parent=0 // pred_check
    _
  $region19: #{centroid_estimator_forward.22} parent=0 // pred_check_branch
    %20 = sbr.rel (0) target = $region21
  $region20: #{centroid_estimator_forward.22} parent=0 // pred_region
    _
  $region21: #{centroid_estimator_forward.22} parent=0 // pred_fallthru
    _
  // Predicated region
  $region22: #{centroid_estimator_forward.22} parent=0 // pred_check
    _
  $region23: #{centroid_estimator_forward.22} parent=0 // pred_check_branch
    %22 = sbr.rel (0) target = $region25
  $region24: #{centroid_estimator_forward.22} parent=0 // pred_region
    _
  $region25: #{centroid_estimator_forward.22} parent=0 // pred_fallthru
    _
  %v23 = vld [vmem:[%s0] sm:$0xff]
  %v24 = vld [vmem:[%s0 + $0x8] sm:$0xff]
  %v25 = vld [vmem:[%s1] sm:$0xff]
  %v26 = vld [vmem:[%s1 + $0x8] sm:$0xff]
  %v27 = vadd.f32 %v23, %v25
  %v28 = vadd.f32 %v24, %v26
  %vm29 = vcmask 261120
  %v30 = vsel %vm29, %v27, 0.0
  %v31 = vsel %vm29, %v28, 0.0
  %v32 = vadd.f32 %v30, %v31
  %v33 = vrot.slane %v32, 4
  %v34 = vadd.f32 %v32, %v33
  %v35 = vrot.slane %v34, 2
  %v36 = vadd.f32 %v34, %v35
  %v37 = vrot.slane %v36, 1
  %v38 = vadd.f32 %v36, %v37
  %v39 = vrcp.pop 16.0
  %v40 = vmul.f32 %v38, %v39
  %v41 = vsub.f32 %v27, %v40
  %v42 = vsub.f32 %v28, %v40
  %v43 = vmul.f32 %v41, %v41
  %v44 = vmul.f32 %v42, %v42
  %v45 = vsel %vm29, %v43, 0.0
  %v46 = vsel %vm29, %v44, 0.0
  %v47 = vadd.f32 %v45, %v46
  %v48 = vrot.slane %v47, 4
  %v49 = vadd.f32 %v47, %v48
  %v50 = vrot.slane %v49, 2
  %v51 = vadd.f32 %v49, %v50
  %v52 = vrot.slane %v51, 1
  %v53 = vadd.f32 %v51, %v52
  %v54 = vmul.f32 %v53, %v39
  %v55 = vadd.f32 %v54, 1e-05
  %v56 = vrsqrt.pop %v55
  %v57 = vmul.f32 %v41, %v56
  %v58 = vmul.f32 %v42, %v56
  %v59 = vld [vmem:[%s2] sm:$0x1]
  %v61 = vlaneseq
  %v62 = vshrl.u32 %v61, 7
  %v63 = vsub.s32 0, %v62
  %v64 = vrot.slane %v59, %v63
  %v66 = vmul.f32 %v64, %v57
  %v67 = vmul.f32 %v64, %v58
  %v68 = vld [vmem:[%s3] sm:$0x1]
  %v70 = vlaneseq
  %v71 = vshrl.u32 %v70, 7
  %v72 = vsub.s32 0, %v71
  %v73 = vrot.slane %v68, %v72
  %v75 = vadd.f32 %v66, %v73
  %v76 = vadd.f32 %v67, %v73
  %v77 = vld [vmem:[%s4] sm:$0x1]
  %v79 = vlaneseq
  %v80 = vshrl.u32 %v79, 7
  %v81 = vsub.s32 0, %v80
  %v82 = vrot.slane %v77, %v81
  %v84 = vmul.f32 %v82, %v75
  %v85 = vmul.f32 %v82, %v76
  %v86 = vld [vmem:[%s5] sm:$0x1]
  %v88 = vlaneseq
  %v89 = vshrl.u32 %v88, 7
  %v90 = vsub.s32 0, %v89
  %v91 = vrot.slane %v86, %v90
  %v93 = vadd.f32 %v84, %v91
  %v94 = vadd.f32 %v85, %v91
  %95 = vst.msk [vmem:[%s6] sm:$0xff] %vm29, %v93
  %96 = vst.msk [vmem:[%s6 + $0x8] sm:$0xff] %vm29, %v94
  // Predicated region
  $region26: #{centroid_estimator_forward.22} parent=0 // pred_check
    _
  $region27: #{centroid_estimator_forward.22} parent=0 // pred_check_branch
    %98 = sbr.rel (0) target = $region29
  $region28: #{centroid_estimator_forward.22} parent=0 // pred_region
    _
  $region29: #{centroid_estimator_forward.22} parent=0 // pred_fallthru
    _
  // Predicated region
  $region30: #{centroid_estimator_forward.22} parent=0 // pred_check
    _
  $region31: #{centroid_estimator_forward.22} parent=0 // pred_check_branch
    %100 = sbr.rel (0) target = $region33
  $region32: #{centroid_estimator_forward.22} parent=0 // pred_region
    _
  $region33: #{centroid_estimator_forward.22} parent=0 // pred_fallthru
    _

// kernel: centroid_estimator_forward.31
$region0: #{centroid_estimator_forward.31}
  #allocation0 [shape = 'u32[]', space=smem, size = 0x4, offset = 0x4, fixed_abs, tag = 'smem constant byte address 0x4 - core index']
  #allocation1 [shape = 'u32[144,128]{1,0:T(1,128)}', space=vmem, size = 0x12000, scoped, tag = 'internal scratch']
  %s0 = inlined_call_operand.vmem [shape: f32[16,32], index: 0, kind: input, shape index: {}]
  %s1 = inlined_call_operand.vmem [shape: f32[32,32], index: 1, kind: input, shape index: {}]
  %s2 = inlined_call_operand.vmem [shape: f32[1,32], index: 2, kind: input, shape index: {}]
  %s3 = inlined_call_operand.vmem [shape: f32[32,32], index: 3, kind: input, shape index: {}]
  %s4 = inlined_call_operand.vmem [shape: f32[1,32], index: 4, kind: input, shape index: {}]
  %s5 = inlined_call_operand.hbm [shape: f32[16,32], index: 5, kind: output, shape index: {}]
  %s6 = sld [smem:[#allocation0]]
  $region30: #{centroid_estimator_forward.31} parent=0
    _
  %s8 = ssub.s32 1, %s6
  %s9 = scalar_select 0, %s8, %s6
  $region1: #{centroid_estimator_forward.31} parent=0
    #allocation2 [shape = 'u8[8192]{0}', space=vmem, size = 0x2000, scoped, tag = 'output window, operand 0, single buffered']
    #allocation3 [shape = 's32[1]{0}', space=sflag, size = 0x4, scoped, tag = 'scoped memory for centroid_estimator_forward.31']
    %10 = vsyncpa [#allocation3], 0
    // Predicated region
    $region2: #{centroid_estimator_forward.31} parent=1 // pred_check
      _
    $region3: #{centroid_estimator_forward.31} parent=1 // pred_check_branch
      %12 = sbr.rel (0) target = $region5
    $region4: #{centroid_estimator_forward.31} parent=1 // pred_region
      _
    $region5: #{centroid_estimator_forward.31} parent=1 // pred_fallthru
      _
    // Predicated region
    $region6: #{centroid_estimator_forward.31} parent=1 // pred_check
      _
    $region7: #{centroid_estimator_forward.31} parent=1 // pred_check_branch
      %14 = sbr.rel (0) target = $region9
    $region8: #{centroid_estimator_forward.31} parent=1 // pred_region
      _
    $region9: #{centroid_estimator_forward.31} parent=1 // pred_fallthru
      _
    // Predicated region
    $region10: #{centroid_estimator_forward.31} parent=1 // pred_check
      _
    $region11: #{centroid_estimator_forward.31} parent=1 // pred_check_branch
      %16 = sbr.rel (0) target = $region13
    $region12: #{centroid_estimator_forward.31} parent=1 // pred_region
      _
    $region13: #{centroid_estimator_forward.31} parent=1 // pred_fallthru
      _
    // Predicated region
    $region14: #{centroid_estimator_forward.31} parent=1 // pred_check
      _
    $region15: #{centroid_estimator_forward.31} parent=1 // pred_check_branch
      %18 = sbr.rel (0) target = $region17
    $region16: #{centroid_estimator_forward.31} parent=1 // pred_region
      _
    $region17: #{centroid_estimator_forward.31} parent=1 // pred_fallthru
      _
    // Predicated region
    $region18: #{centroid_estimator_forward.31} parent=1 // pred_check
      _
    $region19: #{centroid_estimator_forward.31} parent=1 // pred_check_branch
      %20 = sbr.rel (0) target = $region21
    $region20: #{centroid_estimator_forward.31} parent=1 // pred_region
      _
    $region21: #{centroid_estimator_forward.31} parent=1 // pred_fallthru
      _
    %v21 = vld [vmem:[%s0] sm:$0xff]
    %v22 = vld [vmem:[%s0 + $0x8] sm:$0xff]
    %v23 = vld [vmem:[%s1] sm:$0xff]
    %v24 = vld [vmem:[%s1 + $0x8] sm:$0xff]
    %v25 = vld [vmem:[%s1 + $0x10] sm:$0xff]
    %v26 = vld [vmem:[%s1 + $0x18] sm:$0xff]
    %v27 = vld [vmem:[%s2] sm:$0x1]
    %v29 = vlaneseq
    %v30 = vshrl.u32 %v29, 7
    %v31 = vsub.s32 0, %v30
    %v32 = vrot.slane %v27, %v31
    %vm34 = vcmask 261120
    %v36 = vsel %vm34, %v21, 0
    %v39 = vsel %vm34, %v22, 0
    %41 = vmatprep.subr.mxu0 0.0
    %42 = vmatpush1.msra.mxu0 0.0
    %43 = vmatprep.subr.mxu0 0.0
    %44 = vmatpush1.msra.mxu0 0.0
    %45 = vmatprep.subr.mxu0 0.0
    %46 = vmatpush1.msra.mxu0 0.0
    %47 = vmatprep.subr.mxu0 0.0
    %48 = vmatpush1.msra.mxu0 0.0
    %49 = vmatprep.subr.mxu0 0.0
    %50 = vmatpush1.msra.mxu0 0.0
    %51 = vmatprep.subr.mxu0 0.0
    %52 = vmatpush1.msra.mxu0 0.0
    %53 = vmatprep.subr.mxu0 0.0
    %54 = vmatpush1.msra.mxu0 0.0
    %55 = vmatprep.subr.mxu0 0.0
    %56 = vmatpush1.msra.mxu0 0.0
    %57 = vmatprep.subr.mxu0 0.0
    %58 = vmatpush1.msra.mxu0 0.0
    %59 = vmatprep.subr.mxu0 0.0
    %60 = vmatpush1.msra.mxu0 0.0
    %61 = vmatprep.subr.mxu0 0.0
    %62 = vmatpush1.msra.mxu0 0.0
    %63 = vmatprep.subr.mxu0 0.0
    %64 = vmatpush1.msra.mxu0 0.0
    %65 = vmatprep.subr.mxu0 0.0
    %66 = vmatpush1.msra.mxu0 %v26
    %67 = vmatprep.subr.mxu0 0.0
    %68 = vmatpush1.msra.mxu0 %v25
    %69 = vmatprep.subr.mxu0 0.0
    %70 = vmatpush1.msra.mxu0 %v24
    %71 = vmatprep.subr.mxu0 0.0
    %72 = vmatpush1.msra.mxu0 %v23
    %73 = vmatprep.subr.mxu0 0.0
    %74 = vmatpush2.msra.mxu0 0.0
    %75 = vmatprep.subr.mxu0 0.0
    %76 = vmatpush2.msra.mxu0 0.0
    %77 = vmatprep.subr.mxu0 0.0
    %78 = vmatpush2.msra.mxu0 0.0
    %79 = vmatprep.subr.mxu0 0.0
    %80 = vmatpush2.msra.mxu0 0.0
    %81 = vmatprep.subr.mxu0 0.0
    %82 = vmatpush2.msra.mxu0 0.0
    %83 = vmatprep.subr.mxu0 0.0
    %84 = vmatpush2.msra.mxu0 0.0
    %85 = vmatprep.subr.mxu0 0.0
    %86 = vmatpush2.msra.mxu0 0.0
    %87 = vmatprep.subr.mxu0 0.0
    %88 = vmatpush2.msra.mxu0 0.0
    %89 = vmatprep.subr.mxu0 0.0
    %90 = vmatpush2.msra.mxu0 0.0
    %91 = vmatprep.subr.mxu0 0.0
    %92 = vmatpush2.msra.mxu0 0.0
    %93 = vmatprep.subr.mxu0 0.0
    %94 = vmatpush2.msra.mxu0 0.0
    %95 = vmatprep.subr.mxu0 0.0
    %96 = vmatpush2.msra.mxu0 0.0
    %97 = vmatprep.subr.mxu0 0.0
    %98 = vmatpush2.msra.mxu0 0.0
    %99 = vmatprep.subr.mxu0 0.0
    %100 = vmatpush2.msra.mxu0 0.0
    %101 = vmatprep.subr.mxu0 0.0
    %102 = vmatpush2.msra.mxu0 0.0
    %103 = vmatprep.subr.mxu0 0.0
    %104 = vmatpush2.msra.mxu0 0.0
    %105 = vmatprep.mubr.f32.mxu0 0.0
    %106 = vmatmul.mubr.f32.gmra.mxu0 %v36
    %v107 = vpop.f32.mrf.mxu0
    %v108 = vadd.f32 %v32, %v107
    %v109 = vpop.f32.mrf.mxu0
    %110 = vmatprep.mubr.f32.mxu0 0.0
    %111 = vmatmul.mubr.f32.gmra.mxu0 %v39
    %v112 = vpop.f32.mrf.mxu0
    %v113 = vadd.f32 %v32, %v112
    %v114 = vpop.f32.mrf.mxu0
    %115 = vdwg.mxu0
    %v116 = vmax.f32 %v108, 0.0
    %v117 = vmax.f32 %v113, 0.0
    %v118 = vld [vmem:[%s3] sm:$0xff]
    %v119 = vld [vmem:[%s3 + $0x8] sm:$0xff]
    %v120 = vld [vmem:[%s3 + $0x10] sm:$0xff]
    %v121 = vld [vmem:[%s3 + $0x18] sm:$0xff]
    %v122 = vld [vmem:[%s4] sm:$0x1]
    %v124 = vlaneseq
    %v125 = vshrl.u32 %v124, 7
    %v126 = vsub.s32 0, %v125
    %v127 = vrot.slane %v122, %v126
    %v130 = vsel %vm34, %v116, 0
    %v133 = vsel %vm34, %v117, 0
    %135 = vmatprep.subr.mxu0 0.0
    %136 = vmatpush1.msra.mxu0 0.0
    %137 = vmatprep.subr.mxu0 0.0
    %138 = vmatpush1.msra.mxu0 0.0
    %139 = vmatprep.subr.mxu0 0.0
    %140 = vmatpush1.msra.mxu0 0.0
    %141 = vmatprep.subr.mxu0 0.0
    %142 = vmatpush1.msra.mxu0 0.0
    %143 = vmatprep.subr.mxu0 0.0
    %144 = vmatpush1.msra.mxu0 0.0
    %145 = vmatprep.subr.mxu0 0.0
    %146 = vmatpush1.msra.mxu0 0.0
    %147 = vmatprep.subr.mxu0 0.0
    %148 = vmatpush1.msra.mxu0 0.0
    %149 = vmatprep.subr.mxu0 0.0
    %150 = vmatpush1.msra.mxu0 0.0
    %151 = vmatprep.subr.mxu0 0.0
    %152 = vmatpush1.msra.mxu0 0.0
    %153 = vmatprep.subr.mxu0 0.0
    %154 = vmatpush1.msra.mxu0 0.0
    %155 = vmatprep.subr.mxu0 0.0
    %156 = vmatpush1.msra.mxu0 0.0
    %157 = vmatprep.subr.mxu0 0.0
    %158 = vmatpush1.msra.mxu0 0.0
    %159 = vmatprep.subr.mxu0 0.0
    %160 = vmatpush1.msra.mxu0 %v121
    %161 = vmatprep.subr.mxu0 0.0
    %162 = vmatpush1.msra.mxu0 %v120
    %163 = vmatprep.subr.mxu0 0.0
    %164 = vmatpush1.msra.mxu0 %v119
    %165 = vmatprep.subr.mxu0 0.0
    %166 = vmatpush1.msra.mxu0 %v118
    %167 = vmatprep.subr.mxu0 0.0
    %168 = vmatpush2.msra.mxu0 0.0
    %169 = vmatprep.subr.mxu0 0.0
    %170 = vmatpush2.msra.mxu0 0.0
    %171 = vmatprep.subr.mxu0 0.0
    %172 = vmatpush2.msra.mxu0 0.0
    %173 = vmatprep.subr.mxu0 0.0
    %174 = vmatpush2.msra.mxu0 0.0
    %175 = vmatprep.subr.mxu0 0.0
    %176 = vmatpush2.msra.mxu0 0.0
    %177 = vmatprep.subr.mxu0 0.0
    %178 = vmatpush2.msra.mxu0 0.0
    %179 = vmatprep.subr.mxu0 0.0
    %180 = vmatpush2.msra.mxu0 0.0
    %181 = vmatprep.subr.mxu0 0.0
    %182 = vmatpush2.msra.mxu0 0.0
    %183 = vmatprep.subr.mxu0 0.0
    %184 = vmatpush2.msra.mxu0 0.0
    %185 = vmatprep.subr.mxu0 0.0
    %186 = vmatpush2.msra.mxu0 0.0
    %187 = vmatprep.subr.mxu0 0.0
    %188 = vmatpush2.msra.mxu0 0.0
    %189 = vmatprep.subr.mxu0 0.0
    %190 = vmatpush2.msra.mxu0 0.0
    %191 = vmatprep.subr.mxu0 0.0
    %192 = vmatpush2.msra.mxu0 0.0
    %193 = vmatprep.subr.mxu0 0.0
    %194 = vmatpush2.msra.mxu0 0.0
    %195 = vmatprep.subr.mxu0 0.0
    %196 = vmatpush2.msra.mxu0 0.0
    %197 = vmatprep.subr.mxu0 0.0
    %198 = vmatpush2.msra.mxu0 0.0
    %199 = vmatprep.mubr.f32.mxu0 0.0
    %200 = vmatmul.mubr.f32.gmra.mxu0 %v130
    %v201 = vpop.f32.mrf.mxu0
    %v202 = vadd.f32 %v127, %v201
    %v203 = vpop.f32.mrf.mxu0
    %204 = vmatprep.mubr.f32.mxu0 0.0
    %205 = vmatmul.mubr.f32.gmra.mxu0 %v133
    %v206 = vpop.f32.mrf.mxu0
    %v207 = vadd.f32 %v127, %v206
    %v208 = vpop.f32.mrf.mxu0
    %209 = vdwg.mxu0
    %210 = vst.msk [vmem:[#allocation2] sm:$0xff] %vm34, %v202
    %211 = vst.msk [vmem:[#allocation2 + $0x8] sm:$0xff] %vm34, %v207
    // Predicated region
    $region22: #{centroid_estimator_forward.31} parent=1 // pred_check
      _
    $region23: #{centroid_estimator_forward.31} parent=1 // pred_check_branch
      %213 = sbr.rel (0) target = $region25
    $region24: #{centroid_estimator_forward.31} parent=1 // pred_region
      %s215 = ssub.s32 256, 256
      %216 = vsyncadd [#allocation3], %s215
      %s217 = sshll.u32 [#allocation2], 4
      %s218 = int_to_ptr.vmem [resolvable:$true] %s217
      %223 = dma.vmem_to_hbm [thread:$0]  %s218, 256, %s5, [#allocation3], 128, 128, 8
    $region25: #{centroid_estimator_forward.31} parent=1 // pred_fallthru
      _
    // Predicated region
    $region26: #{centroid_estimator_forward.31} parent=1 // pred_check
      _
    $region27: #{centroid_estimator_forward.31} parent=1 // pred_check_branch
      %225 = sbr.rel (0) target = $region29
    $region28: #{centroid_estimator_forward.31} parent=1 // pred_region
      %226 = dma.done [#allocation3], 256
    $region29: #{centroid_estimator_forward.31} parent=1 // pred_fallthru
      _
    %227 = vsyncpa [#allocation3], 1

// kernel: centroid_estimator_forward.21
$region0: #{centroid_estimator_forward.21}
  #allocation0 [shape = 'u32[]', space=smem, size = 0x4, offset = 0x4, fixed_abs, tag = 'smem constant byte address 0x4 - core index']
  #allocation1 [shape = 'u32[144,128]{1,0:T(1,128)}', space=vmem, size = 0x12000, scoped, tag = 'internal scratch']
  %s0 = inlined_call_operand.vmem [shape: f32[2,8,32], index: 0, kind: input, shape index: {}]
  %s1 = inlined_call_operand.vmem [shape: f32[32,32], index: 1, kind: input, shape index: {}]
  %s2 = inlined_call_operand.vmem [shape: f32[1,32], index: 2, kind: input, shape index: {}]
  %s3 = inlined_call_operand.vmem [shape: f32[32,32], index: 3, kind: input, shape index: {}]
  %s4 = inlined_call_operand.vmem [shape: f32[1,32], index: 4, kind: input, shape index: {}]
  %s5 = inlined_call_operand.vmem [shape: f32[32,32], index: 5, kind: input, shape index: {}]
  %s6 = inlined_call_operand.vmem [shape: f32[1,32], index: 6, kind: input, shape index: {}]
  %s7 = inlined_call_operand.vmem [shape: f32[32,32], index: 7, kind: input, shape index: {}]
  %s8 = inlined_call_operand.vmem [shape: f32[1,32], index: 8, kind: input, shape index: {}]
  %s9 = inlined_call_operand.vmem [shape: f32[2,8,32], index: 9, kind: output, shape index: {}]
  %s10 = sld [smem:[#allocation0]]
  $region69: #{centroid_estimator_forward.21} parent=0
    _
  %s12 = ssub.s32 1, %s10
  %s13 = scalar_select 0, %s12, %s10
  loop: start=0, step=1, limit=4
  $region2: #{centroid_estimator_forward.21} parent=0 // loop_pre_header
    _
  $region3: #{centroid_estimator_forward.21} parent=0 // loop_header
    %s15 = sphi 0, %s19
    %p16 = scmp.ge.s32.totalorder %s15, 4
    %s25 = sphi 0, %s27
    %s28 = sphi 0, %s25
    %s29 = sphi 0, %s28
    %s45 = sphi 0, %s29
    %s49 = sphi 0, %s49
    %s51 = sphi 0, %s49
    %s52 = sphi 0, %s51
    %s66 = sphi 0, %s52
    %s70 = sphi 0, %s70
    %s72 = sphi 0, %s70
    %s73 = sphi 0, %s72
    %s87 = sphi 0, %s73
    %s91 = sphi 0, %s91
    %s93 = sphi 0, %s91
    %s94 = sphi 0, %s93
    %s108 = sphi 0, %s94
    %s112 = sphi 0, %s112
    %s114 = sphi 0, %s112
    %s115 = sphi 0, %s114
    %s129 = sphi 0, %s115
    %s133 = sphi 0, %s133
    %s135 = sphi 0, %s133
    %s136 = sphi 0, %s135
    %s150 = sphi 0, %s136
    %s154 = sphi 0, %s154
    %s156 = sphi 0, %s154
    %s157 = sphi 0, %s156
    %s171 = sphi 0, %s157
    %s175 = sphi 0, %s175
    %s177 = sphi 0, %s175
    %s178 = sphi 0, %s177
    %s192 = sphi 0, %s178
    %s196 = sphi 0, %s196
    %s198 = sphi 0, %s196
    %s199 = sphi 0, %s198
    %s213 = sphi 0, %s199
    %s219 = sphi 0, %s221
    %s222 = sphi 0, %s219
    %s223 = sphi 0, %s222
    %s239 = sphi 0, %s223
  $region4: #{centroid_estimator_forward.21} parent=0 // loop_header_branch
    %18 = sbr.rel (%p16) target = $region8
  $region5: #{centroid_estimator_forward.21} parent=0 // loop_body
    %s20 = ssub.s32 %s15, 1
    %s21 = ssub.s32 %s15, 2
    %s22 = sadd.s32 %s15, 1
    %s23 = ssub.s32 %s15, %s22
    %p24 = scmp.eq.s32.totalorder %s23, 0
    %s26 = sadd.s32 %s25, 1
    %s27 = scalar_select %p24, %s25, %s26
    %p30 = pneg %p24
    %p31 = scmp.eq.s32.totalorder %s15, 1
    %p32 = por %p30, %p31
    %p33 = scmp.ne.s32.totalorder %s25, %s28
    %p34 = scmp.eq.s32.totalorder %s15, 0
    %p35 = por %p33, %p34
    %p36 = scmp.ne.s32.totalorder %s25, %s28
    %p37 = scmp.eq.s32.totalorder %s20, 1
    %p38 = por %p36, %p37
    %p39 = scmp.ne.s32.totalorder %s28, %s29
    %p40 = scmp.eq.s32.totalorder %s20, 0
    %p41 = por %p39, %p40
    %p42 = scmp.ne.s32.totalorder %s28, %s29
    %p43 = scmp.eq.s32.totalorder %s21, 1
    %p44 = por %p42, %p43
    %p46 = scmp.ne.s32.totalorder %s29, %s45
    %p47 = scmp.eq.s32.totalorder %s21, 0
    %p48 = por %p46, %p47
    %s50 = sadd.s32 %s49, 1
    %p53 = scmp.eq.s32.totalorder %s15, 1
    %p54 = scmp.ne.s32.totalorder %s49, %s51
    %p55 = scmp.eq.s32.totalorder %s15, 0
    %p56 = por %p54, %p55
    %p57 = scmp.ne.s32.totalorder %s49, %s51
    %p58 = scmp.eq.s32.totalorder %s20, 1
    %p59 = por %p57, %p58
    %p60 = scmp.ne.s32.totalorder %s51, %s52
    %p61 = scmp.eq.s32.totalorder %s20, 0
    %p62 = por %p60, %p61
    %p63 = scmp.ne.s32.totalorder %s51, %s52
    %p64 = scmp.eq.s32.totalorder %s21, 1
    %p65 = por %p63, %p64
    %p67 = scmp.ne.s32.totalorder %s52, %s66
    %p68 = scmp.eq.s32.totalorder %s21, 0
    %p69 = por %p67, %p68
    %s71 = sadd.s32 %s70, 1
    %p74 = scmp.eq.s32.totalorder %s15, 1
    %p75 = scmp.ne.s32.totalorder %s70, %s72
    %p76 = scmp.eq.s32.totalorder %s15, 0
    %p77 = por %p75, %p76
    %p78 = scmp.ne.s32.totalorder %s70, %s72
    %p79 = scmp.eq.s32.totalorder %s20, 1
    %p80 = por %p78, %p79
    %p81 = scmp.ne.s32.totalorder %s72, %s73
    %p82 = scmp.eq.s32.totalorder %s20, 0
    %p83 = por %p81, %p82
    %p84 = scmp.ne.s32.totalorder %s72, %s73
    %p85 = scmp.eq.s32.totalorder %s21, 1
    %p86 = por %p84, %p85
    %p88 = scmp.ne.s32.totalorder %s73, %s87
    %p89 = scmp.eq.s32.totalorder %s21, 0
    %p90 = por %p88, %p89
    %s92 = sadd.s32 %s91, 1
    %p95 = scmp.eq.s32.totalorder %s15, 1
    %p96 = scmp.ne.s32.totalorder %s91, %s93
    %p97 = scmp.eq.s32.totalorder %s15, 0
    %p98 = por %p96, %p97
    %p99 = scmp.ne.s32.totalorder %s91, %s93
    %p100 = scmp.eq.s32.totalorder %s20, 1
    %p101 = por %p99, %p100
    %p102 = scmp.ne.s32.totalorder %s93, %s94
    %p103 = scmp.eq.s32.totalorder %s20, 0
    %p104 = por %p102, %p103
    %p105 = scmp.ne.s32.totalorder %s93, %s94
    %p106 = scmp.eq.s32.totalorder %s21, 1
    %p107 = por %p105, %p106
    %p109 = scmp.ne.s32.totalorder %s94, %s108
    %p110 = scmp.eq.s32.totalorder %s21, 0
    %p111 = por %p109, %p110
    %s113 = sadd.s32 %s112, 1
    %p116 = scmp.eq.s32.totalorder %s15, 1
    %p117 = scmp.ne.s32.totalorder %s112, %s114
    %p118 = scmp.eq.s32.totalorder %s15, 0
    %p119 = por %p117, %p118
    %p120 = scmp.ne.s32.totalorder %s112, %s114
    %p121 = scmp.eq.s32.totalorder %s20, 1
    %p122 = por %p120, %p121
    %p123 = scmp.ne.s32.totalorder %s114, %s115
    %p124 = scmp.eq.s32.totalorder %s20, 0
    %p125 = por %p123, %p124
    %p126 = scmp.ne.s32.totalorder %s114, %s115
    %p127 = scmp.eq.s32.totalorder %s21, 1
    %p128 = por %p126, %p127
    %p130 = scmp.ne.s32.totalorder %s115, %s129
    %p131 = scmp.eq.s32.totalorder %s21, 0
    %p132 = por %p130, %p131
    %s134 = sadd.s32 %s133, 1
    %p137 = scmp.eq.s32.totalorder %s15, 1
    %p138 = scmp.ne.s32.totalorder %s133, %s135
    %p139 = scmp.eq.s32.totalorder %s15, 0
    %p140 = por %p138, %p139
    %p141 = scmp.ne.s32.totalorder %s133, %s135
    %p142 = scmp.eq.s32.totalorder %s20, 1
    %p143 = por %p141, %p142
    %p144 = scmp.ne.s32.totalorder %s135, %s136
    %p145 = scmp.eq.s32.totalorder %s20, 0
    %p146 = por %p144, %p145
    %p147 = scmp.ne.s32.totalorder %s135, %s136
    %p148 = scmp.eq.s32.totalorder %s21, 1
    %p149 = por %p147, %p148
    %p151 = scmp.ne.s32.totalorder %s136, %s150
    %p152 = scmp.eq.s32.totalorder %s21, 0
    %p153 = por %p151, %p152
    %s155 = sadd.s32 %s154, 1
    %p158 = scmp.eq.s32.totalorder %s15, 1
    %p159 = scmp.ne.s32.totalorder %s154, %s156
    %p160 = scmp.eq.s32.totalorder %s15, 0
    %p161 = por %p159, %p160
    %p162 = scmp.ne.s32.totalorder %s154, %s156
    %p163 = scmp.eq.s32.totalorder %s20, 1
    %p164 = por %p162, %p163
    %p165 = scmp.ne.s32.totalorder %s156, %s157
    %p166 = scmp.eq.s32.totalorder %s20, 0
    %p167 = por %p165, %p166
    %p168 = scmp.ne.s32.totalorder %s156, %s157
    %p169 = scmp.eq.s32.totalorder %s21, 1
    %p170 = por %p168, %p169
    %p172 = scmp.ne.s32.totalorder %s157, %s171
    %p173 = scmp.eq.s32.totalorder %s21, 0
    %p174 = por %p172, %p173
    %s176 = sadd.s32 %s175, 1
    %p179 = scmp.eq.s32.totalorder %s15, 1
    %p180 = scmp.ne.s32.totalorder %s175, %s177
    %p181 = scmp.eq.s32.totalorder %s15, 0
    %p182 = por %p180, %p181
    %p183 = scmp.ne.s32.totalorder %s175, %s177
    %p184 = scmp.eq.s32.totalorder %s20, 1
    %p185 = por %p183, %p184
    %p186 = scmp.ne.s32.totalorder %s177, %s178
    %p187 = scmp.eq.s32.totalorder %s20, 0
    %p188 = por %p186, %p187
    %p189 = scmp.ne.s32.totalorder %s177, %s178
    %p190 = scmp.eq.s32.totalorder %s21, 1
    %p191 = por %p189, %p190
    %p193 = scmp.ne.s32.totalorder %s178, %s192
    %p194 = scmp.eq.s32.totalorder %s21, 0
    %p195 = por %p193, %p194
    %s197 = sadd.s32 %s196, 1
    %p200 = scmp.eq.s32.totalorder %s15, 1
    %p201 = scmp.ne.s32.totalorder %s196, %s198
    %p202 = scmp.eq.s32.totalorder %s15, 0
    %p203 = por %p201, %p202
    %p204 = scmp.ne.s32.totalorder %s196, %s198
    %p205 = scmp.eq.s32.totalorder %s20, 1
    %p206 = por %p204, %p205
    %p207 = scmp.ne.s32.totalorder %s198, %s199
    %p208 = scmp.eq.s32.totalorder %s20, 0
    %p209 = por %p207, %p208
    %p210 = scmp.ne.s32.totalorder %s198, %s199
    %p211 = scmp.eq.s32.totalorder %s21, 1
    %p212 = por %p210, %p211
    %p214 = scmp.ne.s32.totalorder %s199, %s213
    %p215 = scmp.eq.s32.totalorder %s21, 0
    %p216 = por %p214, %p215
    %s217 = ssub.s32 %s15, %s22
    %p218 = scmp.eq.s32.totalorder %s217, 0
    %s220 = sadd.s32 %s219, 1
    %s221 = scalar_select %p218, %s219, %s220
    %p224 = pneg %p218
    %p225 = scmp.eq.s32.totalorder %s15, 1
    %p226 = por %p224, %p225
    %p227 = scmp.ne.s32.totalorder %s219, %s222
    %p228 = scmp.eq.s32.totalorder %s15, 0
    %p229 = por %p227, %p228
    %p230 = scmp.ne.s32.totalorder %s219, %s222
    %p231 = scmp.eq.s32.totalorder %s20, 1
    %p232 = por %p230, %p231
    %p233 = scmp.ne.s32.totalorder %s222, %s223
    %p234 = scmp.eq.s32.totalorder %s20, 0
    %p235 = por %p233, %p234
    %p236 = scmp.ne.s32.totalorder %s222, %s223
    %p237 = scmp.eq.s32.totalorder %s21, 1
    %p238 = por %p236, %p237
    %p240 = scmp.ne.s32.totalorder %s223, %s239
    %p241 = scmp.eq.s32.totalorder %s21, 0
    %p242 = por %p240, %p241
    %p243 = scmp.le.s32.totalorder 1, %s15
    %p244 = scmp.lt.s32.totalorder %s15, 3
    %p245 = pnand %p243, %p244
    %p246 = pneg %p245
    // Predicated region
    $region9: #{centroid_estimator_forward.21} parent=5 // pred_check
      _
    $region10: #{centroid_estimator_forward.21} parent=5 // pred_check_branch
      %248 = sbr.rel (%p245) target = $region12
    $region11: #{centroid_estimator_forward.21} parent=5 // pred_region
      %s249 = ssub.s32 %s15, 1
      // Predicated region
      $region13: #{centroid_estimator_forward.21} parent=11 // pred_check
        %p250 = pneg %p62
      $region14: #{centroid_estimator_forward.21} parent=11 // pred_check_branch
        %252 = sbr.rel (%p250) target = $region16
      $region15: #{centroid_estimator_forward.21} parent=11 // pred_region
        _
      $region16: #{centroid_estimator_forward.21} parent=11 // pred_fallthru
        _
      // Predicated region
      $region17: #{centroid_estimator_forward.21} parent=11 // pred_check
        %p253 = pneg %p83
      $region18: #{centroid_estimator_forward.21} parent=11 // pred_check_branch
        %255 = sbr.rel (%p253) target = $region20
      $region19: #{centroid_estimator_forward.21} parent=11 // pred_region
        _
      $region20: #{centroid_estimator_forward.21} parent=11 // pred_fallthru
        _
      // Predicated region
      $region21: #{centroid_estimator_forward.21} parent=11 // pred_check
        %p256 = pneg %p104
      $region22: #{centroid_estimator_forward.21} parent=11 // pred_check_branch
        %258 = sbr.rel (%p256) target = $region24
      $region23: #{centroid_estimator_forward.21} parent=11 // pred_region
        _
      $region24: #{centroid_estimator_forward.21} parent=11 // pred_fallthru
        _
      // Predicated region
      $region25: #{centroid_estimator_forward.21} parent=11 // pred_check
        %p259 = pneg %p125
      $region26: #{centroid_estimator_forward.21} parent=11 // pred_check_branch
        %261 = sbr.rel (%p259) target = $region28
      $region27: #{centroid_estimator_forward.21} parent=11 // pred_region
        _
      $region28: #{centroid_estimator_forward.21} parent=11 // pred_fallthru
        _
      // Predicated region
      $region29: #{centroid_estimator_forward.21} parent=11 // pred_check
        %p262 = pneg %p146
      $region30: #{centroid_estimator_forward.21} parent=11 // pred_check_branch
        %264 = sbr.rel (%p262) target = $region32
      $region31: #{centroid_estimator_forward.21} parent=11 // pred_region
        _
      $region32: #{centroid_estimator_forward.21} parent=11 // pred_fallthru
        _
      // Predicated region
      $region33: #{centroid_estimator_forward.21} parent=11 // pred_check
        %p265 = pneg %p167
      $region34: #{centroid_estimator_forward.21} parent=11 // pred_check_branch
        %267 = sbr.rel (%p265) target = $region36
      $region35: #{centroid_estimator_forward.21} parent=11 // pred_region
        _
      $region36: #{centroid_estimator_forward.21} parent=11 // pred_fallthru
        _
      // Predicated region
      $region37: #{centroid_estimator_forward.21} parent=11 // pred_check
        %p268 = pneg %p188
      $region38: #{centroid_estimator_forward.21} parent=11 // pred_check_branch
        %270 = sbr.rel (%p268) target = $region40
      $region39: #{centroid_estimator_forward.21} parent=11 // pred_region
        _
      $region40: #{centroid_estimator_forward.21} parent=11 // pred_fallthru
        _
      // Predicated region
      $region41: #{centroid_estimator_forward.21} parent=11 // pred_check
        %p271 = pneg %p209
      $region42: #{centroid_estimator_forward.21} parent=11 // pred_check_branch
        %273 = sbr.rel (%p271) target = $region44
      $region43: #{centroid_estimator_forward.21} parent=11 // pred_region
        _
      $region44: #{centroid_estimator_forward.21} parent=11 // pred_fallthru
        _
    $region12: #{centroid_estimator_forward.21} parent=5 // pred_fallthru
      _
    %p274 = scmp.lt.s32.totalorder %s15, 2
    // Predicated region
    $region45: #{centroid_estimator_forward.21} parent=5 // pred_check
      %p275 = pneg %p274
    $region46: #{centroid_estimator_forward.21} parent=5 // pred_check_branch
      %277 = sbr.rel (%p275) target = $region48
    $region47: #{centroid_estimator_forward.21} parent=5 // pred_region
      // Predicated region
      $region49: #{centroid_estimator_forward.21} parent=47 // pred_check
        %p278 = pneg %p35
      $region50: #{centroid_estimator_forward.21} parent=47 // pred_check_branch
        %280 = sbr.rel (%p278) target = $region52
      $region51: #{centroid_estimator_forward.21} parent=47 // pred_region
        %p281 = scmp.lt.s32.totalorder %s15, 1
        %s282 = scalar_select %p281, %s15, 1
        %s283 = smul.addr %s282, 8
        %s284 = scalar_lea.vmem %s0, %s283
      $region52: #{centroid_estimator_forward.21} parent=47 // pred_fallthru
        _
    $region48: #{centroid_estimator_forward.21} parent=5 // pred_fallthru
      _
    %p285 = scmp.le.s32.totalorder 1, %s15
    %p286 = scmp.lt.s32.totalorder %s15, 3
    %p287 = pnand %p285, %p286
    %p288 = pneg %p287
    // Predicated region
    $region53: #{centroid_estimator_forward.21} parent=5 // pred_check
      _
    $region54: #{centroid_estimator_forward.21} parent=5 // pred_check_branch
      %290 = sbr.rel (%p287) target = $region56
    $region55: #{centroid_estimator_forward.21} parent=5 // pred_region
      %s291 = ssub.s32 %s15, 1
      %p292 = scmp.lt.s32.totalorder %s20, 1
      %s293 = scalar_select %p292, %s20, 1
      %s294 = smul.addr %s293, 8
      %s295 = scalar_lea.vmem %s0, %s294
      %p296 = pneg %p41
      %p297 = pneg %p38
      %p298 = pneg %p62
      %p299 = pneg %p59
      %p300 = pneg %p83
      %p301 = pneg %p80
      %p302 = pneg %p104
      %p303 = pneg %p101
      %p304 = pneg %p125
      %p305 = pneg %p122
      %p306 = pneg %p146
      %p307 = pneg %p143
      %p308 = pneg %p167
      %p309 = pneg %p164
      %p310 = pneg %p188
      %p311 = pneg %p185
      %p312 = pneg %p209
      %p313 = pneg %p206
      %p314 = pneg %p235
      %p315 = pneg %p232
      %p316 = scmp.lt.s32.totalorder %s20, 1
      %s317 = scalar_select %p316, %s20, 1
      %s318 = smul.addr %s317, 8
      %s319 = scalar_lea.vmem %s9, %s318
      %p320 = scmp.lt.s32.totalorder %s20, 1
      %s321 = scalar_select %p320, %s20, 1
      %s322 = smul.addr %s321, 8
      %s323 = scalar_lea.vmem %s0, %s322
      %p324 = scmp.lt.s32.totalorder %s20, 1
      %s325 = scalar_select %p324, %s20, 1
      %s326 = smul.addr %s325, 8
      %s327 = scalar_lea.vmem %s9, %s326
      %v328 = vld [vmem:[%s323] sm:$0xff]
      %v329 = vld [vmem:[%s1] sm:$0xff]
      %v330 = vld [vmem:[%s1 + $0x8] sm:$0xff]
      %v331 = vld [vmem:[%s1 + $0x10] sm:$0xff]
      %v332 = vld [vmem:[%s1 + $0x18] sm:$0xff]
      %v333 = vld [vmem:[%s2] sm:$0x1]
      %v335 = vlaneseq
      %v336 = vshrl.u32 %v335, 7
      %v337 = vsub.s32 0, %v336
      %v338 = vrot.slane %v333, %v337
      %vm340 = vcmask 261120
      %v342 = vsel %vm340, %v328, 0
      %344 = vmatprep.subr.mxu0 0.0
      %345 = vmatpush1.msra.mxu0 0.0
      %346 = vmatprep.subr.mxu0 0.0
      %347 = vmatpush1.msra.mxu0 0.0
      %348 = vmatprep.subr.mxu0 0.0
      %349 = vmatpush1.msra.mxu0 0.0
      %350 = vmatprep.subr.mxu0 0.0
      %351 = vmatpush1.msra.mxu0 0.0
      %352 = vmatprep.subr.mxu0 0.0
      %353 = vmatpush1.msra.mxu0 0.0
      %354 = vmatprep.subr.mxu0 0.0
      %355 = vmatpush1.msra.mxu0 0.0
      %356 = vmatprep.subr.mxu0 0.0
      %357 = vmatpush1.msra.mxu0 0.0
      %358 = vmatprep.subr.mxu0 0.0
      %359 = vmatpush1.msra.mxu0 0.0
      %360 = vmatprep.subr.mxu0 0.0
      %361 = vmatpush1.msra.mxu0 0.0
      %362 = vmatprep.subr.mxu0 0.0
      %363 = vmatpush1.msra.mxu0 0.0
      %364 = vmatprep.subr.mxu0 0.0
      %365 = vmatpush1.msra.mxu0 0.0
      %366 = vmatprep.subr.mxu0 0.0
      %367 = vmatpush1.msra.mxu0 0.0
      %368 = vmatprep.subr.mxu0 0.0
      %369 = vmatpush1.msra.mxu0 %v332
      %370 = vmatprep.subr.mxu0 0.0
      %371 = vmatpush1.msra.mxu0 %v331
      %372 = vmatprep.subr.mxu0 0.0
      %373 = vmatpush1.msra.mxu0 %v330
      %374 = vmatprep.subr.mxu0 0.0
      %375 = vmatpush1.msra.mxu0 %v329
      %376 = vmatprep.subr.mxu0 0.0
      %377 = vmatpush2.msra.mxu0 0.0
      %378 = vmatprep.subr.mxu0 0.0
      %379 = vmatpush2.msra.mxu0 0.0
      %380 = vmatprep.subr.mxu0 0.0
      %381 = vmatpush2.msra.mxu0 0.0
      %382 = vmatprep.subr.mxu0 0.0
      %383 = vmatpush2.msra.mxu0 0.0
      %384 = vmatprep.subr.mxu0 0.0
      %385 = vmatpush2.msra.mxu0 0.0
      %386 = vmatprep.subr.mxu0 0.0
      %387 = vmatpush2.msra.mxu0 0.0
      %388 = vmatprep.subr.mxu0 0.0
      %389 = vmatpush2.msra.mxu0 0.0
      %390 = vmatprep.subr.mxu0 0.0
      %391 = vmatpush2.msra.mxu0 0.0
      %392 = vmatprep.subr.mxu0 0.0
      %393 = vmatpush2.msra.mxu0 0.0
      %394 = vmatprep.subr.mxu0 0.0
      %395 = vmatpush2.msra.mxu0 0.0
      %396 = vmatprep.subr.mxu0 0.0
      %397 = vmatpush2.msra.mxu0 0.0
      %398 = vmatprep.subr.mxu0 0.0
      %399 = vmatpush2.msra.mxu0 0.0
      %400 = vmatprep.subr.mxu0 0.0
      %401 = vmatpush2.msra.mxu0 0.0
      %402 = vmatprep.subr.mxu0 0.0
      %403 = vmatpush2.msra.mxu0 0.0
      %404 = vmatprep.subr.mxu0 0.0
      %405 = vmatpush2.msra.mxu0 0.0
      %406 = vmatprep.subr.mxu0 0.0
      %407 = vmatpush2.msra.mxu0 0.0
      %408 = vmatprep.mubr.f32.mxu0 0.0
      %409 = vmatmul.mubr.f32.gmra.mxu0 %v342
      %v410 = vpop.f32.mrf.mxu0
      %v411 = vadd.f32 %v338, %v410
      %v412 = vpop.f32.mrf.mxu0
      %413 = vdwg.mxu0
      %v414 = vld [vmem:[%s3] sm:$0xff]
      %v415 = vld [vmem:[%s3 + $0x8] sm:$0xff]
      %v416 = vld [vmem:[%s3 + $0x10] sm:$0xff]
      %v417 = vld [vmem:[%s3 + $0x18] sm:$0xff]
      %v418 = vld [vmem:[%s4] sm:$0x1]
      %v420 = vlaneseq
      %v421 = vshrl.u32 %v420, 7
      %v422 = vsub.s32 0, %v421
      %v423 = vrot.slane %v418, %v422
      %425 = vmatprep.subr.mxu0 0.0
      %426 = vmatpush1.msra.mxu0 0.0
      %427 = vmatprep.subr.mxu0 0.0
      %428 = vmatpush1.msra.mxu0 0.0
      %429 = vmatprep.subr.mxu0 0.0
      %430 = vmatpush1.msra.mxu0 0.0
      %431 = vmatprep.subr.mxu0 0.0
      %432 = vmatpush1.msra.mxu0 0.0
      %433 = vmatprep.subr.mxu0 0.0
      %434 = vmatpush1.msra.mxu0 0.0
      %435 = vmatprep.subr.mxu0 0.0
      %436 = vmatpush1.msra.mxu0 0.0
      %437 = vmatprep.subr.mxu0 0.0
      %438 = vmatpush1.msra.mxu0 0.0
      %439 = vmatprep.subr.mxu0 0.0
      %440 = vmatpush1.msra.mxu0 0.0
      %441 = vmatprep.subr.mxu0 0.0
      %442 = vmatpush1.msra.mxu0 0.0
      %443 = vmatprep.subr.mxu0 0.0
      %444 = vmatpush1.msra.mxu0 0.0
      %445 = vmatprep.subr.mxu0 0.0
      %446 = vmatpush1.msra.mxu0 0.0
      %447 = vmatprep.subr.mxu0 0.0
      %448 = vmatpush1.msra.mxu0 0.0
      %449 = vmatprep.subr.mxu0 0.0
      %450 = vmatpush1.msra.mxu0 %v417
      %451 = vmatprep.subr.mxu0 0.0
      %452 = vmatpush1.msra.mxu0 %v416
      %453 = vmatprep.subr.mxu0 0.0
      %454 = vmatpush1.msra.mxu0 %v415
      %455 = vmatprep.subr.mxu0 0.0
      %456 = vmatpush1.msra.mxu0 %v414
      %457 = vmatprep.subr.mxu0 0.0
      %458 = vmatpush2.msra.mxu0 0.0
      %459 = vmatprep.subr.mxu0 0.0
      %460 = vmatpush2.msra.mxu0 0.0
      %461 = vmatprep.subr.mxu0 0.0
      %462 = vmatpush2.msra.mxu0 0.0
      %463 = vmatprep.subr.mxu0 0.0
      %464 = vmatpush2.msra.mxu0 0.0
      %465 = vmatprep.subr.mxu0 0.0
      %466 = vmatpush2.msra.mxu0 0.0
      %467 = vmatprep.subr.mxu0 0.0
      %468 = vmatpush2.msra.mxu0 0.0
      %469 = vmatprep.subr.mxu0 0.0
      %470 = vmatpush2.msra.mxu0 0.0
      %471 = vmatprep.subr.mxu0 0.0
      %472 = vmatpush2.msra.mxu0 0.0
      %473 = vmatprep.subr.mxu0 0.0
      %474 = vmatpush2.msra.mxu0 0.0
      %475 = vmatprep.subr.mxu0 0.0
      %476 = vmatpush2.msra.mxu0 0.0
      %477 = vmatprep.subr.mxu0 0.0
      %478 = vmatpush2.msra.mxu0 0.0
      %479 = vmatprep.subr.mxu0 0.0
      %480 = vmatpush2.msra.mxu0 0.0
      %481 = vmatprep.subr.mxu0 0.0
      %482 = vmatpush2.msra.mxu0 0.0
      %483 = vmatprep.subr.mxu0 0.0
      %484 = vmatpush2.msra.mxu0 0.0
      %485 = vmatprep.subr.mxu0 0.0
      %486 = vmatpush2.msra.mxu0 0.0
      %487 = vmatprep.subr.mxu0 0.0
      %488 = vmatpush2.msra.mxu0 0.0
      %489 = vmatprep.mubr.f32.mxu0 0.0
      %490 = vmatmul.mubr.f32.gmra.mxu0 %v342
      %v491 = vpop.f32.mrf.mxu0
      %v492 = vadd.f32 %v423, %v491
      %v493 = vpop.f32.mrf.mxu0
      %494 = vdwg.mxu0
      %v495 = vld [vmem:[%s5] sm:$0xff]
      %v496 = vld [vmem:[%s5 + $0x8] sm:$0xff]
      %v497 = vld [vmem:[%s5 + $0x10] sm:$0xff]
      %v498 = vld [vmem:[%s5 + $0x18] sm:$0xff]
      %v499 = vld [vmem:[%s6] sm:$0x1]
      %v501 = vlaneseq
      %v502 = vshrl.u32 %v501, 7
      %v503 = vsub.s32 0, %v502
      %v504 = vrot.slane %v499, %v503
      %506 = vmatprep.subr.mxu0 0.0
      %507 = vmatpush1.msra.mxu0 0.0
      %508 = vmatprep.subr.mxu0 0.0
      %509 = vmatpush1.msra.mxu0 0.0
      %510 = vmatprep.subr.mxu0 0.0
      %511 = vmatpush1.msra.mxu0 0.0
      %512 = vmatprep.subr.mxu0 0.0
      %513 = vmatpush1.msra.mxu0 0.0
      %514 = vmatprep.subr.mxu0 0.0
      %515 = vmatpush1.msra.mxu0 0.0
      %516 = vmatprep.subr.mxu0 0.0
      %517 = vmatpush1.msra.mxu0 0.0
      %518 = vmatprep.subr.mxu0 0.0
      %519 = vmatpush1.msra.mxu0 0.0
      %520 = vmatprep.subr.mxu0 0.0
      %521 = vmatpush1.msra.mxu0 0.0
      %522 = vmatprep.subr.mxu0 0.0
      %523 = vmatpush1.msra.mxu0 0.0
      %524 = vmatprep.subr.mxu0 0.0
      %525 = vmatpush1.msra.mxu0 0.0
      %526 = vmatprep.subr.mxu0 0.0
      %527 = vmatpush1.msra.mxu0 0.0
      %528 = vmatprep.subr.mxu0 0.0
      %529 = vmatpush1.msra.mxu0 0.0
      %530 = vmatprep.subr.mxu0 0.0
      %531 = vmatpush1.msra.mxu0 %v498
      %532 = vmatprep.subr.mxu0 0.0
      %533 = vmatpush1.msra.mxu0 %v497
      %534 = vmatprep.subr.mxu0 0.0
      %535 = vmatpush1.msra.mxu0 %v496
      %536 = vmatprep.subr.mxu0 0.0
      %537 = vmatpush1.msra.mxu0 %v495
      %538 = vmatprep.subr.mxu0 0.0
      %539 = vmatpush2.msra.mxu0 0.0
      %540 = vmatprep.subr.mxu0 0.0
      %541 = vmatpush2.msra.mxu0 0.0
      %542 = vmatprep.subr.mxu0 0.0
      %543 = vmatpush2.msra.mxu0 0.0
      %544 = vmatprep.subr.mxu0 0.0
      %545 = vmatpush2.msra.mxu0 0.0
      %546 = vmatprep.subr.mxu0 0.0
      %547 = vmatpush2.msra.mxu0 0.0
      %548 = vmatprep.subr.mxu0 0.0
      %549 = vmatpush2.msra.mxu0 0.0
      %550 = vmatprep.subr.mxu0 0.0
      %551 = vmatpush2.msra.mxu0 0.0
      %552 = vmatprep.subr.mxu0 0.0
      %553 = vmatpush2.msra.mxu0 0.0
      %554 = vmatprep.subr.mxu0 0.0
      %555 = vmatpush2.msra.mxu0 0.0
      %556 = vmatprep.subr.mxu0 0.0
      %557 = vmatpush2.msra.mxu0 0.0
      %558 = vmatprep.subr.mxu0 0.0
      %559 = vmatpush2.msra.mxu0 0.0
      %560 = vmatprep.subr.mxu0 0.0
      %561 = vmatpush2.msra.mxu0 0.0
      %562 = vmatprep.subr.mxu0 0.0
      %563 = vmatpush2.msra.mxu0 0.0
      %564 = vmatprep.subr.mxu0 0.0
      %565 = vmatpush2.msra.mxu0 0.0
      %566 = vmatprep.subr.mxu0 0.0
      %567 = vmatpush2.msra.mxu0 0.0
      %568 = vmatprep.subr.mxu0 0.0
      %569 = vmatpush2.msra.mxu0 0.0
      %570 = vmatprep.mubr.f32.mxu0 0.0
      %571 = vmatmul.mubr.f32.gmra.mxu0 %v342
      %v572 = vpop.f32.mrf.mxu0
      %v573 = vadd.f32 %v504, %v572
      %v574 = vpop.f32.mrf.mxu0
      %575 = vdwg.mxu0
      %v576 = vld [vmem:[%s7] sm:$0xff]
      %v577 = vld [vmem:[%s7 + $0x8] sm:$0xff]
      %v578 = vld [vmem:[%s7 + $0x10] sm:$0xff]
      %v579 = vld [vmem:[%s7 + $0x18] sm:$0xff]
      %vm580 = vcmask 64512
      %v582 = vsel %vm580, %v411, 0
      %v585 = vsel %vm580, %v492, 0
      %587 = vmatprep.subr.mxu0 0.0
      %588 = vmatpush1.xpose.msra.mxu0 0.0
      %589 = vmatprep.subr.mxu0 0.0
      %590 = vmatpush1.xpose.msra.mxu0 0.0
      %591 = vmatprep.subr.mxu0 0.0
      %592 = vmatpush1.xpose.msra.mxu0 0.0
      %593 = vmatprep.subr.mxu0 0.0
      %594 = vmatpush1.xpose.msra.mxu0 0.0
      %595 = vmatprep.subr.mxu0 0.0
      %596 = vmatpush1.xpose.msra.mxu0 0.0
      %597 = vmatprep.subr.mxu0 0.0
      %598 = vmatpush1.xpose.msra.mxu0 0.0
      %599 = vmatprep.subr.mxu0 0.0
      %600 = vmatpush1.xpose.msra.mxu0 0.0
      %601 = vmatprep.subr.mxu0 0.0
      %602 = vmatpush1.xpose.msra.mxu0 0.0
      %603 = vmatprep.subr.mxu0 0.0
      %604 = vmatpush1.xpose.msra.mxu0 0.0
      %605 = vmatprep.subr.mxu0 0.0
      %606 = vmatpush1.xpose.msra.mxu0 0.0
      %607 = vmatprep.subr.mxu0 0.0
      %608 = vmatpush1.xpose.msra.mxu0 0.0
      %609 = vmatprep.subr.mxu0 0.0
      %610 = vmatpush1.xpose.msra.mxu0 0.0
      %611 = vmatprep.subr.mxu0 0.0
      %612 = vmatpush1.xpose.msra.mxu0 0.0
      %613 = vmatprep.subr.mxu0 0.0
      %614 = vmatpush1.xpose.msra.mxu0 0.0
      %615 = vmatprep.subr.mxu0 0.0
      %616 = vmatpush1.xpose.msra.mxu0 0.0
      %617 = vmatprep.subr.mxu0 0.0
      %618 = vmatpush1.xpose.msra.mxu0 %v585
      %619 = vmatprep.subr.mxu0 0.0
      %620 = vmatpush2.xpose.msra.mxu0 0.0
      %621 = vmatprep.subr.mxu0 0.0
      %622 = vmatpush2.xpose.msra.mxu0 0.0
      %623 = vmatprep.subr.mxu0 0.0
      %624 = vmatpush2.xpose.msra.mxu0 0.0
      %625 = vmatprep.subr.mxu0 0.0
      %626 = vmatpush2.xpose.msra.mxu0 0.0
      %627 = vmatprep.subr.mxu0 0.0
      %628 = vmatpush2.xpose.msra.mxu0 0.0
      %629 = vmatprep.subr.mxu0 0.0
      %630 = vmatpush2.xpose.msra.mxu0 0.0
      %631 = vmatprep.subr.mxu0 0.0
      %632 = vmatpush2.xpose.msra.mxu0 0.0
      %633 = vmatprep.subr.mxu0 0.0
      %634 = vmatpush2.xpose.msra.mxu0 0.0
      %635 = vmatprep.subr.mxu0 0.0
      %636 = vmatpush2.xpose.msra.mxu0 0.0
      %637 = vmatprep.subr.mxu0 0.0
      %638 = vmatpush2.xpose.msra.mxu0 0.0
      %639 = vmatprep.subr.mxu0 0.0
      %640 = vmatpush2.xpose.msra.mxu0 0.0
      %641 = vmatprep.subr.mxu0 0.0
      %642 = vmatpush2.xpose.msra.mxu0 0.0
      %643 = vmatprep.subr.mxu0 0.0
      %644 = vmatpush2.xpose.msra.mxu0 0.0
      %645 = vmatprep.subr.mxu0 0.0
      %646 = vmatpush2.xpose.msra.mxu0 0.0
      %647 = vmatprep.subr.mxu0 0.0
      %648 = vmatpush2.xpose.msra.mxu0 0.0
      %649 = vmatprep.subr.mxu0 0.0
      %650 = vmatpush2.xpose.msra.mxu0 0.0
      %651 = vmatprep.mubr.f32.mxu0 0.0
      %652 = vmatmul.mubr.f32.gmra.mxu0 %v582
      %v653 = vpop.f32.mrf.mxu0
      %v654 = vadd.f32 0.0, %v653
      %v655 = vpop.f32.mrf.mxu0
      %656 = vdwg.mxu0
      %v657 = vmul.f32 %v654, 0.35355338
      %v658 = vsel %vm580, %v657, -inf
      %659 = vmax.xlane.f32.xlu0 %v658
      %v660 = vpop.xlane.xlu0 %659
      %v661 = vsub.f32 %v657, %v660
      %v662 = vmul.f32 %v661, 1.442695
      %v663 = vpow.pop %v662
      %v664 = vsel %vm580, %v663, 0.0
      %665 = vadd.xlane.f32.xlu0 %v664
      %v666 = vpop.xlane.xlu0 %665
      %v667 = vrcp.pop %v666
      %v668 = vmul.f32 %v663, %v667
      %v670 = vsel %vm580, %v668, 0
      %672 = vmatprep.subr.mxu0 0.0
      %673 = vmatpush1.msra.mxu0 0.0
      %674 = vmatprep.subr.mxu0 0.0
      %675 = vmatpush1.msra.mxu0 0.0
      %676 = vmatprep.subr.mxu0 0.0
      %677 = vmatpush1.msra.mxu0 0.0
      %678 = vmatprep.subr.mxu0 0.0
      %679 = vmatpush1.msra.mxu0 0.0
      %680 = vmatprep.subr.mxu0 0.0
      %681 = vmatpush1.msra.mxu0 0.0
      %682 = vmatprep.subr.mxu0 0.0
      %683 = vmatpush1.msra.mxu0 0.0
      %684 = vmatprep.subr.mxu0 0.0
      %685 = vmatpush1.msra.mxu0 0.0
      %686 = vmatprep.subr.mxu0 0.0
      %687 = vmatpush1.msra.mxu0 0.0
      %688 = vmatprep.subr.mxu0 0.0
      %689 = vmatpush1.msra.mxu0 0.0
      %690 = vmatprep.subr.mxu0 0.0
      %691 = vmatpush1.msra.mxu0 0.0
      %692 = vmatprep.subr.mxu0 0.0
      %693 = vmatpush1.msra.mxu0 0.0
      %694 = vmatprep.subr.mxu0 0.0
      %695 = vmatpush1.msra.mxu0 0.0
      %696 = vmatprep.subr.mxu0 0.0
      %697 = vmatpush1.msra.mxu0 0.0
      %698 = vmatprep.subr.mxu0 0.0
      %699 = vmatpush1.msra.mxu0 0.0
      %700 = vmatprep.subr.mxu0 0.0
      %701 = vmatpush1.msra.mxu0 0.0
      %702 = vmatprep.subr.mxu0 0.0
      %703 = vmatpush1.msra.mxu0 %v573
      %704 = vmatprep.subr.mxu0 0.0
      %705 = vmatpush2.msra.mxu0 0.0
      %706 = vmatprep.subr.mxu0 0.0
      %707 = vmatpush2.msra.mxu0 0.0
      %708 = vmatprep.subr.mxu0 0.0
      %709 = vmatpush2.msra.mxu0 0.0
      %710 = vmatprep.subr.mxu0 0.0
      %711 = vmatpush2.msra.mxu0 0.0
      %712 = vmatprep.subr.mxu0 0.0
      %713 = vmatpush2.msra.mxu0 0.0
      %714 = vmatprep.subr.mxu0 0.0
      %715 = vmatpush2.msra.mxu0 0.0
      %716 = vmatprep.subr.mxu0 0.0
      %717 = vmatpush2.msra.mxu0 0.0
      %718 = vmatprep.subr.mxu0 0.0
      %719 = vmatpush2.msra.mxu0 0.0
      %720 = vmatprep.subr.mxu0 0.0
      %721 = vmatpush2.msra.mxu0 0.0
      %722 = vmatprep.subr.mxu0 0.0
      %723 = vmatpush2.msra.mxu0 0.0
      %724 = vmatprep.subr.mxu0 0.0
      %725 = vmatpush2.msra.mxu0 0.0
      %726 = vmatprep.subr.mxu0 0.0
      %727 = vmatpush2.msra.mxu0 0.0
      %728 = vmatprep.subr.mxu0 0.0
      %729 = vmatpush2.msra.mxu0 0.0
      %730 = vmatprep.subr.mxu0 0.0
      %731 = vmatpush2.msra.mxu0 0.0
      %732 = vmatprep.subr.mxu0 0.0
      %733 = vmatpush2.msra.mxu0 0.0
      %734 = vmatprep.subr.mxu0 0.0
      %735 = vmatpush2.msra.mxu0 0.0
      %736 = vmatprep.mubr.f32.mxu0 0.0
      %737 = vmatmul.mubr.f32.gmra.mxu0 %v670
      %v738 = vpop.f32.mrf.mxu0
      %v739 = vadd.f32 0.0, %v738
      %v740 = vpop.f32.mrf.mxu0
      %741 = vdwg.mxu0
      %742 = vrot.lane.b32.xlu0 %v411, 120
      %v743 = vpop.permute.xlu0 %742
      %744 = vrot.lane.b32.xlu0 %v492, 120
      %v745 = vpop.permute.xlu0 %744
      %v746 = vsel %vm580, %v743, 0
      %v748 = vsel %vm580, %v745, 0
      %750 = vmatprep.subr.mxu0 0.0
      %751 = vmatpush1.xpose.msra.mxu0 0.0
      %752 = vmatprep.subr.mxu0 0.0
      %753 = vmatpush1.xpose.msra.mxu0 0.0
      %754 = vmatprep.subr.mxu0 0.0
      %755 = vmatpush1.xpose.msra.mxu0 0.0
      %756 = vmatprep.subr.mxu0 0.0
      %757 = vmatpush1.xpose.msra.mxu0 0.0
      %758 = vmatprep.subr.mxu0 0.0
      %759 = vmatpush1.xpose.msra.mxu0 0.0
      %760 = vmatprep.subr.mxu0 0.0
      %761 = vmatpush1.xpose.msra.mxu0 0.0
      %762 = vmatprep.subr.mxu0 0.0
      %763 = vmatpush1.xpose.msra.mxu0 0.0
      %764 = vmatprep.subr.mxu0 0.0
      %765 = vmatpush1.xpose.msra.mxu0 0.0
      %766 = vmatprep.subr.mxu0 0.0
      %767 = vmatpush1.xpose.msra.mxu0 0.0
      %768 = vmatprep.subr.mxu0 0.0
      %769 = vmatpush1.xpose.msra.mxu0 0.0
      %770 = vmatprep.subr.mxu0 0.0
      %771 = vmatpush1.xpose.msra.mxu0 0.0
      %772 = vmatprep.subr.mxu0 0.0
      %773 = vmatpush1.xpose.msra.mxu0 0.0
      %774 = vmatprep.subr.mxu0 0.0
      %775 = vmatpush1.xpose.msra.mxu0 0.0
      %776 = vmatprep.subr.mxu0 0.0
      %777 = vmatpush1.xpose.msra.mxu0 0.0
      %778 = vmatprep.subr.mxu0 0.0
      %779 = vmatpush1.xpose.msra.mxu0 0.0
      %780 = vmatprep.subr.mxu0 0.0
      %781 = vmatpush1.xpose.msra.mxu0 %v748
      %782 = vmatprep.subr.mxu0 0.0
      %783 = vmatpush2.xpose.msra.mxu0 0.0
      %784 = vmatprep.subr.mxu0 0.0
      %785 = vmatpush2.xpose.msra.mxu0 0.0
      %786 = vmatprep.subr.mxu0 0.0
      %787 = vmatpush2.xpose.msra.mxu0 0.0
      %788 = vmatprep.subr.mxu0 0.0
      %789 = vmatpush2.xpose.msra.mxu0 0.0
      %790 = vmatprep.subr.mxu0 0.0
      %791 = vmatpush2.xpose.msra.mxu0 0.0
      %792 = vmatprep.subr.mxu0 0.0
      %793 = vmatpush2.xpose.msra.mxu0 0.0
      %794 = vmatprep.subr.mxu0 0.0
      %795 = vmatpush2.xpose.msra.mxu0 0.0
      %796 = vmatprep.subr.mxu0 0.0
      %797 = vmatpush2.xpose.msra.mxu0 0.0
      %798 = vmatprep.subr.mxu0 0.0
      %799 = vmatpush2.xpose.msra.mxu0 0.0
      %800 = vmatprep.subr.mxu0 0.0
      %801 = vmatpush2.xpose.msra.mxu0 0.0
      %802 = vmatprep.subr.mxu0 0.0
      %803 = vmatpush2.xpose.msra.mxu0 0.0
      %804 = vmatprep.subr.mxu0 0.0
      %805 = vmatpush2.xpose.msra.mxu0 0.0
      %806 = vmatprep.subr.mxu0 0.0
      %807 = vmatpush2.xpose.msra.mxu0 0.0
      %808 = vmatprep.subr.mxu0 0.0
      %809 = vmatpush2.xpose.msra.mxu0 0.0
      %810 = vmatprep.subr.mxu0 0.0
      %811 = vmatpush2.xpose.msra.mxu0 0.0
      %812 = vmatprep.subr.mxu0 0.0
      %813 = vmatpush2.xpose.msra.mxu0 0.0
      %814 = vmatprep.mubr.f32.mxu0 0.0
      %815 = vmatmul.mubr.f32.gmra.mxu0 %v746
      %v816 = vpop.f32.mrf.mxu0
      %v817 = vadd.f32 0.0, %v816
      %v818 = vpop.f32.mrf.mxu0
      %819 = vdwg.mxu0
      %v820 = vmul.f32 %v817, 0.35355338
      %v821 = vsel %vm580, %v820, -inf
      %822 = vmax.xlane.f32.xlu0 %v821
      %v823 = vpop.xlane.xlu0 %822
      %v824 = vsub.f32 %v820, %v823
      %v825 = vmul.f32 %v824, 1.442695
      %v826 = vpow.pop %v825
      %v827 = vsel %vm580, %v826, 0.0
      %828 = vadd.xlane.f32.xlu0 %v827
      %v829 = vpop.xlane.xlu0 %828
      %v830 = vrcp.pop %v829
      %v831 = vmul.f32 %v826, %v830
      %833 = vrot.lane.b32.xlu0 %v573, 120
      %v834 = vpop.permute.xlu0 %833
      %v837 = vsel %vm580, %v831, 0
      %839 = vmatprep.subr.mxu0 0.0
      %840 = vmatpush1.msra.mxu0 0.0
      %841 = vmatprep.subr.mxu0 0.0
      %842 = vmatpush1.msra.mxu0 0.0
      %843 = vmatprep.subr.mxu0 0.0
      %844 = vmatpush1.msra.mxu0 0.0
      %845 = vmatprep.subr.mxu0 0.0
      %846 = vmatpush1.msra.mxu0 0.0
      %847 = vmatprep.subr.mxu0 0.0
      %848 = vmatpush1.msra.mxu0 0.0
      %849 = vmatprep.subr.mxu0 0.0
      %850 = vmatpush1.msra.mxu0 0.0
      %851 = vmatprep.subr.mxu0 0.0
      %852 = vmatpush1.msra.mxu0 0.0
      %853 = vmatprep.subr.mxu0 0.0
      %854 = vmatpush1.msra.mxu0 0.0
      %855 = vmatprep.subr.mxu0 0.0
      %856 = vmatpush1.msra.mxu0 0.0
      %857 = vmatprep.subr.mxu0 0.0
      %858 = vmatpush1.msra.mxu0 0.0
      %859 = vmatprep.subr.mxu0 0.0
      %860 = vmatpush1.msra.mxu0 0.0
      %861 = vmatprep.subr.mxu0 0.0
      %862 = vmatpush1.msra.mxu0 0.0
      %863 = vmatprep.subr.mxu0 0.0
      %864 = vmatpush1.msra.mxu0 0.0
      %865 = vmatprep.subr.mxu0 0.0
      %866 = vmatpush1.msra.mxu0 0.0
      %867 = vmatprep.subr.mxu0 0.0
      %868 = vmatpush1.msra.mxu0 0.0
      %869 = vmatprep.subr.mxu0 0.0
      %870 = vmatpush1.msra.mxu0 %v834
      %871 = vmatprep.subr.mxu0 0.0
      %872 = vmatpush2.msra.mxu0 0.0
      %873 = vmatprep.subr.mxu0 0.0
      %874 = vmatpush2.msra.mxu0 0.0
      %875 = vmatprep.subr.mxu0 0.0
      %876 = vmatpush2.msra.mxu0 0.0
      %877 = vmatprep.subr.mxu0 0.0
      %878 = vmatpush2.msra.mxu0 0.0
      %879 = vmatprep.subr.mxu0 0.0
      %880 = vmatpush2.msra.mxu0 0.0
      %881 = vmatprep.subr.mxu0 0.0
      %882 = vmatpush2.msra.mxu0 0.0
      %883 = vmatprep.subr.mxu0 0.0
      %884 = vmatpush2.msra.mxu0 0.0
      %885 = vmatprep.subr.mxu0 0.0
      %886 = vmatpush2.msra.mxu0 0.0
      %887 = vmatprep.subr.mxu0 0.0
      %888 = vmatpush2.msra.mxu0 0.0
      %889 = vmatprep.subr.mxu0 0.0
      %890 = vmatpush2.msra.mxu0 0.0
      %891 = vmatprep.subr.mxu0 0.0
      %892 = vmatpush2.msra.mxu0 0.0
      %893 = vmatprep.subr.mxu0 0.0
      %894 = vmatpush2.msra.mxu0 0.0
      %895 = vmatprep.subr.mxu0 0.0
      %896 = vmatpush2.msra.mxu0 0.0
      %897 = vmatprep.subr.mxu0 0.0
      %898 = vmatpush2.msra.mxu0 0.0
      %899 = vmatprep.subr.mxu0 0.0
      %900 = vmatpush2.msra.mxu0 0.0
      %901 = vmatprep.subr.mxu0 0.0
      %902 = vmatpush2.msra.mxu0 0.0
      %903 = vmatprep.mubr.f32.mxu0 0.0
      %904 = vmatmul.mubr.f32.gmra.mxu0 %v837
      %v905 = vpop.f32.mrf.mxu0
      %v906 = vadd.f32 0.0, %v905
      %v907 = vpop.f32.mrf.mxu0
      %908 = vdwg.mxu0
      %v910 = vsel %vm580, %v906, 0
      %912 = vmatprep.subr.mxu0 0.0
      %913 = vmatpush1.msra.mxu0 0.0
      %914 = vmatprep.subr.mxu0 0.0
      %915 = vmatpush1.msra.mxu0 0.0
      %916 = vmatprep.subr.mxu0 0.0
      %917 = vmatpush1.msra.mxu0 0.0
      %918 = vmatprep.subr.mxu0 0.0
      %919 = vmatpush1.msra.mxu0 0.0
      %920 = vmatprep.subr.mxu0 0.0
      %921 = vmatpush1.msra.mxu0 0.0
      %922 = vmatprep.subr.mxu0 0.0
      %923 = vmatpush1.msra.mxu0 0.0
      %924 = vmatprep.subr.mxu0 0.0
      %925 = vmatpush1.msra.mxu0 0.0
      %926 = vmatprep.subr.mxu0 0.0
      %927 = vmatpush1.msra.mxu0 0.0
      %928 = vmatprep.subr.mxu0 0.0
      %929 = vmatpush1.msra.mxu0 0.0
      %930 = vmatprep.subr.mxu0 0.0
      %931 = vmatpush1.msra.mxu0 0.0
      %932 = vmatprep.subr.mxu0 0.0
      %933 = vmatpush1.msra.mxu0 0.0
      %934 = vmatprep.subr.mxu0 0.0
      %935 = vmatpush1.msra.mxu0 0.0
      %936 = vmatprep.subr.mxu0 0.0
      %937 = vmatpush1.msra.mxu0 0.0
      %938 = vmatprep.subr.mxu0 0.0
      %939 = vmatpush1.msra.mxu0 0.0
      %940 = vmatprep.subr.mxu0 0.0
      %941 = vmatpush1.msra.mxu0 0.0
      %942 = vmatprep.subr.mxu0 0.0
      %943 = vmatpush1.msra.mxu0 %v577
      %944 = vmatprep.subr.mxu0 0.0
      %945 = vmatpush2.msra.mxu0 0.0
      %946 = vmatprep.subr.mxu0 0.0
      %947 = vmatpush2.msra.mxu0 0.0
      %948 = vmatprep.subr.mxu0 0.0
      %949 = vmatpush2.msra.mxu0 0.0
      %950 = vmatprep.subr.mxu0 0.0
      %951 = vmatpush2.msra.mxu0 0.0
      %952 = vmatprep.subr.mxu0 0.0
      %953 = vmatpush2.msra.mxu0 0.0
      %954 = vmatprep.subr.mxu0 0.0
      %955 = vmatpush2.msra.mxu0 0.0
      %956 = vmatprep.subr.mxu0 0.0
      %957 = vmatpush2.msra.mxu0 0.0
      %958 = vmatprep.subr.mxu0 0.0
      %959 = vmatpush2.msra.mxu0 0.0
      %960 = vmatprep.subr.mxu0 0.0
      %961 = vmatpush2.msra.mxu0 0.0
      %962 = vmatprep.subr.mxu0 0.0
      %963 = vmatpush2.msra.mxu0 0.0
      %964 = vmatprep.subr.mxu0 0.0
      %965 = vmatpush2.msra.mxu0 0.0
      %966 = vmatprep.subr.mxu0 0.0
      %967 = vmatpush2.msra.mxu0 0.0
      %968 = vmatprep.subr.mxu0 0.0
      %969 = vmatpush2.msra.mxu0 0.0
      %970 = vmatprep.subr.mxu0 0.0
      %971 = vmatpush2.msra.mxu0 0.0
      %972 = vmatprep.subr.mxu0 0.0
      %973 = vmatpush2.msra.mxu0 0.0
      %974 = vmatprep.subr.mxu0 0.0
      %975 = vmatpush2.msra.mxu0 0.0
      %976 = vmatprep.mubr.f32.mxu0 0.0
      %977 = vmatmul.mubr.f32.gmra.mxu0 %v910
      %v978 = vpop.f32.mrf.mxu0
      %v979 = vadd.f32 0.0, %v978
      %v980 = vpop.f32.mrf.mxu0
      %981 = vdwg.mxu0
      %v983 = vsel %vm580, %v739, 0
      %985 = vmatprep.subr.mxu0 0.0
      %986 = vmatpush1.msra.mxu0 0.0
      %987 = vmatprep.subr.mxu0 0.0
      %988 = vmatpush1.msra.mxu0 0.0
      %989 = vmatprep.subr.mxu0 0.0
      %990 = vmatpush1.msra.mxu0 0.0
      %991 = vmatprep.subr.mxu0 0.0
      %992 = vmatpush1.msra.mxu0 0.0
      %993 = vmatprep.subr.mxu0 0.0
      %994 = vmatpush1.msra.mxu0 0.0
      %995 = vmatprep.subr.mxu0 0.0
      %996 = vmatpush1.msra.mxu0 0.0
      %997 = vmatprep.subr.mxu0 0.0
      %998 = vmatpush1.msra.mxu0 0.0
      %999 = vmatprep.subr.mxu0 0.0
      %1000 = vmatpush1.msra.mxu0 0.0
      %1001 = vmatprep.subr.mxu0 0.0
      %1002 = vmatpush1.msra.mxu0 0.0
      %1003 = vmatprep.subr.mxu0 0.0
      %1004 = vmatpush1.msra.mxu0 0.0
      %1005 = vmatprep.subr.mxu0 0.0
      %1006 = vmatpush1.msra.mxu0 0.0
      %1007 = vmatprep.subr.mxu0 0.0
      %1008 = vmatpush1.msra.mxu0 0.0
      %1009 = vmatprep.subr.mxu0 0.0
      %1010 = vmatpush1.msra.mxu0 0.0
      %1011 = vmatprep.subr.mxu0 0.0
      %1012 = vmatpush1.msra.mxu0 0.0
      %1013 = vmatprep.subr.mxu0 0.0
      %1014 = vmatpush1.msra.mxu0 0.0
      %1015 = vmatprep.subr.mxu0 0.0
      %1016 = vmatpush1.msra.mxu0 %v576
      %1017 = vmatprep.subr.mxu0 0.0
      %1018 = vmatpush2.msra.mxu0 0.0
      %1019 = vmatprep.subr.mxu0 0.0
      %1020 = vmatpush2.msra.mxu0 0.0
      %1021 = vmatprep.subr.mxu0 0.0
      %1022 = vmatpush2.msra.mxu0 0.0
      %1023 = vmatprep.subr.mxu0 0.0
      %1024 = vmatpush2.msra.mxu0 0.0
      %1025 = vmatprep.subr.mxu0 0.0
      %1026 = vmatpush2.msra.mxu0 0.0
      %1027 = vmatprep.subr.mxu0 0.0
      %1028 = vmatpush2.msra.mxu0 0.0
      %1029 = vmatprep.subr.mxu0 0.0
      %1030 = vmatpush2.msra.mxu0 0.0
      %1031 = vmatprep.subr.mxu0 0.0
      %1032 = vmatpush2.msra.mxu0 0.0
      %1033 = vmatprep.subr.mxu0 0.0
      %1034 = vmatpush2.msra.mxu0 0.0
      %1035 = vmatprep.subr.mxu0 0.0
      %1036 = vmatpush2.msra.mxu0 0.0
      %1037 = vmatprep.subr.mxu0 0.0
      %1038 = vmatpush2.msra.mxu0 0.0
      %1039 = vmatprep.subr.mxu0 0.0
      %1040 = vmatpush2.msra.mxu0 0.0
      %1041 = vmatprep.subr.mxu0 0.0
      %1042 = vmatpush2.msra.mxu0 0.0
      %1043 = vmatprep.subr.mxu0 0.0
      %1044 = vmatpush2.msra.mxu0 0.0
      %1045 = vmatprep.subr.mxu0 0.0
      %1046 = vmatpush2.msra.mxu0 0.0
      %1047 = vmatprep.subr.mxu0 0.0
      %1048 = vmatpush2.msra.mxu0 0.0
      %1049 = vmatprep.mubr.f32.mxu0 0.0
      %1050 = vmatmul.mubr.f32.gmra.mxu0 %v983
      %v1051 = vpop.f32.mrf.mxu0
      %v1052 = vadd.f32 %v979, %v1051
      %v1053 = vpop.f32.mrf.mxu0
      %1054 = vdwg.mxu0
      %1055 = vrot.lane.b32.xlu0 %v411, 112
      %v1056 = vpop.permute.xlu0 %1055
      %1057 = vrot.lane.b32.xlu0 %v492, 112
      %v1058 = vpop.permute.xlu0 %1057
      %v1059 = vsel %vm580, %v1056, 0
      %v1061 = vsel %vm580, %v1058, 0
      %1063 = vmatprep.subr.mxu0 0.0
      %1064 = vmatpush1.xpose.msra.mxu0 0.0
      %1065 = vmatprep.subr.mxu0 0.0
      %1066 = vmatpush1.xpose.msra.mxu0 0.0
      %1067 = vmatprep.subr.mxu0 0.0
      %1068 = vmatpush1.xpose.msra.mxu0 0.0
      %1069 = vmatprep.subr.mxu0 0.0
      %1070 = vmatpush1.xpose.msra.mxu0 0.0
      %1071 = vmatprep.subr.mxu0 0.0
      %1072 = vmatpush1.xpose.msra.mxu0 0.0
      %1073 = vmatprep.subr.mxu0 0.0
      %1074 = vmatpush1.xpose.msra.mxu0 0.0
      %1075 = vmatprep.subr.mxu0 0.0
      %1076 = vmatpush1.xpose.msra.mxu0 0.0
      %1077 = vmatprep.subr.mxu0 0.0
      %1078 = vmatpush1.xpose.msra.mxu0 0.0
      %1079 = vmatprep.subr.mxu0 0.0
      %1080 = vmatpush1.xpose.msra.mxu0 0.0
      %1081 = vmatprep.subr.mxu0 0.0
      %1082 = vmatpush1.xpose.msra.mxu0 0.0
      %1083 = vmatprep.subr.mxu0 0.0
      %1084 = vmatpush1.xpose.msra.mxu0 0.0
      %1085 = vmatprep.subr.mxu0 0.0
      %1086 = vmatpush1.xpose.msra.mxu0 0.0
      %1087 = vmatprep.subr.mxu0 0.0
      %1088 = vmatpush1.xpose.msra.mxu0 0.0
      %1089 = vmatprep.subr.mxu0 0.0
      %1090 = vmatpush1.xpose.msra.mxu0 0.0
      %1091 = vmatprep.subr.mxu0 0.0
      %1092 = vmatpush1.xpose.msra.mxu0 0.0
      %1093 = vmatprep.subr.mxu0 0.0
      %1094 = vmatpush1.xpose.msra.mxu0 %v1061
      %1095 = vmatprep.subr.mxu0 0.0
      %1096 = vmatpush2.xpose.msra.mxu0 0.0
      %1097 = vmatprep.subr.mxu0 0.0
      %1098 = vmatpush2.xpose.msra.mxu0 0.0
      %1099 = vmatprep.subr.mxu0 0.0
      %1100 = vmatpush2.xpose.msra.mxu0 0.0
      %1101 = vmatprep.subr.mxu0 0.0
      %1102 = vmatpush2.xpose.msra.mxu0 0.0
      %1103 = vmatprep.subr.mxu0 0.0
      %1104 = vmatpush2.xpose.msra.mxu0 0.0
      %1105 = vmatprep.subr.mxu0 0.0
      %1106 = vmatpush2.xpose.msra.mxu0 0.0
      %1107 = vmatprep.subr.mxu0 0.0
      %1108 = vmatpush2.xpose.msra.mxu0 0.0
      %1109 = vmatprep.subr.mxu0 0.0
      %1110 = vmatpush2.xpose.msra.mxu0 0.0
      %1111 = vmatprep.subr.mxu0 0.0
      %1112 = vmatpush2.xpose.msra.mxu0 0.0
      %1113 = vmatprep.subr.mxu0 0.0
      %1114 = vmatpush2.xpose.msra.mxu0 0.0
      %1115 = vmatprep.subr.mxu0 0.0
      %1116 = vmatpush2.xpose.msra.mxu0 0.0
      %1117 = vmatprep.subr.mxu0 0.0
      %1118 = vmatpush2.xpose.msra.mxu0 0.0
      %1119 = vmatprep.subr.mxu0 0.0
      %1120 = vmatpush2.xpose.msra.mxu0 0.0
      %1121 = vmatprep.subr.mxu0 0.0
      %1122 = vmatpush2.xpose.msra.mxu0 0.0
      %1123 = vmatprep.subr.mxu0 0.0
      %1124 = vmatpush2.xpose.msra.mxu0 0.0
      %1125 = vmatprep.subr.mxu0 0.0
      %1126 = vmatpush2.xpose.msra.mxu0 0.0
      %1127 = vmatprep.mubr.f32.mxu0 0.0
      %1128 = vmatmul.mubr.f32.gmra.mxu0 %v1059
      %v1129 = vpop.f32.mrf.mxu0
      %v1130 = vadd.f32 0.0, %v1129
      %v1131 = vpop.f32.mrf.mxu0
      %1132 = vdwg.mxu0
      %v1133 = vmul.f32 %v1130, 0.35355338
      %v1134 = vsel %vm580, %v1133, -inf
      %1135 = vmax.xlane.f32.xlu0 %v1134
      %v1136 = vpop.xlane.xlu0 %1135
      %v1137 = vsub.f32 %v1133, %v1136
      %v1138 = vmul.f32 %v1137, 1.442695
      %v1139 = vpow.pop %v1138
      %v1140 = vsel %vm580, %v1139, 0.0
      %1141 = vadd.xlane.f32.xlu0 %v1140
      %v1142 = vpop.xlane.xlu0 %1141
      %v1143 = vrcp.pop %v1142
      %v1144 = vmul.f32 %v1139, %v1143
      %1145 = vrot.lane.b32.xlu0 %v573, 112
      %v1146 = vpop.permute.xlu0 %1145
      %v1149 = vsel %vm580, %v1144, 0
      %1151 = vmatprep.subr.mxu0 0.0
      %1152 = vmatpush1.msra.mxu0 0.0
      %1153 = vmatprep.subr.mxu0 0.0
      %1154 = vmatpush1.msra.mxu0 0.0
      %1155 = vmatprep.subr.mxu0 0.0
      %1156 = vmatpush1.msra.mxu0 0.0
      %1157 = vmatprep.subr.mxu0 0.0
      %1158 = vmatpush1.msra.mxu0 0.0
      %1159 = vmatprep.subr.mxu0 0.0
      %1160 = vmatpush1.msra.mxu0 0.0
      %1161 = vmatprep.subr.mxu0 0.0
      %1162 = vmatpush1.msra.mxu0 0.0
      %1163 = vmatprep.subr.mxu0 0.0
      %1164 = vmatpush1.msra.mxu0 0.0
      %1165 = vmatprep.subr.mxu0 0.0
      %1166 = vmatpush1.msra.mxu0 0.0
      %1167 = vmatprep.subr.mxu0 0.0
      %1168 = vmatpush1.msra.mxu0 0.0
      %1169 = vmatprep.subr.mxu0 0.0
      %1170 = vmatpush1.msra.mxu0 0.0
      %1171 = vmatprep.subr.mxu0 0.0
      %1172 = vmatpush1.msra.mxu0 0.0
      %1173 = vmatprep.subr.mxu0 0.0
      %1174 = vmatpush1.msra.mxu0 0.0
      %1175 = vmatprep.subr.mxu0 0.0
      %1176 = vmatpush1.msra.mxu0 0.0
      %1177 = vmatprep.subr.mxu0 0.0
      %1178 = vmatpush1.msra.mxu0 0.0
      %1179 = vmatprep.subr.mxu0 0.0
      %1180 = vmatpush1.msra.mxu0 0.0
      %1181 = vmatprep.subr.mxu0 0.0
      %1182 = vmatpush1.msra.mxu0 %v1146
      %1183 = vmatprep.subr.mxu0 0.0
      %1184 = vmatpush2.msra.mxu0 0.0
      %1185 = vmatprep.subr.mxu0 0.0
      %1186 = vmatpush2.msra.mxu0 0.0
      %1187 = vmatprep.subr.mxu0 0.0
      %1188 = vmatpush2.msra.mxu0 0.0
      %1189 = vmatprep.subr.mxu0 0.0
      %1190 = vmatpush2.msra.mxu0 0.0
      %1191 = vmatprep.subr.mxu0 0.0
      %1192 = vmatpush2.msra.mxu0 0.0
      %1193 = vmatprep.subr.mxu0 0.0
      %1194 = vmatpush2.msra.mxu0 0.0
      %1195 = vmatprep.subr.mxu0 0.0
      %1196 = vmatpush2.msra.mxu0 0.0
      %1197 = vmatprep.subr.mxu0 0.0
      %1198 = vmatpush2.msra.mxu0 0.0
      %1199 = vmatprep.subr.mxu0 0.0
      %1200 = vmatpush2.msra.mxu0 0.0
      %1201 = vmatprep.subr.mxu0 0.0
      %1202 = vmatpush2.msra.mxu0 0.0
      %1203 = vmatprep.subr.mxu0 0.0
      %1204 = vmatpush2.msra.mxu0 0.0
      %1205 = vmatprep.subr.mxu0 0.0
      %1206 = vmatpush2.msra.mxu0 0.0
      %1207 = vmatprep.subr.mxu0 0.0
      %1208 = vmatpush2.msra.mxu0 0.0
      %1209 = vmatprep.subr.mxu0 0.0
      %1210 = vmatpush2.msra.mxu0 0.0
      %1211 = vmatprep.subr.mxu0 0.0
      %1212 = vmatpush2.msra.mxu0 0.0
      %1213 = vmatprep.subr.mxu0 0.0
      %1214 = vmatpush2.msra.mxu0 0.0
      %1215 = vmatprep.mubr.f32.mxu0 0.0
      %1216 = vmatmul.mubr.f32.gmra.mxu0 %v1149
      %v1217 = vpop.f32.mrf.mxu0
      %v1218 = vadd.f32 0.0, %v1217
      %v1219 = vpop.f32.mrf.mxu0
      %1220 = vdwg.mxu0
      %v1222 = vsel %vm580, %v1218, 0
      %1224 = vmatprep.subr.mxu0 0.0
      %1225 = vmatpush1.msra.mxu0 0.0
      %1226 = vmatprep.subr.mxu0 0.0
      %1227 = vmatpush1.msra.mxu0 0.0
      %1228 = vmatprep.subr.mxu0 0.0
      %1229 = vmatpush1.msra.mxu0 0.0
      %1230 = vmatprep.subr.mxu0 0.0
      %1231 = vmatpush1.msra.mxu0 0.0
      %1232 = vmatprep.subr.mxu0 0.0
      %1233 = vmatpush1.msra.mxu0 0.0
      %1234 = vmatprep.subr.mxu0 0.0
      %1235 = vmatpush1.msra.mxu0 0.0
      %1236 = vmatprep.subr.mxu0 0.0
      %1237 = vmatpush1.msra.mxu0 0.0
      %1238 = vmatprep.subr.mxu0 0.0
      %1239 = vmatpush1.msra.mxu0 0.0
      %1240 = vmatprep.subr.mxu0 0.0
      %1241 = vmatpush1.msra.mxu0 0.0
      %1242 = vmatprep.subr.mxu0 0.0
      %1243 = vmatpush1.msra.mxu0 0.0
      %1244 = vmatprep.subr.mxu0 0.0
      %1245 = vmatpush1.msra.mxu0 0.0
      %1246 = vmatprep.subr.mxu0 0.0
      %1247 = vmatpush1.msra.mxu0 0.0
      %1248 = vmatprep.subr.mxu0 0.0
      %1249 = vmatpush1.msra.mxu0 0.0
      %1250 = vmatprep.subr.mxu0 0.0
      %1251 = vmatpush1.msra.mxu0 0.0
      %1252 = vmatprep.subr.mxu0 0.0
      %1253 = vmatpush1.msra.mxu0 0.0
      %1254 = vmatprep.subr.mxu0 0.0
      %1255 = vmatpush1.msra.mxu0 %v578
      %1256 = vmatprep.subr.mxu0 0.0
      %1257 = vmatpush2.msra.mxu0 0.0
      %1258 = vmatprep.subr.mxu0 0.0
      %1259 = vmatpush2.msra.mxu0 0.0
      %1260 = vmatprep.subr.mxu0 0.0
      %1261 = vmatpush2.msra.mxu0 0.0
      %1262 = vmatprep.subr.mxu0 0.0
      %1263 = vmatpush2.msra.mxu0 0.0
      %1264 = vmatprep.subr.mxu0 0.0
      %1265 = vmatpush2.msra.mxu0 0.0
      %1266 = vmatprep.subr.mxu0 0.0
      %1267 = vmatpush2.msra.mxu0 0.0
      %1268 = vmatprep.subr.mxu0 0.0
      %1269 = vmatpush2.msra.mxu0 0.0
      %1270 = vmatprep.subr.mxu0 0.0
      %1271 = vmatpush2.msra.mxu0 0.0
      %1272 = vmatprep.subr.mxu0 0.0
      %1273 = vmatpush2.msra.mxu0 0.0
      %1274 = vmatprep.subr.mxu0 0.0
      %1275 = vmatpush2.msra.mxu0 0.0
      %1276 = vmatprep.subr.mxu0 0.0
      %1277 = vmatpush2.msra.mxu0 0.0
      %1278 = vmatprep.subr.mxu0 0.0
      %1279 = vmatpush2.msra.mxu0 0.0
      %1280 = vmatprep.subr.mxu0 0.0
      %1281 = vmatpush2.msra.mxu0 0.0
      %1282 = vmatprep.subr.mxu0 0.0
      %1283 = vmatpush2.msra.mxu0 0.0
      %1284 = vmatprep.subr.mxu0 0.0
      %1285 = vmatpush2.msra.mxu0 0.0
      %1286 = vmatprep.subr.mxu0 0.0
      %1287 = vmatpush2.msra.mxu0 0.0
      %1288 = vmatprep.mubr.f32.mxu0 0.0
      %1289 = vmatmul.mubr.f32.gmra.mxu0 %v1222
      %v1290 = vpop.f32.mrf.mxu0
      %v1291 = vadd.f32 0.0, %v1290
      %v1292 = vpop.f32.mrf.mxu0
      %1293 = vdwg.mxu0
      %v1294 = vadd.f32 %v1052, %v1291
      %1295 = vrot.lane.b32.xlu0 %v411, 104
      %v1296 = vpop.permute.xlu0 %1295
      %1297 = vrot.lane.b32.xlu0 %v492, 104
      %v1298 = vpop.permute.xlu0 %1297
      %v1299 = vsel %vm580, %v1296, 0
      %v1301 = vsel %vm580, %v1298, 0
      %1303 = vmatprep.subr.mxu0 0.0
      %1304 = vmatpush1.xpose.msra.mxu0 0.0
      %1305 = vmatprep.subr.mxu0 0.0
      %1306 = vmatpush1.xpose.msra.mxu0 0.0
      %1307 = vmatprep.subr.mxu0 0.0
      %1308 = vmatpush1.xpose.msra.mxu0 0.0
      %1309 = vmatprep.subr.mxu0 0.0
      %1310 = vmatpush1.xpose.msra.mxu0 0.0
      %1311 = vmatprep.subr.mxu0 0.0
      %1312 = vmatpush1.xpose.msra.mxu0 0.0
      %1313 = vmatprep.subr.mxu0 0.0
      %1314 = vmatpush1.xpose.msra.mxu0 0.0
      %1315 = vmatprep.subr.mxu0 0.0
      %1316 = vmatpush1.xpose.msra.mxu0 0.0
      %1317 = vmatprep.subr.mxu0 0.0
      %1318 = vmatpush1.xpose.msra.mxu0 0.0
      %1319 = vmatprep.subr.mxu0 0.0
      %1320 = vmatpush1.xpose.msra.mxu0 0.0
      %1321 = vmatprep.subr.mxu0 0.0
      %1322 = vmatpush1.xpose.msra.mxu0 0.0
      %1323 = vmatprep.subr.mxu0 0.0
      %1324 = vmatpush1.xpose.msra.mxu0 0.0
      %1325 = vmatprep.subr.mxu0 0.0
      %1326 = vmatpush1.xpose.msra.mxu0 0.0
      %1327 = vmatprep.subr.mxu0 0.0
      %1328 = vmatpush1.xpose.msra.mxu0 0.0
      %1329 = vmatprep.subr.mxu0 0.0
      %1330 = vmatpush1.xpose.msra.mxu0 0.0
      %1331 = vmatprep.subr.mxu0 0.0
      %1332 = vmatpush1.xpose.msra.mxu0 0.0
      %1333 = vmatprep.subr.mxu0 0.0
      %1334 = vmatpush1.xpose.msra.mxu0 %v1301
      %1335 = vmatprep.subr.mxu0 0.0
      %1336 = vmatpush2.xpose.msra.mxu0 0.0
      %1337 = vmatprep.subr.mxu0 0.0
      %1338 = vmatpush2.xpose.msra.mxu0 0.0
      %1339 = vmatprep.subr.mxu0 0.0
      %1340 = vmatpush2.xpose.msra.mxu0 0.0
      %1341 = vmatprep.subr.mxu0 0.0
      %1342 = vmatpush2.xpose.msra.mxu0 0.0
      %1343 = vmatprep.subr.mxu0 0.0
      %1344 = vmatpush2.xpose.msra.mxu0 0.0
      %1345 = vmatprep.subr.mxu0 0.0
      %1346 = vmatpush2.xpose.msra.mxu0 0.0
      %1347 = vmatprep.subr.mxu0 0.0
      %1348 = vmatpush2.xpose.msra.mxu0 0.0
      %1349 = vmatprep.subr.mxu0 0.0
      %1350 = vmatpush2.xpose.msra.mxu0 0.0
      %1351 = vmatprep.subr.mxu0 0.0
      %1352 = vmatpush2.xpose.msra.mxu0 0.0
      %1353 = vmatprep.subr.mxu0 0.0
      %1354 = vmatpush2.xpose.msra.mxu0 0.0
      %1355 = vmatprep.subr.mxu0 0.0
      %1356 = vmatpush2.xpose.msra.mxu0 0.0
      %1357 = vmatprep.subr.mxu0 0.0
      %1358 = vmatpush2.xpose.msra.mxu0 0.0
      %1359 = vmatprep.subr.mxu0 0.0
      %1360 = vmatpush2.xpose.msra.mxu0 0.0
      %1361 = vmatprep.subr.mxu0 0.0
      %1362 = vmatpush2.xpose.msra.mxu0 0.0
      %1363 = vmatprep.subr.mxu0 0.0
      %1364 = vmatpush2.xpose.msra.mxu0 0.0
      %1365 = vmatprep.subr.mxu0 0.0
      %1366 = vmatpush2.xpose.msra.mxu0 0.0
      %1367 = vmatprep.mubr.f32.mxu0 0.0
      %1368 = vmatmul.mubr.f32.gmra.mxu0 %v1299
      %v1369 = vpop.f32.mrf.mxu0
      %v1370 = vadd.f32 0.0, %v1369
      %v1371 = vpop.f32.mrf.mxu0
      %1372 = vdwg.mxu0
      %v1373 = vmul.f32 %v1370, 0.35355338
      %v1374 = vsel %vm580, %v1373, -inf
      %1375 = vmax.xlane.f32.xlu0 %v1374
      %v1376 = vpop.xlane.xlu0 %1375
      %v1377 = vsub.f32 %v1373, %v1376
      %v1378 = vmul.f32 %v1377, 1.442695
      %v1379 = vpow.pop %v1378
      %v1380 = vsel %vm580, %v1379, 0.0
      %1381 = vadd.xlane.f32.xlu0 %v1380
      %v1382 = vpop.xlane.xlu0 %1381
      %v1383 = vrcp.pop %v1382
      %v1384 = vmul.f32 %v1379, %v1383
      %1385 = vrot.lane.b32.xlu0 %v573, 104
      %v1386 = vpop.permute.xlu0 %1385
      %v1389 = vsel %vm580, %v1384, 0
      %1391 = vmatprep.subr.mxu0 0.0
      %1392 = vmatpush1.msra.mxu0 0.0
      %1393 = vmatprep.subr.mxu0 0.0
      %1394 = vmatpush1.msra.mxu0 0.0
      %1395 = vmatprep.subr.mxu0 0.0
      %1396 = vmatpush1.msra.mxu0 0.0
      %1397 = vmatprep.subr.mxu0 0.0
      %1398 = vmatpush1.msra.mxu0 0.0
      %1399 = vmatprep.subr.mxu0 0.0
      %1400 = vmatpush1.msra.mxu0 0.0
      %1401 = vmatprep.subr.mxu0 0.0
      %1402 = vmatpush1.msra.mxu0 0.0
      %1403 = vmatprep.subr.mxu0 0.0
      %1404 = vmatpush1.msra.mxu0 0.0
      %1405 = vmatprep.subr.mxu0 0.0
      %1406 = vmatpush1.msra.mxu0 0.0
      %1407 = vmatprep.subr.mxu0 0.0
      %1408 = vmatpush1.msra.mxu0 0.0
      %1409 = vmatprep.subr.mxu0 0.0
      %1410 = vmatpush1.msra.mxu0 0.0
      %1411 = vmatprep.subr.mxu0 0.0
      %1412 = vmatpush1.msra.mxu0 0.0
      %1413 = vmatprep.subr.mxu0 0.0
      %1414 = vmatpush1.msra.mxu0 0.0
      %1415 = vmatprep.subr.mxu0 0.0
      %1416 = vmatpush1.msra.mxu0 0.0
      %1417 = vmatprep.subr.mxu0 0.0
      %1418 = vmatpush1.msra.mxu0 0.0
      %1419 = vmatprep.subr.mxu0 0.0
      %1420 = vmatpush1.msra.mxu0 0.0
      %1421 = vmatprep.subr.mxu0 0.0
      %1422 = vmatpush1.msra.mxu0 %v1386
      %1423 = vmatprep.subr.mxu0 0.0
      %1424 = vmatpush2.msra.mxu0 0.0
      %1425 = vmatprep.subr.mxu0 0.0
      %1426 = vmatpush2.msra.mxu0 0.0
      %1427 = vmatprep.subr.mxu0 0.0
      %1428 = vmatpush2.msra.mxu0 0.0
      %1429 = vmatprep.subr.mxu0 0.0
      %1430 = vmatpush2.msra.mxu0 0.0
      %1431 = vmatprep.subr.mxu0 0.0
      %1432 = vmatpush2.msra.mxu0 0.0
      %1433 = vmatprep.subr.mxu0 0.0
      %1434 = vmatpush2.msra.mxu0 0.0
      %1435 = vmatprep.subr.mxu0 0.0
      %1436 = vmatpush2.msra.mxu0 0.0
      %1437 = vmatprep.subr.mxu0 0.0
      %1438 = vmatpush2.msra.mxu0 0.0
      %1439 = vmatprep.subr.mxu0 0.0
      %1440 = vmatpush2.msra.mxu0 0.0
      %1441 = vmatprep.subr.mxu0 0.0
      %1442 = vmatpush2.msra.mxu0 0.0
      %1443 = vmatprep.subr.mxu0 0.0
      %1444 = vmatpush2.msra.mxu0 0.0
      %1445 = vmatprep.subr.mxu0 0.0
      %1446 = vmatpush2.msra.mxu0 0.0
      %1447 = vmatprep.subr.mxu0 0.0
      %1448 = vmatpush2.msra.mxu0 0.0
      %1449 = vmatprep.subr.mxu0 0.0
      %1450 = vmatpush2.msra.mxu0 0.0
      %1451 = vmatprep.subr.mxu0 0.0
      %1452 = vmatpush2.msra.mxu0 0.0
      %1453 = vmatprep.subr.mxu0 0.0
      %1454 = vmatpush2.msra.mxu0 0.0
      %1455 = vmatprep.mubr.f32.mxu0 0.0
      %1456 = vmatmul.mubr.f32.gmra.mxu0 %v1389
      %v1457 = vpop.f32.mrf.mxu0
      %v1458 = vadd.f32 0.0, %v1457
      %v1459 = vpop.f32.mrf.mxu0
      %1460 = vdwg.mxu0
      %v1462 = vsel %vm580, %v1458, 0
      %1464 = vmatprep.subr.mxu0 0.0
      %1465 = vmatpush1.msra.mxu0 0.0
      %1466 = vmatprep.subr.mxu0 0.0
      %1467 = vmatpush1.msra.mxu0 0.0
      %1468 = vmatprep.subr.mxu0 0.0
      %1469 = vmatpush1.msra.mxu0 0.0
      %1470 = vmatprep.subr.mxu0 0.0
      %1471 = vmatpush1.msra.mxu0 0.0
      %1472 = vmatprep.subr.mxu0 0.0
      %1473 = vmatpush1.msra.mxu0 0.0
      %1474 = vmatprep.subr.mxu0 0.0
      %1475 = vmatpush1.msra.mxu0 0.0
      %1476 = vmatprep.subr.mxu0 0.0
      %1477 = vmatpush1.msra.mxu0 0.0
      %1478 = vmatprep.subr.mxu0 0.0
      %1479 = vmatpush1.msra.mxu0 0.0
      %1480 = vmatprep.subr.mxu0 0.0
      %1481 = vmatpush1.msra.mxu0 0.0
      %1482 = vmatprep.subr.mxu0 0.0
      %1483 = vmatpush1.msra.mxu0 0.0
      %1484 = vmatprep.subr.mxu0 0.0
      %1485 = vmatpush1.msra.mxu0 0.0
      %1486 = vmatprep.subr.mxu0 0.0
      %1487 = vmatpush1.msra.mxu0 0.0
      %1488 = vmatprep.subr.mxu0 0.0
      %1489 = vmatpush1.msra.mxu0 0.0
      %1490 = vmatprep.subr.mxu0 0.0
      %1491 = vmatpush1.msra.mxu0 0.0
      %1492 = vmatprep.subr.mxu0 0.0
      %1493 = vmatpush1.msra.mxu0 0.0
      %1494 = vmatprep.subr.mxu0 0.0
      %1495 = vmatpush1.msra.mxu0 %v579
      %1496 = vmatprep.subr.mxu0 0.0
      %1497 = vmatpush2.msra.mxu0 0.0
      %1498 = vmatprep.subr.mxu0 0.0
      %1499 = vmatpush2.msra.mxu0 0.0
      %1500 = vmatprep.subr.mxu0 0.0
      %1501 = vmatpush2.msra.mxu0 0.0
      %1502 = vmatprep.subr.mxu0 0.0
      %1503 = vmatpush2.msra.mxu0 0.0
      %1504 = vmatprep.subr.mxu0 0.0
      %1505 = vmatpush2.msra.mxu0 0.0
      %1506 = vmatprep.subr.mxu0 0.0
      %1507 = vmatpush2.msra.mxu0 0.0
      %1508 = vmatprep.subr.mxu0 0.0
      %1509 = vmatpush2.msra.mxu0 0.0
      %1510 = vmatprep.subr.mxu0 0.0
      %1511 = vmatpush2.msra.mxu0 0.0
      %1512 = vmatprep.subr.mxu0 0.0
      %1513 = vmatpush2.msra.mxu0 0.0
      %1514 = vmatprep.subr.mxu0 0.0
      %1515 = vmatpush2.msra.mxu0 0.0
      %1516 = vmatprep.subr.mxu0 0.0
      %1517 = vmatpush2.msra.mxu0 0.0
      %1518 = vmatprep.subr.mxu0 0.0
      %1519 = vmatpush2.msra.mxu0 0.0
      %1520 = vmatprep.subr.mxu0 0.0
      %1521 = vmatpush2.msra.mxu0 0.0
      %1522 = vmatprep.subr.mxu0 0.0
      %1523 = vmatpush2.msra.mxu0 0.0
      %1524 = vmatprep.subr.mxu0 0.0
      %1525 = vmatpush2.msra.mxu0 0.0
      %1526 = vmatprep.subr.mxu0 0.0
      %1527 = vmatpush2.msra.mxu0 0.0
      %1528 = vmatprep.mubr.f32.mxu0 0.0
      %1529 = vmatmul.mubr.f32.gmra.mxu0 %v1462
      %v1530 = vpop.f32.mrf.mxu0
      %v1531 = vadd.f32 0.0, %v1530
      %v1532 = vpop.f32.mrf.mxu0
      %1533 = vdwg.mxu0
      %v1534 = vadd.f32 %v1294, %v1531
      %v1535 = vld [vmem:[%s8] sm:$0x1]
      %v1537 = vlaneseq
      %v1538 = vshrl.u32 %v1537, 7
      %v1539 = vsub.s32 0, %v1538
      %v1540 = vrot.slane %v1535, %v1539
      %v1542 = vadd.f32 %v1534, %v1540
      %1543 = vst.msk [vmem:[%s327] sm:$0xff] %vm340, %v1542
      %p1544 = scmp.lt.s32.totalorder %s20, 1
      %s1545 = scalar_select %p1544, %s20, 1
      %s1546 = smul.addr %s1545, 8
      %s1547 = scalar_lea.vmem %s9, %s1546
      // Predicated region
      $region57: #{centroid_estimator_forward.21} parent=55 // pred_check
        %p1548 = pneg %p232
      $region58: #{centroid_estimator_forward.21} parent=55 // pred_check_branch
        %1550 = sbr.rel (%p1548) target = $region60
      $region59: #{centroid_estimator_forward.21} parent=55 // pred_region
        _
      $region60: #{centroid_estimator_forward.21} parent=55 // pred_fallthru
        _
    $region56: #{centroid_estimator_forward.21} parent=5 // pred_fallthru
      _
    %p1551 = scmp.le.s32.totalorder 2, %s15
    // Predicated region
    $region61: #{centroid_estimator_forward.21} parent=5 // pred_check
      %p1552 = pneg %p1551
    $region62: #{centroid_estimator_forward.21} parent=5 // pred_check_branch
      %1554 = sbr.rel (%p1552) target = $region64
    $region63: #{centroid_estimator_forward.21} parent=5 // pred_region
      %s1555 = ssub.s32 %s15, 2
      // Predicated region
      $region65: #{centroid_estimator_forward.21} parent=63 // pred_check
        %p1556 = pneg %p238
      $region66: #{centroid_estimator_forward.21} parent=63 // pred_check_branch
        %1558 = sbr.rel (%p1556) target = $region68
      $region67: #{centroid_estimator_forward.21} parent=63 // pred_region
        %p1559 = scmp.lt.s32.totalorder %s21, 1
        %s1560 = scalar_select %p1559, %s21, 1
        %s1561 = smul.addr %s1560, 8
        %s1562 = scalar_lea.vmem %s9, %s1561
      $region68: #{centroid_estimator_forward.21} parent=63 // pred_fallthru
        _
    $region64: #{centroid_estimator_forward.21} parent=5 // pred_fallthru
      _
  $region6: #{centroid_estimator_forward.21} parent=0 // loop_footer
    %s19 = sadd.s32 1, %s15
  $region7: #{centroid_estimator_forward.21} parent=0 // loop_footer_branch
    %14 = sbr.rel target = $region3
  $region8: #{centroid_estimator_forward.21} parent=0 // loop_exit
    _

</llo_original>
